<compile_context>
chip_gen: v7x
topology: tpu7x:2x2x1
jax: 0.10.0
libtpu: 0.0.40
codegen_flags: <defaults>
</compile_context>

<pallas_src>
import math

import jax
import jax.numpy as jnp
from jax.experimental import pallas as pl
from jax.experimental.pallas import tpu as pltpu

_SQRT_2_OVER_PI = math.sqrt(2.0 / math.pi)


# TODO(synk): PyTorch F.gelu defaults to the exact erf form; the tanh
# approximation is used here for guaranteed EUP lowering (max deviation ~3e-3).
def _gelu(x):
    return 0.5 * x * (1.0 + jnp.tanh(_SQRT_2_OVER_PI * (x + 0.044715 * x * x * x)))


def _encdec_kernel(x_ref,
                   w1, b1, w2, b2, w3, b3, w4, b4,
                   w5, b5, w6, b6, w7, b7, w8, b8,
                   enc_ref, dec_ref):
    # x_ref: (tb, D0) bf16; w_k: (Din_k, Dout_k) bf16; b_k: (1, Dout_k) f32.
    def lin(h_bf16, w_ref, b_ref):
        return jnp.dot(h_bf16, w_ref[...],
                       preferred_element_type=jnp.float32) + b_ref[...]

    h = x_ref[...]                                        # bf16 (tb, D0)
    h = _gelu(lin(h, w1, b1)).astype(jnp.bfloat16)        # encoder_layer1
    h = _gelu(lin(h, w2, b2)).astype(jnp.bfloat16)        # encoder_layer2
    h = _gelu(lin(h, w3, b3)).astype(jnp.bfloat16)        # encoder_layer3
    enc = lin(h, w4, b4)                                  # encoder_layer4 (no act)
    enc_ref[...] = enc.astype(enc_ref.dtype)

    h = _gelu(lin(enc.astype(jnp.bfloat16), w5, b5)).astype(jnp.bfloat16)  # dec1
    h = _gelu(lin(h, w6, b6)).astype(jnp.bfloat16)        # decoder_layer2
    h = _gelu(lin(h, w7, b7)).astype(jnp.bfloat16)        # decoder_layer3
    dec = lin(h, w8, b8)                                  # decoder_layer4 (no act)
    dec_ref[...] = dec.astype(dec_ref.dtype)


def _round_up(x, m):
    return -(-x // m) * m


def prepare_params(torch_layout_params):
    """One-time parameter setup (hoisted out of the forward path).

    torch_layout_params: list of 8 (weight, bias) with weight in PyTorch
    (out_features, in_features) layout.  Returns (prepped, out_dims) where
    prepped = (w1, b1, ..., w8, b8) with weights transposed to
    (in_pad, out_pad) bf16 (feature dims padded to multiples of 128) and
    biases as (1, out_pad) f32.
    """
    assert len(torch_layout_params) == 8
    prepped = []
    out_dims = []
    for w, b in torch_layout_params:
        w = jnp.asarray(w, jnp.float32)
        b = jnp.asarray(b, jnp.float32)
        d_out, d_in = w.shape
        d_in_p, d_out_p = _round_up(d_in, 128), _round_up(d_out, 128)
        wt = jnp.zeros((d_in_p, d_out_p), jnp.bfloat16)
        wt = wt.at[:d_in, :d_out].set(w.T.astype(jnp.bfloat16))
        bp = jnp.zeros((1, d_out_p), jnp.float32).at[0, :d_out].set(b)
        prepped += [wt, bp]
        out_dims.append(d_out)
    return tuple(prepped), tuple(out_dims)


def mask_gene_encdec_forward(X, prepped, out_dims, *, tb=None):
    """X: (B, D0) float32.  prepped/out_dims from prepare_params."""
    B, D0 = X.shape
    weights = prepped[0::2]
    d0_pad = weights[0].shape[0]
    d4_pad = weights[3].shape[1]
    d8_pad = weights[7].shape[1]
    assert D0 <= d0_pad

    if tb is None:
        tb = min(256, _round_up(B, 8))          # fill MXU rows, grid>=2 when B>=512
    B_pad = _round_up(B, tb)

    if B_pad == B and d0_pad == D0:
        x = X.astype(jnp.bfloat16)
    else:
        x = jnp.zeros((B_pad, d0_pad), jnp.bfloat16)
        x = x.at[:B, :D0].set(X.astype(jnp.bfloat16))

    grid = (B_pad // tb,)

    def batch_map(i):
        return (i, 0)

    def full_map(i):
        return (0, 0)

    in_specs = [pl.BlockSpec((tb, d0_pad), batch_map)]
    for w, b in zip(prepped[0::2], prepped[1::2]):
        in_specs.append(pl.BlockSpec(w.shape, full_map))   # resident weight
        in_specs.append(pl.BlockSpec(b.shape, full_map))   # resident bias

    out_specs = [
        pl.BlockSpec((tb, d4_pad), batch_map),
        pl.BlockSpec((tb, d8_pad), batch_map),
    ]
    out_shape = (
        jax.ShapeDtypeStruct((B_pad, d4_pad), jnp.float32),
        jax.ShapeDtypeStruct((B_pad, d8_pad), jnp.float32),
    )

    enc, dec = pl.pallas_call(
        _encdec_kernel,
        out_shape=out_shape,
        grid_spec=pltpu.PrefetchScalarGridSpec(
            num_scalar_prefetch=0,
            grid=grid,
            in_specs=in_specs,
            out_specs=out_specs,
        ),
        compiler_params=pltpu.CompilerParams(
            dimension_semantics=("parallel",),
            vmem_limit_bytes=64 * 1024 * 1024,
        ),
    )(x, *prepped)

    d4, d8 = out_dims[3], out_dims[7]
    return enc[:B, :d4], dec[:B, :d8]


if __name__ == "__main__":
    # Small autoencoder: 256 -> 128 -> 128 -> 128 (latent) -> 128 -> 128 -> 128 -> 256
    inputs = [256, 128, 128, 128, 128, 128, 128, 128]
    outputs = [128, 128, 128, 128, 128, 128, 128, 256]
    B = 512

    key = jax.random.PRNGKey(0)
    kx, key = jax.random.split(key)
    X = jax.random.normal(kx, (B, inputs[0]), dtype=jnp.float32)

    raw_params = []
    for d_in, d_out in zip(inputs, outputs):
        kw, kb, key = jax.random.split(key, 3)
        bound = 1.0 / math.sqrt(d_in)
        w = jax.random.uniform(kw, (d_out, d_in), jnp.float32, -bound, bound)
        b = jax.random.uniform(kb, (d_out,), jnp.float32, -bound, bound)
        raw_params.append((w, b))

    # One-time setup: transpose / pad / bf16-cast the weights (hoisted out of
    # the per-call forward path).
    prepped, out_dims = prepare_params(raw_params)

    enc, dec = mask_gene_encdec_forward(X, prepped, out_dims)
    enc = jax.block_until_ready(enc)
    dec = jax.block_until_ready(dec)

    # Reference mirrors the kernel's bf16-input / f32-accumulate numerics.
    def reference(X, params):
        h = X
        outs = []
        for i, (w, b) in enumerate(params):
            z = jnp.dot(h.astype(jnp.bfloat16), w.T.astype(jnp.bfloat16),
                        preferred_element_type=jnp.float32) + b
            if i in (3, 7):
                outs.append(z)
                h = z
            else:
                h = _gelu(z)
        return outs[0], outs[1]

    ref_enc, ref_dec = reference(X, raw_params)

    assert enc.shape == (B, outputs[3]) and dec.shape == (B, outputs[7])
    assert jnp.allclose(enc, ref_enc, atol=2e-3, rtol=2e-2), \
        float(jnp.max(jnp.abs(enc - ref_enc)))
    assert jnp.allclose(dec, ref_dec, atol=2e-3, rtol=2e-2), \
        float(jnp.max(jnp.abs(dec - ref_dec)))

    print("KERNEL_OK")
</pallas_src>

<mosaic_0001>
module attributes {stable_mosaic.version = 11 : i64} {
  func.func @_encdec_kernel(%arg0: i32, %arg1: memref<256x256xbf16, #tpu.memory_space<vmem>>, %arg2: memref<256x128xbf16, #tpu.memory_space<vmem>>, %arg3: memref<1x128xf32, #tpu.memory_space<vmem>>, %arg4: memref<128x128xbf16, #tpu.memory_space<vmem>>, %arg5: memref<1x128xf32, #tpu.memory_space<vmem>>, %arg6: memref<128x128xbf16, #tpu.memory_space<vmem>>, %arg7: memref<1x128xf32, #tpu.memory_space<vmem>>, %arg8: memref<128x128xbf16, #tpu.memory_space<vmem>>, %arg9: memref<1x128xf32, #tpu.memory_space<vmem>>, %arg10: memref<128x128xbf16, #tpu.memory_space<vmem>>, %arg11: memref<1x128xf32, #tpu.memory_space<vmem>>, %arg12: memref<128x128xbf16, #tpu.memory_space<vmem>>, %arg13: memref<1x128xf32, #tpu.memory_space<vmem>>, %arg14: memref<128x128xbf16, #tpu.memory_space<vmem>>, %arg15: memref<1x128xf32, #tpu.memory_space<vmem>>, %arg16: memref<128x256xbf16, #tpu.memory_space<vmem>>, %arg17: memref<1x256xf32, #tpu.memory_space<vmem>>, %arg18: memref<256x128xf32, #tpu.memory_space<vmem>>, %arg19: memref<256x256xf32, #tpu.memory_space<vmem>>) attributes {dimension_semantics = [#tpu.dimension_semantics<parallel>], iteration_bounds = array<i64: 2>, scalar_prefetch = 0 : i64, scratch_operands = 0 : i64, tpu.core_type = #tpu.core_type<tc>, window_params = [{transform_indices = @transform_0, window_bounds = array<i64: 256, 256>}, {pipeline_mode = #tpu.pipeline_mode<synchronous>, transform_indices = @transform_1, window_bounds = array<i64: 256, 128>}, {pipeline_mode = #tpu.pipeline_mode<synchronous>, transform_indices = @transform_2, window_bounds = array<i64: 1, 128>}, {pipeline_mode = #tpu.pipeline_mode<synchronous>, transform_indices = @transform_3, window_bounds = array<i64: 128, 128>}, {pipeline_mode = #tpu.pipeline_mode<synchronous>, transform_indices = @transform_4, window_bounds = array<i64: 1, 128>}, {pipeline_mode = #tpu.pipeline_mode<synchronous>, transform_indices = @transform_5, window_bounds = array<i64: 128, 128>}, {pipeline_mode = #tpu.pipeline_mode<synchronous>, transform_indices = @transform_6, window_bounds = array<i64: 1, 128>}, {pipeline_mode = #tpu.pipeline_mode<synchronous>, transform_indices = @transform_7, window_bounds = array<i64: 128, 128>}, {pipeline_mode = #tpu.pipeline_mode<synchronous>, transform_indices = @transform_8, window_bounds = array<i64: 1, 128>}, {pipeline_mode = #tpu.pipeline_mode<synchronous>, transform_indices = @transform_9, window_bounds = array<i64: 128, 128>}, {pipeline_mode = #tpu.pipeline_mode<synchronous>, transform_indices = @transform_10, window_bounds = array<i64: 1, 128>}, {pipeline_mode = #tpu.pipeline_mode<synchronous>, transform_indices = @transform_11, window_bounds = array<i64: 128, 128>}, {pipeline_mode = #tpu.pipeline_mode<synchronous>, transform_indices = @transform_12, window_bounds = array<i64: 1, 128>}, {pipeline_mode = #tpu.pipeline_mode<synchronous>, transform_indices = @transform_13, window_bounds = array<i64: 128, 128>}, {pipeline_mode = #tpu.pipeline_mode<synchronous>, transform_indices = @transform_14, window_bounds = array<i64: 1, 128>}, {pipeline_mode = #tpu.pipeline_mode<synchronous>, transform_indices = @transform_15, window_bounds = array<i64: 128, 256>}, {pipeline_mode = #tpu.pipeline_mode<synchronous>, transform_indices = @transform_16, window_bounds = array<i64: 1, 256>}, {transform_indices = @transform_17, window_bounds = array<i64: 256, 128>}, {transform_indices = @transform_18, window_bounds = array<i64: 256, 256>}]} {
    %c0 = arith.constant 0 : index
    %c0_0 = arith.constant 0 : index
    %0 = vector.load %arg1[%c0, %c0_0] : memref<256x256xbf16, #tpu.memory_space<vmem>>, vector<256x256xbf16>
    %c0_1 = arith.constant 0 : index
    %c0_2 = arith.constant 0 : index
    %1 = vector.load %arg2[%c0_1, %c0_2] : memref<256x128xbf16, #tpu.memory_space<vmem>>, vector<256x128xbf16>
    %cst = arith.constant dense<0.000000e+00> : vector<256x128xf32>
    %2 = tpu.matmul %0, %1, %cst {dimension_numbers = #tpu.dot_dimension_numbers<[1], [0], [0], [1], [0, 0, 1, 1], [], []>} : vector<256x256xbf16>, vector<256x128xbf16>, vector<256x128xf32> -> vector<256x128xf32>
    %c0_3 = arith.constant 0 : index
    %c0_4 = arith.constant 0 : index
    %3 = vector.load %arg3[%c0_3, %c0_4] : memref<1x128xf32, #tpu.memory_space<vmem>>, vector<1x128xf32>
    %4 = vector.broadcast %3 : vector<1x128xf32> to vector<256x128xf32>
    %5 = arith.addf %2, %4 : vector<256x128xf32>
    %cst_5 = arith.constant 5.000000e-01 : f32
    %6 = vector.broadcast %cst_5 : f32 to vector<256x128xf32>
    %7 = arith.mulf %6, %5 : vector<256x128xf32>
    %cst_6 = arith.constant 4.471500e-02 : f32
    %8 = vector.broadcast %cst_6 : f32 to vector<256x128xf32>
    %9 = arith.mulf %8, %5 : vector<256x128xf32>
    %10 = arith.mulf %9, %5 : vector<256x128xf32>
    %11 = arith.mulf %10, %5 : vector<256x128xf32>
    %12 = arith.addf %5, %11 : vector<256x128xf32>
    %cst_7 = arith.constant 0.797884583 : f32
    %13 = vector.broadcast %cst_7 : f32 to vector<256x128xf32>
    %14 = arith.mulf %13, %12 : vector<256x128xf32>
    %15 = math.tanh %14 : vector<256x128xf32>
    %cst_8 = arith.constant 1.000000e+00 : f32
    %16 = vector.broadcast %cst_8 : f32 to vector<256x128xf32>
    %17 = arith.addf %16, %15 : vector<256x128xf32>
    %18 = arith.mulf %7, %17 : vector<256x128xf32>
    %19 = arith.truncf %18 : vector<256x128xf32> to vector<256x128xbf16>
    %c0_9 = arith.constant 0 : index
    %c0_10 = arith.constant 0 : index
    %20 = vector.load %arg4[%c0_9, %c0_10] : memref<128x128xbf16, #tpu.memory_space<vmem>>, vector<128x128xbf16>
    %cst_11 = arith.constant dense<0.000000e+00> : vector<256x128xf32>
    %21 = tpu.matmul %19, %20, %cst_11 {dimension_numbers = #tpu.dot_dimension_numbers<[1], [0], [0], [1], [0, 0, 1, 1], [], []>} : vector<256x128xbf16>, vector<128x128xbf16>, vector<256x128xf32> -> vector<256x128xf32>
    %c0_12 = arith.constant 0 : index
    %c0_13 = arith.constant 0 : index
    %22 = vector.load %arg5[%c0_12, %c0_13] : memref<1x128xf32, #tpu.memory_space<vmem>>, vector<1x128xf32>
    %23 = vector.broadcast %22 : vector<1x128xf32> to vector<256x128xf32>
    %24 = arith.addf %21, %23 : vector<256x128xf32>
    %cst_14 = arith.constant 5.000000e-01 : f32
    %25 = vector.broadcast %cst_14 : f32 to vector<256x128xf32>
    %26 = arith.mulf %25, %24 : vector<256x128xf32>
    %cst_15 = arith.constant 4.471500e-02 : f32
    %27 = vector.broadcast %cst_15 : f32 to vector<256x128xf32>
    %28 = arith.mulf %27, %24 : vector<256x128xf32>
    %29 = arith.mulf %28, %24 : vector<256x128xf32>
    %30 = arith.mulf %29, %24 : vector<256x128xf32>
    %31 = arith.addf %24, %30 : vector<256x128xf32>
    %cst_16 = arith.constant 0.797884583 : f32
    %32 = vector.broadcast %cst_16 : f32 to vector<256x128xf32>
    %33 = arith.mulf %32, %31 : vector<256x128xf32>
    %34 = math.tanh %33 : vector<256x128xf32>
    %cst_17 = arith.constant 1.000000e+00 : f32
    %35 = vector.broadcast %cst_17 : f32 to vector<256x128xf32>
    %36 = arith.addf %35, %34 : vector<256x128xf32>
    %37 = arith.mulf %26, %36 : vector<256x128xf32>
    %38 = arith.truncf %37 : vector<256x128xf32> to vector<256x128xbf16>
    %c0_18 = arith.constant 0 : index
    %c0_19 = arith.constant 0 : index
    %39 = vector.load %arg6[%c0_18, %c0_19] : memref<128x128xbf16, #tpu.memory_space<vmem>>, vector<128x128xbf16>
    %cst_20 = arith.constant dense<0.000000e+00> : vector<256x128xf32>
    %40 = tpu.matmul %38, %39, %cst_20 {dimension_numbers = #tpu.dot_dimension_numbers<[1], [0], [0], [1], [0, 0, 1, 1], [], []>} : vector<256x128xbf16>, vector<128x128xbf16>, vector<256x128xf32> -> vector<256x128xf32>
    %c0_21 = arith.constant 0 : index
    %c0_22 = arith.constant 0 : index
    %41 = vector.load %arg7[%c0_21, %c0_22] : memref<1x128xf32, #tpu.memory_space<vmem>>, vector<1x128xf32>
    %42 = vector.broadcast %41 : vector<1x128xf32> to vector<256x128xf32>
    %43 = arith.addf %40, %42 : vector<256x128xf32>
    %cst_23 = arith.constant 5.000000e-01 : f32
    %44 = vector.broadcast %cst_23 : f32 to vector<256x128xf32>
    %45 = arith.mulf %44, %43 : vector<256x128xf32>
    %cst_24 = arith.constant 4.471500e-02 : f32
    %46 = vector.broadcast %cst_24 : f32 to vector<256x128xf32>
    %47 = arith.mulf %46, %43 : vector<256x128xf32>
    %48 = arith.mulf %47, %43 : vector<256x128xf32>
    %49 = arith.mulf %48, %43 : vector<256x128xf32>
    %50 = arith.addf %43, %49 : vector<256x128xf32>
    %cst_25 = arith.constant 0.797884583 : f32
    %51 = vector.broadcast %cst_25 : f32 to vector<256x128xf32>
    %52 = arith.mulf %51, %50 : vector<256x128xf32>
    %53 = math.tanh %52 : vector<256x128xf32>
    %cst_26 = arith.constant 1.000000e+00 : f32
    %54 = vector.broadcast %cst_26 : f32 to vector<256x128xf32>
    %55 = arith.addf %54, %53 : vector<256x128xf32>
    %56 = arith.mulf %45, %55 : vector<256x128xf32>
    %57 = arith.truncf %56 : vector<256x128xf32> to vector<256x128xbf16>
    %c0_27 = arith.constant 0 : index
    %c0_28 = arith.constant 0 : index
    %58 = vector.load %arg8[%c0_27, %c0_28] : memref<128x128xbf16, #tpu.memory_space<vmem>>, vector<128x128xbf16>
    %cst_29 = arith.constant dense<0.000000e+00> : vector<256x128xf32>
    %59 = tpu.matmul %57, %58, %cst_29 {dimension_numbers = #tpu.dot_dimension_numbers<[1], [0], [0], [1], [0, 0, 1, 1], [], []>} : vector<256x128xbf16>, vector<128x128xbf16>, vector<256x128xf32> -> vector<256x128xf32>
    %c0_30 = arith.constant 0 : index
    %c0_31 = arith.constant 0 : index
    %60 = vector.load %arg9[%c0_30, %c0_31] : memref<1x128xf32, #tpu.memory_space<vmem>>, vector<1x128xf32>
    %61 = vector.broadcast %60 : vector<1x128xf32> to vector<256x128xf32>
    %62 = arith.addf %59, %61 : vector<256x128xf32>
    %c0_32 = arith.constant 0 : index
    %c0_33 = arith.constant 0 : index
    %63 = vector.load %arg18[%c0_32, %c0_33] : memref<256x128xf32, #tpu.memory_space<vmem>>, vector<256x128xf32>
    tpu.vector_store %arg18[%c0_32, %c0_33], %62 {strides = array<i32>} : memref<256x128xf32, #tpu.memory_space<vmem>>, vector<256x128xf32>,
    %64 = arith.truncf %62 : vector<256x128xf32> to vector<256x128xbf16>
    %c0_34 = arith.constant 0 : index
    %c0_35 = arith.constant 0 : index
    %65 = vector.load %arg10[%c0_34, %c0_35] : memref<128x128xbf16, #tpu.memory_space<vmem>>, vector<128x128xbf16>
    %cst_36 = arith.constant dense<0.000000e+00> : vector<256x128xf32>
    %66 = tpu.matmul %64, %65, %cst_36 {dimension_numbers = #tpu.dot_dimension_numbers<[1], [0], [0], [1], [0, 0, 1, 1], [], []>} : vector<256x128xbf16>, vector<128x128xbf16>, vector<256x128xf32> -> vector<256x128xf32>
    %c0_37 = arith.constant 0 : index
    %c0_38 = arith.constant 0 : index
    %67 = vector.load %arg11[%c0_37, %c0_38] : memref<1x128xf32, #tpu.memory_space<vmem>>, vector<1x128xf32>
    %68 = vector.broadcast %67 : vector<1x128xf32> to vector<256x128xf32>
    %69 = arith.addf %66, %68 : vector<256x128xf32>
    %cst_39 = arith.constant 5.000000e-01 : f32
    %70 = vector.broadcast %cst_39 : f32 to vector<256x128xf32>
    %71 = arith.mulf %70, %69 : vector<256x128xf32>
    %cst_40 = arith.constant 4.471500e-02 : f32
    %72 = vector.broadcast %cst_40 : f32 to vector<256x128xf32>
    %73 = arith.mulf %72, %69 : vector<256x128xf32>
    %74 = arith.mulf %73, %69 : vector<256x128xf32>
    %75 = arith.mulf %74, %69 : vector<256x128xf32>
    %76 = arith.addf %69, %75 : vector<256x128xf32>
    %cst_41 = arith.constant 0.797884583 : f32
    %77 = vector.broadcast %cst_41 : f32 to vector<256x128xf32>
    %78 = arith.mulf %77, %76 : vector<256x128xf32>
    %79 = math.tanh %78 : vector<256x128xf32>
    %cst_42 = arith.constant 1.000000e+00 : f32
    %80 = vector.broadcast %cst_42 : f32 to vector<256x128xf32>
    %81 = arith.addf %80, %79 : vector<256x128xf32>
    %82 = arith.mulf %71, %81 : vector<256x128xf32>
    %83 = arith.truncf %82 : vector<256x128xf32> to vector<256x128xbf16>
    %c0_43 = arith.constant 0 : index
    %c0_44 = arith.constant 0 : index
    %84 = vector.load %arg12[%c0_43, %c0_44] : memref<128x128xbf16, #tpu.memory_space<vmem>>, vector<128x128xbf16>
    %cst_45 = arith.constant dense<0.000000e+00> : vector<256x128xf32>
    %85 = tpu.matmul %83, %84, %cst_45 {dimension_numbers = #tpu.dot_dimension_numbers<[1], [0], [0], [1], [0, 0, 1, 1], [], []>} : vector<256x128xbf16>, vector<128x128xbf16>, vector<256x128xf32> -> vector<256x128xf32>
    %c0_46 = arith.constant 0 : index
    %c0_47 = arith.constant 0 : index
    %86 = vector.load %arg13[%c0_46, %c0_47] : memref<1x128xf32, #tpu.memory_space<vmem>>, vector<1x128xf32>
    %87 = vector.broadcast %86 : vector<1x128xf32> to vector<256x128xf32>
    %88 = arith.addf %85, %87 : vector<256x128xf32>
    %cst_48 = arith.constant 5.000000e-01 : f32
    %89 = vector.broadcast %cst_48 : f32 to vector<256x128xf32>
    %90 = arith.mulf %89, %88 : vector<256x128xf32>
    %cst_49 = arith.constant 4.471500e-02 : f32
    %91 = vector.broadcast %cst_49 : f32 to vector<256x128xf32>
    %92 = arith.mulf %91, %88 : vector<256x128xf32>
    %93 = arith.mulf %92, %88 : vector<256x128xf32>
    %94 = arith.mulf %93, %88 : vector<256x128xf32>
    %95 = arith.addf %88, %94 : vector<256x128xf32>
    %cst_50 = arith.constant 0.797884583 : f32
    %96 = vector.broadcast %cst_50 : f32 to vector<256x128xf32>
    %97 = arith.mulf %96, %95 : vector<256x128xf32>
    %98 = math.tanh %97 : vector<256x128xf32>
    %cst_51 = arith.constant 1.000000e+00 : f32
    %99 = vector.broadcast %cst_51 : f32 to vector<256x128xf32>
    %100 = arith.addf %99, %98 : vector<256x128xf32>
    %101 = arith.mulf %90, %100 : vector<256x128xf32>
    %102 = arith.truncf %101 : vector<256x128xf32> to vector<256x128xbf16>
    %c0_52 = arith.constant 0 : index
    %c0_53 = arith.constant 0 : index
    %103 = vector.load %arg14[%c0_52, %c0_53] : memref<128x128xbf16, #tpu.memory_space<vmem>>, vector<128x128xbf16>
    %cst_54 = arith.constant dense<0.000000e+00> : vector<256x128xf32>
    %104 = tpu.matmul %102, %103, %cst_54 {dimension_numbers = #tpu.dot_dimension_numbers<[1], [0], [0], [1], [0, 0, 1, 1], [], []>} : vector<256x128xbf16>, vector<128x128xbf16>, vector<256x128xf32> -> vector<256x128xf32>
    %c0_55 = arith.constant 0 : index
    %c0_56 = arith.constant 0 : index
    %105 = vector.load %arg15[%c0_55, %c0_56] : memref<1x128xf32, #tpu.memory_space<vmem>>, vector<1x128xf32>
    %106 = vector.broadcast %105 : vector<1x128xf32> to vector<256x128xf32>
    %107 = arith.addf %104, %106 : vector<256x128xf32>
    %cst_57 = arith.constant 5.000000e-01 : f32
    %108 = vector.broadcast %cst_57 : f32 to vector<256x128xf32>
    %109 = arith.mulf %108, %107 : vector<256x128xf32>
    %cst_58 = arith.constant 4.471500e-02 : f32
    %110 = vector.broadcast %cst_58 : f32 to vector<256x128xf32>
    %111 = arith.mulf %110, %107 : vector<256x128xf32>
    %112 = arith.mulf %111, %107 : vector<256x128xf32>
    %113 = arith.mulf %112, %107 : vector<256x128xf32>
    %114 = arith.addf %107, %113 : vector<256x128xf32>
    %cst_59 = arith.constant 0.797884583 : f32
    %115 = vector.broadcast %cst_59 : f32 to vector<256x128xf32>
    %116 = arith.mulf %115, %114 : vector<256x128xf32>
    %117 = math.tanh %116 : vector<256x128xf32>
    %cst_60 = arith.constant 1.000000e+00 : f32
    %118 = vector.broadcast %cst_60 : f32 to vector<256x128xf32>
    %119 = arith.addf %118, %117 : vector<256x128xf32>
    %120 = arith.mulf %109, %119 : vector<256x128xf32>
    %121 = arith.truncf %120 : vector<256x128xf32> to vector<256x128xbf16>
    %c0_61 = arith.constant 0 : index
    %c0_62 = arith.constant 0 : index
    %122 = vector.load %arg16[%c0_61, %c0_62] : memref<128x256xbf16, #tpu.memory_space<vmem>>, vector<128x256xbf16>
    %cst_63 = arith.constant dense<0.000000e+00> : vector<256x256xf32>
    %123 = tpu.matmul %121, %122, %cst_63 {dimension_numbers = #tpu.dot_dimension_numbers<[1], [0], [0], [1], [0, 0, 1, 1], [], []>} : vector<256x128xbf16>, vector<128x256xbf16>, vector<256x256xf32> -> vector<256x256xf32>
    %c0_64 = arith.constant 0 : index
    %c0_65 = arith.constant 0 : index
    %124 = vector.load %arg17[%c0_64, %c0_65] : memref<1x256xf32, #tpu.memory_space<vmem>>, vector<1x256xf32>
    %125 = vector.broadcast %124 : vector<1x256xf32> to vector<256x256xf32>
    %126 = arith.addf %123, %125 : vector<256x256xf32>
    %c0_66 = arith.constant 0 : index
    %c0_67 = arith.constant 0 : index
    %127 = vector.load %arg19[%c0_66, %c0_67] : memref<256x256xf32, #tpu.memory_space<vmem>>, vector<256x256xf32>
    tpu.vector_store %arg19[%c0_66, %c0_67], %126 {strides = array<i32>} : memref<256x256xf32, #tpu.memory_space<vmem>>, vector<256x256xf32>,
    return
  }
  func.func @transform_0(%arg0: i32) -> (i32, i32) {
    %c0_i32 = arith.constant 0 : i32
    %c0_i32_0 = arith.constant 0 : i32
    return %arg0, %c0_i32 : i32, i32
  }
  func.func @transform_1(%arg0: i32) -> (i32, i32) {
    %c0_i32 = arith.constant 0 : i32
    %c0_i32_0 = arith.constant 0 : i32
    %c0_i32_1 = arith.constant 0 : i32
    return %c0_i32, %c0_i32_0 : i32, i32
  }
  func.func @transform_2(%arg0: i32) -> (i32, i32) {
    %c0_i32 = arith.constant 0 : i32
    %c0_i32_0 = arith.constant 0 : i32
    %c0_i32_1 = arith.constant 0 : i32
    return %c0_i32, %c0_i32_0 : i32, i32
  }
  func.func @transform_3(%arg0: i32) -> (i32, i32) {
    %c0_i32 = arith.constant 0 : i32
    %c0_i32_0 = arith.constant 0 : i32
    %c0_i32_1 = arith.constant 0 : i32
    return %c0_i32, %c0_i32_0 : i32, i32
  }
  func.func @transform_4(%arg0: i32) -> (i32, i32) {
    %c0_i32 = arith.constant 0 : i32
    %c0_i32_0 = arith.constant 0 : i32
    %c0_i32_1 = arith.constant 0 : i32
    return %c0_i32, %c0_i32_0 : i32, i32
  }
  func.func @transform_5(%arg0: i32) -> (i32, i32) {
    %c0_i32 = arith.constant 0 : i32
    %c0_i32_0 = arith.constant 0 : i32
    %c0_i32_1 = arith.constant 0 : i32
    return %c0_i32, %c0_i32_0 : i32, i32
  }
  func.func @transform_6(%arg0: i32) -> (i32, i32) {
    %c0_i32 = arith.constant 0 : i32
    %c0_i32_0 = arith.constant 0 : i32
    %c0_i32_1 = arith.constant 0 : i32
    return %c0_i32, %c0_i32_0 : i32, i32
  }
  func.func @transform_7(%arg0: i32) -> (i32, i32) {
    %c0_i32 = arith.constant 0 : i32
    %c0_i32_0 = arith.constant 0 : i32
    %c0_i32_1 = arith.constant 0 : i32
    return %c0_i32, %c0_i32_0 : i32, i32
  }
  func.func @transform_8(%arg0: i32) -> (i32, i32) {
    %c0_i32 = arith.constant 0 : i32
    %c0_i32_0 = arith.constant 0 : i32
    %c0_i32_1 = arith.constant 0 : i32
    return %c0_i32, %c0_i32_0 : i32, i32
  }
  func.func @transform_9(%arg0: i32) -> (i32, i32) {
    %c0_i32 = arith.constant 0 : i32
    %c0_i32_0 = arith.constant 0 : i32
    %c0_i32_1 = arith.constant 0 : i32
    return %c0_i32, %c0_i32_0 : i32, i32
  }
  func.func @transform_10(%arg0: i32) -> (i32, i32) {
    %c0_i32 = arith.constant 0 : i32
    %c0_i32_0 = arith.constant 0 : i32
    %c0_i32_1 = arith.constant 0 : i32
    return %c0_i32, %c0_i32_0 : i32, i32
  }
  func.func @transform_11(%arg0: i32) -> (i32, i32) {
    %c0_i32 = arith.constant 0 : i32
    %c0_i32_0 = arith.constant 0 : i32
    %c0_i32_1 = arith.constant 0 : i32
    return %c0_i32, %c0_i32_0 : i32, i32
  }
  func.func @transform_12(%arg0: i32) -> (i32, i32) {
    %c0_i32 = arith.constant 0 : i32
    %c0_i32_0 = arith.constant 0 : i32
    %c0_i32_1 = arith.constant 0 : i32
    return %c0_i32, %c0_i32_0 : i32, i32
  }
  func.func @transform_13(%arg0: i32) -> (i32, i32) {
    %c0_i32 = arith.constant 0 : i32
    %c0_i32_0 = arith.constant 0 : i32
    %c0_i32_1 = arith.constant 0 : i32
    return %c0_i32, %c0_i32_0 : i32, i32
  }
  func.func @transform_14(%arg0: i32) -> (i32, i32) {
    %c0_i32 = arith.constant 0 : i32
    %c0_i32_0 = arith.constant 0 : i32
    %c0_i32_1 = arith.constant 0 : i32
    return %c0_i32, %c0_i32_0 : i32, i32
  }
  func.func @transform_15(%arg0: i32) -> (i32, i32) {
    %c0_i32 = arith.constant 0 : i32
    %c0_i32_0 = arith.constant 0 : i32
    %c0_i32_1 = arith.constant 0 : i32
    return %c0_i32, %c0_i32_0 : i32, i32
  }
  func.func @transform_16(%arg0: i32) -> (i32, i32) {
    %c0_i32 = arith.constant 0 : i32
    %c0_i32_0 = arith.constant 0 : i32
    %c0_i32_1 = arith.constant 0 : i32
    return %c0_i32, %c0_i32_0 : i32, i32
  }
  func.func @transform_17(%arg0: i32) -> (i32, i32) {
    %c0_i32 = arith.constant 0 : i32
    %c0_i32_0 = arith.constant 0 : i32
    return %arg0, %c0_i32 : i32, i32
  }
  func.func @transform_18(%arg0: i32) -> (i32, i32) {
    %c0_i32 = arith.constant 0 : i32
    %c0_i32_0 = arith.constant 0 : i32
    return %arg0, %c0_i32 : i32, i32
  }
}

</mosaic_0001>

<llo_original>
// kernel: tpu_custom_call.1
$region0: #{tpu_custom_call.1}
  #allocation0 [shape = 'u32[]', space=smem, size = 0x4, offset = 0x4, fixed_abs, tag = 'smem constant byte address 0x4 - core index']
  #allocation1 [shape = 'u32[144,128]{1,0:T(1,128)}', space=vmem, size = 0x12000, scoped, tag = 'internal scratch']
  %s0 = inlined_call_operand.hbm [shape: bf16[512,256], index: 0, kind: input, shape index: {}]
  %s1 = inlined_call_operand.hbm [shape: bf16[256,128], index: 1, kind: input, shape index: {}]
  %s2 = inlined_call_operand.hbm [shape: f32[1,128], index: 2, kind: input, shape index: {}]
  %s3 = inlined_call_operand.hbm [shape: bf16[128,128], index: 3, kind: input, shape index: {}]
  %s4 = inlined_call_operand.hbm [shape: f32[1,128], index: 4, kind: input, shape index: {}]
  %s5 = inlined_call_operand.hbm [shape: bf16[128,128], index: 5, kind: input, shape index: {}]
  %s6 = inlined_call_operand.hbm [shape: f32[1,128], index: 6, kind: input, shape index: {}]
  %s7 = inlined_call_operand.hbm [shape: bf16[128,128], index: 7, kind: input, shape index: {}]
  %s8 = inlined_call_operand.hbm [shape: f32[1,128], index: 8, kind: input, shape index: {}]
  %s9 = inlined_call_operand.hbm [shape: bf16[128,128], index: 9, kind: input, shape index: {}]
  %s10 = inlined_call_operand.hbm [shape: f32[1,128], index: 10, kind: input, shape index: {}]
  %s11 = inlined_call_operand.hbm [shape: bf16[128,128], index: 11, kind: input, shape index: {}]
  %s12 = inlined_call_operand.hbm [shape: f32[1,128], index: 12, kind: input, shape index: {}]
  %s13 = inlined_call_operand.hbm [shape: bf16[128,128], index: 13, kind: input, shape index: {}]
  %s14 = inlined_call_operand.hbm [shape: f32[1,128], index: 14, kind: input, shape index: {}]
  %s15 = inlined_call_operand.hbm [shape: bf16[128,256], index: 15, kind: input, shape index: {}]
  %s16 = inlined_call_operand.hbm [shape: f32[1,256], index: 16, kind: input, shape index: {}]
  %s17 = inlined_call_operand.hbm [shape: f32[512,128], index: 17, kind: output, shape index: {0}]
  %s18 = inlined_call_operand.hbm [shape: f32[512,256], index: 18, kind: output, shape index: {1}]
  %19 = xla_tuple %s17, %s18
  %s20 = sld [smem:[#allocation0]]
  $region177: #{tpu_custom_call.1} parent=0
    _
  %s22 = ssub.s32 1, %s20
  %s23 = scalar_select 0, %s22, %s20
  $region1: #{tpu_custom_call.1} parent=0
    #allocation2 [shape = 'u8[262144]{0}', space=vmem, size = 0x40000, scoped, tag = 'input window, operand 0']
    #allocation3 [shape = 's32[2]{0}', space=sflag, size = 0x8, scoped, tag = 'scoped memory for tpu_custom_call.1']
    #allocation4 [shape = 's32[2]{0}', space=sflag, size = 0x8, scoped, tag = 'scoped memory for tpu_custom_call.1']
    #allocation5 [shape = 'u8[65536]{0}', space=vmem, size = 0x10000, scoped, tag = 'input window, operand 1, single buffered']
    #allocation6 [shape = 's32[1]{0}', space=sflag, size = 0x4, scoped, tag = 'scoped memory for tpu_custom_call.1']
    #allocation7 [shape = 'u8[512]{0}', space=vmem, size = 0x400, scoped, tag = 'input window, operand 2, single buffered']
    #allocation8 [shape = 'u8[32768]{0}', space=vmem, size = 0x8000, scoped, tag = 'input window, operand 3, single buffered']
    #allocation9 [shape = 's32[1]{0}', space=sflag, size = 0x4, scoped, tag = 'scoped memory for tpu_custom_call.1']
    #allocation10 [shape = 'u8[512]{0}', space=vmem, size = 0x400, scoped, tag = 'input window, operand 4, single buffered']
    #allocation11 [shape = 'u8[32768]{0}', space=vmem, size = 0x8000, scoped, tag = 'input window, operand 5, single buffered']
    #allocation12 [shape = 's32[1]{0}', space=sflag, size = 0x4, scoped, tag = 'scoped memory for tpu_custom_call.1']
    #allocation13 [shape = 'u8[512]{0}', space=vmem, size = 0x400, scoped, tag = 'input window, operand 6, single buffered']
    #allocation14 [shape = 'u8[32768]{0}', space=vmem, size = 0x8000, scoped, tag = 'input window, operand 7, single buffered']
    #allocation15 [shape = 's32[1]{0}', space=sflag, size = 0x4, scoped, tag = 'scoped memory for tpu_custom_call.1']
    #allocation16 [shape = 'u8[512]{0}', space=vmem, size = 0x400, scoped, tag = 'input window, operand 8, single buffered']
    #allocation17 [shape = 'u8[32768]{0}', space=vmem, size = 0x8000, scoped, tag = 'input window, operand 9, single buffered']
    #allocation18 [shape = 's32[1]{0}', space=sflag, size = 0x4, scoped, tag = 'scoped memory for tpu_custom_call.1']
    #allocation19 [shape = 'u8[512]{0}', space=vmem, size = 0x400, scoped, tag = 'input window, operand 10, single buffered']
    #allocation20 [shape = 'u8[32768]{0}', space=vmem, size = 0x8000, scoped, tag = 'input window, operand 11, single buffered']
    #allocation21 [shape = 's32[1]{0}', space=sflag, size = 0x4, scoped, tag = 'scoped memory for tpu_custom_call.1']
    #allocation22 [shape = 'u8[512]{0}', space=vmem, size = 0x400, scoped, tag = 'input window, operand 12, single buffered']
    #allocation23 [shape = 'u8[32768]{0}', space=vmem, size = 0x8000, scoped, tag = 'input window, operand 13, single buffered']
    #allocation24 [shape = 's32[1]{0}', space=sflag, size = 0x4, scoped, tag = 'scoped memory for tpu_custom_call.1']
    #allocation25 [shape = 'u8[512]{0}', space=vmem, size = 0x400, scoped, tag = 'input window, operand 14, single buffered']
    #allocation26 [shape = 'u8[65536]{0}', space=vmem, size = 0x10000, scoped, tag = 'input window, operand 15, single buffered']
    #allocation27 [shape = 's32[1]{0}', space=sflag, size = 0x4, scoped, tag = 'scoped memory for tpu_custom_call.1']
    #allocation28 [shape = 'u8[1024]{0}', space=vmem, size = 0x400, scoped, tag = 'input window, operand 16, single buffered']
    #allocation29 [shape = 'u8[262144]{0}', space=vmem, size = 0x40000, scoped, tag = 'output window, operand 0']
    #allocation30 [shape = 'u8[524288]{0}', space=vmem, size = 0x80000, scoped, tag = 'output window, operand 1']
    #allocation31 [shape = 's32[2]{0}', space=sflag, size = 0x8, scoped, tag = 'scoped memory for tpu_custom_call.1']
    %24 = vsyncpa [#allocation3], 0
    %s25 = scalar_lea.sflag [#allocation3], 1
    %26 = vsyncpa %s25, 0
    %27 = vsyncpa [#allocation6], 0
    %28 = vsyncpa [#allocation9], 0
    %29 = vsyncpa [#allocation12], 0
    %30 = vsyncpa [#allocation15], 0
    %31 = vsyncpa [#allocation18], 0
    %32 = vsyncpa [#allocation21], 0
    %33 = vsyncpa [#allocation24], 0
    %34 = vsyncpa [#allocation27], 0
    %35 = vsyncpa [#allocation4], 0
    %s36 = scalar_lea.sflag [#allocation4], 1
    %37 = vsyncpa %s36, 0
    %38 = vsyncpa [#allocation31], 0
    %s39 = scalar_lea.sflag [#allocation31], 1
    %40 = vsyncpa %s39, 0
    loop: start=0, step=1, limit=4
    $region2: #{tpu_custom_call.1} parent=1 // loop_pre_header
      _
    $region3: #{tpu_custom_call.1} parent=1 // loop_header
      %s42 = sphi 0, %s46
      %p43 = scmp.ge.s32.totalorder %s42, 4
      %s52 = sphi 0, %s54
      %s55 = sphi 0, %s52
      %s56 = sphi 0, %s55
      %s72 = sphi 0, %s56
      %s76 = sphi 0, %s76
      %s78 = sphi 0, %s76
      %s79 = sphi 0, %s78
      %s93 = sphi 0, %s79
      %s97 = sphi 0, %s97
      %s99 = sphi 0, %s97
      %s100 = sphi 0, %s99
      %s114 = sphi 0, %s100
      %s118 = sphi 0, %s118
      %s120 = sphi 0, %s118
      %s121 = sphi 0, %s120
      %s135 = sphi 0, %s121
      %s139 = sphi 0, %s139
      %s141 = sphi 0, %s139
      %s142 = sphi 0, %s141
      %s156 = sphi 0, %s142
      %s160 = sphi 0, %s160
      %s162 = sphi 0, %s160
      %s163 = sphi 0, %s162
      %s177 = sphi 0, %s163
      %s181 = sphi 0, %s181
      %s183 = sphi 0, %s181
      %s184 = sphi 0, %s183
      %s198 = sphi 0, %s184
      %s202 = sphi 0, %s202
      %s204 = sphi 0, %s202
      %s205 = sphi 0, %s204
      %s219 = sphi 0, %s205
      %s223 = sphi 0, %s223
      %s225 = sphi 0, %s223
      %s226 = sphi 0, %s225
      %s240 = sphi 0, %s226
      %s244 = sphi 0, %s244
      %s246 = sphi 0, %s244
      %s247 = sphi 0, %s246
      %s261 = sphi 0, %s247
      %s265 = sphi 0, %s265
      %s267 = sphi 0, %s265
      %s268 = sphi 0, %s267
      %s282 = sphi 0, %s268
      %s286 = sphi 0, %s286
      %s288 = sphi 0, %s286
      %s289 = sphi 0, %s288
      %s303 = sphi 0, %s289
      %s307 = sphi 0, %s307
      %s309 = sphi 0, %s307
      %s310 = sphi 0, %s309
      %s324 = sphi 0, %s310
      %s328 = sphi 0, %s328
      %s330 = sphi 0, %s328
      %s331 = sphi 0, %s330
      %s345 = sphi 0, %s331
      %s349 = sphi 0, %s349
      %s351 = sphi 0, %s349
      %s352 = sphi 0, %s351
      %s366 = sphi 0, %s352
      %s370 = sphi 0, %s370
      %s372 = sphi 0, %s370
      %s373 = sphi 0, %s372
      %s387 = sphi 0, %s373
      %s391 = sphi 0, %s391
      %s393 = sphi 0, %s391
      %s394 = sphi 0, %s393
      %s408 = sphi 0, %s394
      %s414 = sphi 0, %s416
      %s417 = sphi 0, %s414
      %s418 = sphi 0, %s417
      %s434 = sphi 0, %s418
      %s440 = sphi 0, %s442
      %s443 = sphi 0, %s440
      %s444 = sphi 0, %s443
      %s460 = sphi 0, %s444
    $region4: #{tpu_custom_call.1} parent=1 // loop_header_branch
      %45 = sbr.rel (%p43) target = $region8
    $region5: #{tpu_custom_call.1} parent=1 // loop_body
      %s47 = ssub.s32 %s42, 1
      %s48 = ssub.s32 %s42, 2
      %s49 = sadd.s32 %s42, 1
      %s50 = ssub.s32 %s42, %s49
      %p51 = scmp.eq.s32.totalorder %s50, 0
      %s53 = sadd.s32 %s52, 1
      %s54 = scalar_select %p51, %s52, %s53
      %p57 = pneg %p51
      %p58 = scmp.eq.s32.totalorder %s42, 1
      %p59 = por %p57, %p58
      %p60 = scmp.ne.s32.totalorder %s52, %s55
      %p61 = scmp.eq.s32.totalorder %s42, 0
      %p62 = por %p60, %p61
      %p63 = scmp.ne.s32.totalorder %s52, %s55
      %p64 = scmp.eq.s32.totalorder %s47, 1
      %p65 = por %p63, %p64
      %p66 = scmp.ne.s32.totalorder %s55, %s56
      %p67 = scmp.eq.s32.totalorder %s47, 0
      %p68 = por %p66, %p67
      %p69 = scmp.ne.s32.totalorder %s55, %s56
      %p70 = scmp.eq.s32.totalorder %s48, 1
      %p71 = por %p69, %p70
      %p73 = scmp.ne.s32.totalorder %s56, %s72
      %p74 = scmp.eq.s32.totalorder %s48, 0
      %p75 = por %p73, %p74
      %s77 = sadd.s32 %s76, 1
      %p80 = scmp.eq.s32.totalorder %s42, 1
      %p81 = scmp.ne.s32.totalorder %s76, %s78
      %p82 = scmp.eq.s32.totalorder %s42, 0
      %p83 = por %p81, %p82
      %p84 = scmp.ne.s32.totalorder %s76, %s78
      %p85 = scmp.eq.s32.totalorder %s47, 1
      %p86 = por %p84, %p85
      %p87 = scmp.ne.s32.totalorder %s78, %s79
      %p88 = scmp.eq.s32.totalorder %s47, 0
      %p89 = por %p87, %p88
      %p90 = scmp.ne.s32.totalorder %s78, %s79
      %p91 = scmp.eq.s32.totalorder %s48, 1
      %p92 = por %p90, %p91
      %p94 = scmp.ne.s32.totalorder %s79, %s93
      %p95 = scmp.eq.s32.totalorder %s48, 0
      %p96 = por %p94, %p95
      %s98 = sadd.s32 %s97, 1
      %p101 = scmp.eq.s32.totalorder %s42, 1
      %p102 = scmp.ne.s32.totalorder %s97, %s99
      %p103 = scmp.eq.s32.totalorder %s42, 0
      %p104 = por %p102, %p103
      %p105 = scmp.ne.s32.totalorder %s97, %s99
      %p106 = scmp.eq.s32.totalorder %s47, 1
      %p107 = por %p105, %p106
      %p108 = scmp.ne.s32.totalorder %s99, %s100
      %p109 = scmp.eq.s32.totalorder %s47, 0
      %p110 = por %p108, %p109
      %p111 = scmp.ne.s32.totalorder %s99, %s100
      %p112 = scmp.eq.s32.totalorder %s48, 1
      %p113 = por %p111, %p112
      %p115 = scmp.ne.s32.totalorder %s100, %s114
      %p116 = scmp.eq.s32.totalorder %s48, 0
      %p117 = por %p115, %p116
      %s119 = sadd.s32 %s118, 1
      %p122 = scmp.eq.s32.totalorder %s42, 1
      %p123 = scmp.ne.s32.totalorder %s118, %s120
      %p124 = scmp.eq.s32.totalorder %s42, 0
      %p125 = por %p123, %p124
      %p126 = scmp.ne.s32.totalorder %s118, %s120
      %p127 = scmp.eq.s32.totalorder %s47, 1
      %p128 = por %p126, %p127
      %p129 = scmp.ne.s32.totalorder %s120, %s121
      %p130 = scmp.eq.s32.totalorder %s47, 0
      %p131 = por %p129, %p130
      %p132 = scmp.ne.s32.totalorder %s120, %s121
      %p133 = scmp.eq.s32.totalorder %s48, 1
      %p134 = por %p132, %p133
      %p136 = scmp.ne.s32.totalorder %s121, %s135
      %p137 = scmp.eq.s32.totalorder %s48, 0
      %p138 = por %p136, %p137
      %s140 = sadd.s32 %s139, 1
      %p143 = scmp.eq.s32.totalorder %s42, 1
      %p144 = scmp.ne.s32.totalorder %s139, %s141
      %p145 = scmp.eq.s32.totalorder %s42, 0
      %p146 = por %p144, %p145
      %p147 = scmp.ne.s32.totalorder %s139, %s141
      %p148 = scmp.eq.s32.totalorder %s47, 1
      %p149 = por %p147, %p148
      %p150 = scmp.ne.s32.totalorder %s141, %s142
      %p151 = scmp.eq.s32.totalorder %s47, 0
      %p152 = por %p150, %p151
      %p153 = scmp.ne.s32.totalorder %s141, %s142
      %p154 = scmp.eq.s32.totalorder %s48, 1
      %p155 = por %p153, %p154
      %p157 = scmp.ne.s32.totalorder %s142, %s156
      %p158 = scmp.eq.s32.totalorder %s48, 0
      %p159 = por %p157, %p158
      %s161 = sadd.s32 %s160, 1
      %p164 = scmp.eq.s32.totalorder %s42, 1
      %p165 = scmp.ne.s32.totalorder %s160, %s162
      %p166 = scmp.eq.s32.totalorder %s42, 0
      %p167 = por %p165, %p166
      %p168 = scmp.ne.s32.totalorder %s160, %s162
      %p169 = scmp.eq.s32.totalorder %s47, 1
      %p170 = por %p168, %p169
      %p171 = scmp.ne.s32.totalorder %s162, %s163
      %p172 = scmp.eq.s32.totalorder %s47, 0
      %p173 = por %p171, %p172
      %p174 = scmp.ne.s32.totalorder %s162, %s163
      %p175 = scmp.eq.s32.totalorder %s48, 1
      %p176 = por %p174, %p175
      %p178 = scmp.ne.s32.totalorder %s163, %s177
      %p179 = scmp.eq.s32.totalorder %s48, 0
      %p180 = por %p178, %p179
      %s182 = sadd.s32 %s181, 1
      %p185 = scmp.eq.s32.totalorder %s42, 1
      %p186 = scmp.ne.s32.totalorder %s181, %s183
      %p187 = scmp.eq.s32.totalorder %s42, 0
      %p188 = por %p186, %p187
      %p189 = scmp.ne.s32.totalorder %s181, %s183
      %p190 = scmp.eq.s32.totalorder %s47, 1
      %p191 = por %p189, %p190
      %p192 = scmp.ne.s32.totalorder %s183, %s184
      %p193 = scmp.eq.s32.totalorder %s47, 0
      %p194 = por %p192, %p193
      %p195 = scmp.ne.s32.totalorder %s183, %s184
      %p196 = scmp.eq.s32.totalorder %s48, 1
      %p197 = por %p195, %p196
      %p199 = scmp.ne.s32.totalorder %s184, %s198
      %p200 = scmp.eq.s32.totalorder %s48, 0
      %p201 = por %p199, %p200
      %s203 = sadd.s32 %s202, 1
      %p206 = scmp.eq.s32.totalorder %s42, 1
      %p207 = scmp.ne.s32.totalorder %s202, %s204
      %p208 = scmp.eq.s32.totalorder %s42, 0
      %p209 = por %p207, %p208
      %p210 = scmp.ne.s32.totalorder %s202, %s204
      %p211 = scmp.eq.s32.totalorder %s47, 1
      %p212 = por %p210, %p211
      %p213 = scmp.ne.s32.totalorder %s204, %s205
      %p214 = scmp.eq.s32.totalorder %s47, 0
      %p215 = por %p213, %p214
      %p216 = scmp.ne.s32.totalorder %s204, %s205
      %p217 = scmp.eq.s32.totalorder %s48, 1
      %p218 = por %p216, %p217
      %p220 = scmp.ne.s32.totalorder %s205, %s219
      %p221 = scmp.eq.s32.totalorder %s48, 0
      %p222 = por %p220, %p221
      %s224 = sadd.s32 %s223, 1
      %p227 = scmp.eq.s32.totalorder %s42, 1
      %p228 = scmp.ne.s32.totalorder %s223, %s225
      %p229 = scmp.eq.s32.totalorder %s42, 0
      %p230 = por %p228, %p229
      %p231 = scmp.ne.s32.totalorder %s223, %s225
      %p232 = scmp.eq.s32.totalorder %s47, 1
      %p233 = por %p231, %p232
      %p234 = scmp.ne.s32.totalorder %s225, %s226
      %p235 = scmp.eq.s32.totalorder %s47, 0
      %p236 = por %p234, %p235
      %p237 = scmp.ne.s32.totalorder %s225, %s226
      %p238 = scmp.eq.s32.totalorder %s48, 1
      %p239 = por %p237, %p238
      %p241 = scmp.ne.s32.totalorder %s226, %s240
      %p242 = scmp.eq.s32.totalorder %s48, 0
      %p243 = por %p241, %p242
      %s245 = sadd.s32 %s244, 1
      %p248 = scmp.eq.s32.totalorder %s42, 1
      %p249 = scmp.ne.s32.totalorder %s244, %s246
      %p250 = scmp.eq.s32.totalorder %s42, 0
      %p251 = por %p249, %p250
      %p252 = scmp.ne.s32.totalorder %s244, %s246
      %p253 = scmp.eq.s32.totalorder %s47, 1
      %p254 = por %p252, %p253
      %p255 = scmp.ne.s32.totalorder %s246, %s247
      %p256 = scmp.eq.s32.totalorder %s47, 0
      %p257 = por %p255, %p256
      %p258 = scmp.ne.s32.totalorder %s246, %s247
      %p259 = scmp.eq.s32.totalorder %s48, 1
      %p260 = por %p258, %p259
      %p262 = scmp.ne.s32.totalorder %s247, %s261
      %p263 = scmp.eq.s32.totalorder %s48, 0
      %p264 = por %p262, %p263
      %s266 = sadd.s32 %s265, 1
      %p269 = scmp.eq.s32.totalorder %s42, 1
      %p270 = scmp.ne.s32.totalorder %s265, %s267
      %p271 = scmp.eq.s32.totalorder %s42, 0
      %p272 = por %p270, %p271
      %p273 = scmp.ne.s32.totalorder %s265, %s267
      %p274 = scmp.eq.s32.totalorder %s47, 1
      %p275 = por %p273, %p274
      %p276 = scmp.ne.s32.totalorder %s267, %s268
      %p277 = scmp.eq.s32.totalorder %s47, 0
      %p278 = por %p276, %p277
      %p279 = scmp.ne.s32.totalorder %s267, %s268
      %p280 = scmp.eq.s32.totalorder %s48, 1
      %p281 = por %p279, %p280
      %p283 = scmp.ne.s32.totalorder %s268, %s282
      %p284 = scmp.eq.s32.totalorder %s48, 0
      %p285 = por %p283, %p284
      %s287 = sadd.s32 %s286, 1
      %p290 = scmp.eq.s32.totalorder %s42, 1
      %p291 = scmp.ne.s32.totalorder %s286, %s288
      %p292 = scmp.eq.s32.totalorder %s42, 0
      %p293 = por %p291, %p292
      %p294 = scmp.ne.s32.totalorder %s286, %s288
      %p295 = scmp.eq.s32.totalorder %s47, 1
      %p296 = por %p294, %p295
      %p297 = scmp.ne.s32.totalorder %s288, %s289
      %p298 = scmp.eq.s32.totalorder %s47, 0
      %p299 = por %p297, %p298
      %p300 = scmp.ne.s32.totalorder %s288, %s289
      %p301 = scmp.eq.s32.totalorder %s48, 1
      %p302 = por %p300, %p301
      %p304 = scmp.ne.s32.totalorder %s289, %s303
      %p305 = scmp.eq.s32.totalorder %s48, 0
      %p306 = por %p304, %p305
      %s308 = sadd.s32 %s307, 1
      %p311 = scmp.eq.s32.totalorder %s42, 1
      %p312 = scmp.ne.s32.totalorder %s307, %s309
      %p313 = scmp.eq.s32.totalorder %s42, 0
      %p314 = por %p312, %p313
      %p315 = scmp.ne.s32.totalorder %s307, %s309
      %p316 = scmp.eq.s32.totalorder %s47, 1
      %p317 = por %p315, %p316
      %p318 = scmp.ne.s32.totalorder %s309, %s310
      %p319 = scmp.eq.s32.totalorder %s47, 0
      %p320 = por %p318, %p319
      %p321 = scmp.ne.s32.totalorder %s309, %s310
      %p322 = scmp.eq.s32.totalorder %s48, 1
      %p323 = por %p321, %p322
      %p325 = scmp.ne.s32.totalorder %s310, %s324
      %p326 = scmp.eq.s32.totalorder %s48, 0
      %p327 = por %p325, %p326
      %s329 = sadd.s32 %s328, 1
      %p332 = scmp.eq.s32.totalorder %s42, 1
      %p333 = scmp.ne.s32.totalorder %s328, %s330
      %p334 = scmp.eq.s32.totalorder %s42, 0
      %p335 = por %p333, %p334
      %p336 = scmp.ne.s32.totalorder %s328, %s330
      %p337 = scmp.eq.s32.totalorder %s47, 1
      %p338 = por %p336, %p337
      %p339 = scmp.ne.s32.totalorder %s330, %s331
      %p340 = scmp.eq.s32.totalorder %s47, 0
      %p341 = por %p339, %p340
      %p342 = scmp.ne.s32.totalorder %s330, %s331
      %p343 = scmp.eq.s32.totalorder %s48, 1
      %p344 = por %p342, %p343
      %p346 = scmp.ne.s32.totalorder %s331, %s345
      %p347 = scmp.eq.s32.totalorder %s48, 0
      %p348 = por %p346, %p347
      %s350 = sadd.s32 %s349, 1
      %p353 = scmp.eq.s32.totalorder %s42, 1
      %p354 = scmp.ne.s32.totalorder %s349, %s351
      %p355 = scmp.eq.s32.totalorder %s42, 0
      %p356 = por %p354, %p355
      %p357 = scmp.ne.s32.totalorder %s349, %s351
      %p358 = scmp.eq.s32.totalorder %s47, 1
      %p359 = por %p357, %p358
      %p360 = scmp.ne.s32.totalorder %s351, %s352
      %p361 = scmp.eq.s32.totalorder %s47, 0
      %p362 = por %p360, %p361
      %p363 = scmp.ne.s32.totalorder %s351, %s352
      %p364 = scmp.eq.s32.totalorder %s48, 1
      %p365 = por %p363, %p364
      %p367 = scmp.ne.s32.totalorder %s352, %s366
      %p368 = scmp.eq.s32.totalorder %s48, 0
      %p369 = por %p367, %p368
      %s371 = sadd.s32 %s370, 1
      %p374 = scmp.eq.s32.totalorder %s42, 1
      %p375 = scmp.ne.s32.totalorder %s370, %s372
      %p376 = scmp.eq.s32.totalorder %s42, 0
      %p377 = por %p375, %p376
      %p378 = scmp.ne.s32.totalorder %s370, %s372
      %p379 = scmp.eq.s32.totalorder %s47, 1
      %p380 = por %p378, %p379
      %p381 = scmp.ne.s32.totalorder %s372, %s373
      %p382 = scmp.eq.s32.totalorder %s47, 0
      %p383 = por %p381, %p382
      %p384 = scmp.ne.s32.totalorder %s372, %s373
      %p385 = scmp.eq.s32.totalorder %s48, 1
      %p386 = por %p384, %p385
      %p388 = scmp.ne.s32.totalorder %s373, %s387
      %p389 = scmp.eq.s32.totalorder %s48, 0
      %p390 = por %p388, %p389
      %s392 = sadd.s32 %s391, 1
      %p395 = scmp.eq.s32.totalorder %s42, 1
      %p396 = scmp.ne.s32.totalorder %s391, %s393
      %p397 = scmp.eq.s32.totalorder %s42, 0
      %p398 = por %p396, %p397
      %p399 = scmp.ne.s32.totalorder %s391, %s393
      %p400 = scmp.eq.s32.totalorder %s47, 1
      %p401 = por %p399, %p400
      %p402 = scmp.ne.s32.totalorder %s393, %s394
      %p403 = scmp.eq.s32.totalorder %s47, 0
      %p404 = por %p402, %p403
      %p405 = scmp.ne.s32.totalorder %s393, %s394
      %p406 = scmp.eq.s32.totalorder %s48, 1
      %p407 = por %p405, %p406
      %p409 = scmp.ne.s32.totalorder %s394, %s408
      %p410 = scmp.eq.s32.totalorder %s48, 0
      %p411 = por %p409, %p410
      %s412 = ssub.s32 %s42, %s49
      %p413 = scmp.eq.s32.totalorder %s412, 0
      %s415 = sadd.s32 %s414, 1
      %s416 = scalar_select %p413, %s414, %s415
      %p419 = pneg %p413
      %p420 = scmp.eq.s32.totalorder %s42, 1
      %p421 = por %p419, %p420
      %p422 = scmp.ne.s32.totalorder %s414, %s417
      %p423 = scmp.eq.s32.totalorder %s42, 0
      %p424 = por %p422, %p423
      %p425 = scmp.ne.s32.totalorder %s414, %s417
      %p426 = scmp.eq.s32.totalorder %s47, 1
      %p427 = por %p425, %p426
      %p428 = scmp.ne.s32.totalorder %s417, %s418
      %p429 = scmp.eq.s32.totalorder %s47, 0
      %p430 = por %p428, %p429
      %p431 = scmp.ne.s32.totalorder %s417, %s418
      %p432 = scmp.eq.s32.totalorder %s48, 1
      %p433 = por %p431, %p432
      %p435 = scmp.ne.s32.totalorder %s418, %s434
      %p436 = scmp.eq.s32.totalorder %s48, 0
      %p437 = por %p435, %p436
      %s438 = ssub.s32 %s42, %s49
      %p439 = scmp.eq.s32.totalorder %s438, 0
      %s441 = sadd.s32 %s440, 1
      %s442 = scalar_select %p439, %s440, %s441
      %p445 = pneg %p439
      %p446 = scmp.eq.s32.totalorder %s42, 1
      %p447 = por %p445, %p446
      %p448 = scmp.ne.s32.totalorder %s440, %s443
      %p449 = scmp.eq.s32.totalorder %s42, 0
      %p450 = por %p448, %p449
      %p451 = scmp.ne.s32.totalorder %s440, %s443
      %p452 = scmp.eq.s32.totalorder %s47, 1
      %p453 = por %p451, %p452
      %p454 = scmp.ne.s32.totalorder %s443, %s444
      %p455 = scmp.eq.s32.totalorder %s47, 0
      %p456 = por %p454, %p455
      %p457 = scmp.ne.s32.totalorder %s443, %s444
      %p458 = scmp.eq.s32.totalorder %s48, 1
      %p459 = por %p457, %p458
      %p461 = scmp.ne.s32.totalorder %s444, %s460
      %p462 = scmp.eq.s32.totalorder %s48, 0
      %p463 = por %p461, %p462
      %p464 = scmp.le.s32.totalorder 1, %s42
      %p465 = scmp.lt.s32.totalorder %s42, 3
      %p466 = pnand %p464, %p465
      %p467 = pneg %p466
      // Predicated region
      $region9: #{tpu_custom_call.1} parent=5 // pred_check
        _
      $region10: #{tpu_custom_call.1} parent=5 // pred_check_branch
        %469 = sbr.rel (%p466) target = $region12
      $region11: #{tpu_custom_call.1} parent=5 // pred_region
        %s470 = ssub.s32 %s42, 1
        // Predicated region
        $region13: #{tpu_custom_call.1} parent=11 // pred_check
          %p471 = pneg %p89
        $region14: #{tpu_custom_call.1} parent=11 // pred_check_branch
          %473 = sbr.rel (%p471) target = $region16
        $region15: #{tpu_custom_call.1} parent=11 // pred_region
          %s475 = ssub.s32 2048, 2048
          %476 = vsyncadd [#allocation6], %s475
          %s477 = sshll.u32 [#allocation5], 4
          %s478 = int_to_ptr.vmem [resolvable:$true] %s477
          %483 = dma.hbm_to_vmem [thread:$0]  %s1, 2048, %s478, [#allocation6], 64, 64, 4
        $region16: #{tpu_custom_call.1} parent=11 // pred_fallthru
          _
        // Predicated region
        $region17: #{tpu_custom_call.1} parent=11 // pred_check
          %p484 = pneg %p110
        $region18: #{tpu_custom_call.1} parent=11 // pred_check_branch
          %486 = sbr.rel (%p484) target = $region20
        $region19: #{tpu_custom_call.1} parent=11 // pred_region
          %s488 = ssub.s32 16, 16
          %489 = vsyncadd [#allocation6], %s488
          %s491 = sshll.u32 [#allocation7], 4
          %s492 = int_to_ptr.vmem [resolvable:$true] %s491
          %494 = dma.hbm_to_vmem [thread:$0]  %s2, 16, %s492, [#allocation6]
        $region20: #{tpu_custom_call.1} parent=11 // pred_fallthru
          _
        // Predicated region
        $region21: #{tpu_custom_call.1} parent=11 // pred_check
          %p495 = pneg %p131
        $region22: #{tpu_custom_call.1} parent=11 // pred_check_branch
          %497 = sbr.rel (%p495) target = $region24
        $region23: #{tpu_custom_call.1} parent=11 // pred_region
          %s499 = ssub.s32 1024, 1024
          %500 = vsyncadd [#allocation9], %s499
          %s501 = sshll.u32 [#allocation8], 4
          %s502 = int_to_ptr.vmem [resolvable:$true] %s501
          %507 = dma.hbm_to_vmem [thread:$0]  %s3, 1024, %s502, [#allocation9], 64, 64, 4
        $region24: #{tpu_custom_call.1} parent=11 // pred_fallthru
          _
        // Predicated region
        $region25: #{tpu_custom_call.1} parent=11 // pred_check
          %p508 = pneg %p152
        $region26: #{tpu_custom_call.1} parent=11 // pred_check_branch
          %510 = sbr.rel (%p508) target = $region28
        $region27: #{tpu_custom_call.1} parent=11 // pred_region
          %s512 = ssub.s32 16, 16
          %513 = vsyncadd [#allocation9], %s512
          %s515 = sshll.u32 [#allocation10], 4
          %s516 = int_to_ptr.vmem [resolvable:$true] %s515
          %518 = dma.hbm_to_vmem [thread:$0]  %s4, 16, %s516, [#allocation9]
        $region28: #{tpu_custom_call.1} parent=11 // pred_fallthru
          _
        // Predicated region
        $region29: #{tpu_custom_call.1} parent=11 // pred_check
          %p519 = pneg %p173
        $region30: #{tpu_custom_call.1} parent=11 // pred_check_branch
          %521 = sbr.rel (%p519) target = $region32
        $region31: #{tpu_custom_call.1} parent=11 // pred_region
          %s523 = ssub.s32 1024, 1024
          %524 = vsyncadd [#allocation12], %s523
          %s525 = sshll.u32 [#allocation11], 4
          %s526 = int_to_ptr.vmem [resolvable:$true] %s525
          %531 = dma.hbm_to_vmem [thread:$0]  %s5, 1024, %s526, [#allocation12], 64, 64, 4
        $region32: #{tpu_custom_call.1} parent=11 // pred_fallthru
          _
        // Predicated region
        $region33: #{tpu_custom_call.1} parent=11 // pred_check
          %p532 = pneg %p194
        $region34: #{tpu_custom_call.1} parent=11 // pred_check_branch
          %534 = sbr.rel (%p532) target = $region36
        $region35: #{tpu_custom_call.1} parent=11 // pred_region
          %s536 = ssub.s32 16, 16
          %537 = vsyncadd [#allocation12], %s536
          %s539 = sshll.u32 [#allocation13], 4
          %s540 = int_to_ptr.vmem [resolvable:$true] %s539
          %542 = dma.hbm_to_vmem [thread:$0]  %s6, 16, %s540, [#allocation12]
        $region36: #{tpu_custom_call.1} parent=11 // pred_fallthru
          _
        // Predicated region
        $region37: #{tpu_custom_call.1} parent=11 // pred_check
          %p543 = pneg %p215
        $region38: #{tpu_custom_call.1} parent=11 // pred_check_branch
          %545 = sbr.rel (%p543) target = $region40
        $region39: #{tpu_custom_call.1} parent=11 // pred_region
          %s547 = ssub.s32 1024, 1024
          %548 = vsyncadd [#allocation15], %s547
          %s549 = sshll.u32 [#allocation14], 4
          %s550 = int_to_ptr.vmem [resolvable:$true] %s549
          %555 = dma.hbm_to_vmem [thread:$0]  %s7, 1024, %s550, [#allocation15], 64, 64, 4
        $region40: #{tpu_custom_call.1} parent=11 // pred_fallthru
          _
        // Predicated region
        $region41: #{tpu_custom_call.1} parent=11 // pred_check
          %p556 = pneg %p236
        $region42: #{tpu_custom_call.1} parent=11 // pred_check_branch
          %558 = sbr.rel (%p556) target = $region44
        $region43: #{tpu_custom_call.1} parent=11 // pred_region
          %s560 = ssub.s32 16, 16
          %561 = vsyncadd [#allocation15], %s560
          %s563 = sshll.u32 [#allocation16], 4
          %s564 = int_to_ptr.vmem [resolvable:$true] %s563
          %566 = dma.hbm_to_vmem [thread:$0]  %s8, 16, %s564, [#allocation15]
        $region44: #{tpu_custom_call.1} parent=11 // pred_fallthru
          _
        // Predicated region
        $region45: #{tpu_custom_call.1} parent=11 // pred_check
          %p567 = pneg %p257
        $region46: #{tpu_custom_call.1} parent=11 // pred_check_branch
          %569 = sbr.rel (%p567) target = $region48
        $region47: #{tpu_custom_call.1} parent=11 // pred_region
          %s571 = ssub.s32 1024, 1024
          %572 = vsyncadd [#allocation18], %s571
          %s573 = sshll.u32 [#allocation17], 4
          %s574 = int_to_ptr.vmem [resolvable:$true] %s573
          %579 = dma.hbm_to_vmem [thread:$0]  %s9, 1024, %s574, [#allocation18], 64, 64, 4
        $region48: #{tpu_custom_call.1} parent=11 // pred_fallthru
          _
        // Predicated region
        $region49: #{tpu_custom_call.1} parent=11 // pred_check
          %p580 = pneg %p278
        $region50: #{tpu_custom_call.1} parent=11 // pred_check_branch
          %582 = sbr.rel (%p580) target = $region52
        $region51: #{tpu_custom_call.1} parent=11 // pred_region
          %s584 = ssub.s32 16, 16
          %585 = vsyncadd [#allocation18], %s584
          %s587 = sshll.u32 [#allocation19], 4
          %s588 = int_to_ptr.vmem [resolvable:$true] %s587
          %590 = dma.hbm_to_vmem [thread:$0]  %s10, 16, %s588, [#allocation18]
        $region52: #{tpu_custom_call.1} parent=11 // pred_fallthru
          _
        // Predicated region
        $region53: #{tpu_custom_call.1} parent=11 // pred_check
          %p591 = pneg %p299
        $region54: #{tpu_custom_call.1} parent=11 // pred_check_branch
          %593 = sbr.rel (%p591) target = $region56
        $region55: #{tpu_custom_call.1} parent=11 // pred_region
          %s595 = ssub.s32 1024, 1024
          %596 = vsyncadd [#allocation21], %s595
          %s597 = sshll.u32 [#allocation20], 4
          %s598 = int_to_ptr.vmem [resolvable:$true] %s597
          %603 = dma.hbm_to_vmem [thread:$0]  %s11, 1024, %s598, [#allocation21], 64, 64, 4
        $region56: #{tpu_custom_call.1} parent=11 // pred_fallthru
          _
        // Predicated region
        $region57: #{tpu_custom_call.1} parent=11 // pred_check
          %p604 = pneg %p320
        $region58: #{tpu_custom_call.1} parent=11 // pred_check_branch
          %606 = sbr.rel (%p604) target = $region60
        $region59: #{tpu_custom_call.1} parent=11 // pred_region
          %s608 = ssub.s32 16, 16
          %609 = vsyncadd [#allocation21], %s608
          %s611 = sshll.u32 [#allocation22], 4
          %s612 = int_to_ptr.vmem [resolvable:$true] %s611
          %614 = dma.hbm_to_vmem [thread:$0]  %s12, 16, %s612, [#allocation21]
        $region60: #{tpu_custom_call.1} parent=11 // pred_fallthru
          _
        // Predicated region
        $region61: #{tpu_custom_call.1} parent=11 // pred_check
          %p615 = pneg %p341
        $region62: #{tpu_custom_call.1} parent=11 // pred_check_branch
          %617 = sbr.rel (%p615) target = $region64
        $region63: #{tpu_custom_call.1} parent=11 // pred_region
          %s619 = ssub.s32 1024, 1024
          %620 = vsyncadd [#allocation24], %s619
          %s621 = sshll.u32 [#allocation23], 4
          %s622 = int_to_ptr.vmem [resolvable:$true] %s621
          %627 = dma.hbm_to_vmem [thread:$0]  %s13, 1024, %s622, [#allocation24], 64, 64, 4
        $region64: #{tpu_custom_call.1} parent=11 // pred_fallthru
          _
        // Predicated region
        $region65: #{tpu_custom_call.1} parent=11 // pred_check
          %p628 = pneg %p362
        $region66: #{tpu_custom_call.1} parent=11 // pred_check_branch
          %630 = sbr.rel (%p628) target = $region68
        $region67: #{tpu_custom_call.1} parent=11 // pred_region
          %s632 = ssub.s32 16, 16
          %633 = vsyncadd [#allocation24], %s632
          %s635 = sshll.u32 [#allocation25], 4
          %s636 = int_to_ptr.vmem [resolvable:$true] %s635
          %638 = dma.hbm_to_vmem [thread:$0]  %s14, 16, %s636, [#allocation24]
        $region68: #{tpu_custom_call.1} parent=11 // pred_fallthru
          _
        // Predicated region
        $region69: #{tpu_custom_call.1} parent=11 // pred_check
          %p639 = pneg %p383
        $region70: #{tpu_custom_call.1} parent=11 // pred_check_branch
          %641 = sbr.rel (%p639) target = $region72
        $region71: #{tpu_custom_call.1} parent=11 // pred_region
          %s643 = ssub.s32 2048, 2048
          %644 = vsyncadd [#allocation27], %s643
          %s645 = sshll.u32 [#allocation26], 4
          %s646 = int_to_ptr.vmem [resolvable:$true] %s645
          %651 = dma.hbm_to_vmem [thread:$0]  %s15, 2048, %s646, [#allocation27], 128, 128, 8
        $region72: #{tpu_custom_call.1} parent=11 // pred_fallthru
          _
        // Predicated region
        $region73: #{tpu_custom_call.1} parent=11 // pred_check
          %p652 = pneg %p404
        $region74: #{tpu_custom_call.1} parent=11 // pred_check_branch
          %654 = sbr.rel (%p652) target = $region76
        $region75: #{tpu_custom_call.1} parent=11 // pred_region
          %s656 = ssub.s32 32, 32
          %657 = vsyncadd [#allocation27], %s656
          %s659 = sshll.u32 [#allocation28], 4
          %s660 = int_to_ptr.vmem [resolvable:$true] %s659
          %662 = dma.hbm_to_vmem [thread:$0]  %s16, 32, %s660, [#allocation27]
        $region76: #{tpu_custom_call.1} parent=11 // pred_fallthru
          _
      $region12: #{tpu_custom_call.1} parent=5 // pred_fallthru
        _
      %p663 = scmp.lt.s32.totalorder %s42, 2
      // Predicated region
      $region77: #{tpu_custom_call.1} parent=5 // pred_check
        %p664 = pneg %p663
      $region78: #{tpu_custom_call.1} parent=5 // pred_check_branch
        %666 = sbr.rel (%p664) target = $region80
      $region79: #{tpu_custom_call.1} parent=5 // pred_region
        // Predicated region
        $region81: #{tpu_custom_call.1} parent=79 // pred_check
          %p667 = pneg %p62
        $region82: #{tpu_custom_call.1} parent=79 // pred_check_branch
          %669 = sbr.rel (%p667) target = $region84
        $region83: #{tpu_custom_call.1} parent=79 // pred_region
          %s670 = sand.u32 %s52, 1
          %s671 = scalar_lea.sflag [#allocation3], %s670
          %s672 = sand.u32 %s52, 1
          %s673 = smul.addr %s672, 256
          %s674 = scalar_lea.vmem [#allocation2], %s673
          %s675 = smul.u32 32, %s42
          %s677 = ssub.s32 4096, 4096
          %678 = vsyncadd %s671, %s677
          %s679 = smul.addr %s675, 2
          %s680 = smul.addr %s679, 64
          %s681 = scalar_lea.hbm %s0, %s680
          %s682 = sshll.u32 %s674, 4
          %s683 = int_to_ptr.vmem [resolvable:$true] %s682
          %688 = dma.hbm_to_vmem [thread:$0]  %s681, 4096, %s683, %s671, 128, 128, 8
        $region84: #{tpu_custom_call.1} parent=79 // pred_fallthru
          _
      $region80: #{tpu_custom_call.1} parent=5 // pred_fallthru
        _
      %p689 = scmp.le.s32.totalorder 1, %s42
      %p690 = scmp.lt.s32.totalorder %s42, 3
      %p691 = pnand %p689, %p690
      %p692 = pneg %p691
      // Predicated region
      $region85: #{tpu_custom_call.1} parent=5 // pred_check
        _
      $region86: #{tpu_custom_call.1} parent=5 // pred_check_branch
        %694 = sbr.rel (%p691) target = $region88
      $region87: #{tpu_custom_call.1} parent=5 // pred_region
        %s695 = ssub.s32 %s42, 1
        %s696 = sand.u32 %s55, 1
        %s697 = scalar_lea.sflag [#allocation3], %s696
        %s698 = sand.u32 %s55, 1
        %s699 = smul.addr %s698, 256
        %s700 = scalar_lea.vmem [#allocation2], %s699
        // Predicated region
        $region89: #{tpu_custom_call.1} parent=87 // pred_check
          %p701 = pneg %p68
        $region90: #{tpu_custom_call.1} parent=87 // pred_check_branch
          %703 = sbr.rel (%p701) target = $region92
        $region91: #{tpu_custom_call.1} parent=87 // pred_region
          %704 = dma.done %s697, 4096
        $region92: #{tpu_custom_call.1} parent=87 // pred_fallthru
          _
        // Predicated region
        $region93: #{tpu_custom_call.1} parent=87 // pred_check
          %p705 = pneg %p89
        $region94: #{tpu_custom_call.1} parent=87 // pred_check_branch
          %707 = sbr.rel (%p705) target = $region96
        $region95: #{tpu_custom_call.1} parent=87 // pred_region
          %708 = dma.done [#allocation6], 2048
        $region96: #{tpu_custom_call.1} parent=87 // pred_fallthru
          _
        // Predicated region
        $region97: #{tpu_custom_call.1} parent=87 // pred_check
          %p709 = pneg %p110
        $region98: #{tpu_custom_call.1} parent=87 // pred_check_branch
          %711 = sbr.rel (%p709) target = $region100
        $region99: #{tpu_custom_call.1} parent=87 // pred_region
          %712 = dma.done [#allocation6], 16
        $region100: #{tpu_custom_call.1} parent=87 // pred_fallthru
          _
        // Predicated region
        $region101: #{tpu_custom_call.1} parent=87 // pred_check
          %p713 = pneg %p131
        $region102: #{tpu_custom_call.1} parent=87 // pred_check_branch
          %715 = sbr.rel (%p713) target = $region104
        $region103: #{tpu_custom_call.1} parent=87 // pred_region
          %716 = dma.done [#allocation9], 1024
        $region104: #{tpu_custom_call.1} parent=87 // pred_fallthru
          _
        // Predicated region
        $region105: #{tpu_custom_call.1} parent=87 // pred_check
          %p717 = pneg %p152
        $region106: #{tpu_custom_call.1} parent=87 // pred_check_branch
          %719 = sbr.rel (%p717) target = $region108
        $region107: #{tpu_custom_call.1} parent=87 // pred_region
          %720 = dma.done [#allocation9], 16
        $region108: #{tpu_custom_call.1} parent=87 // pred_fallthru
          _
        // Predicated region
        $region109: #{tpu_custom_call.1} parent=87 // pred_check
          %p721 = pneg %p173
        $region110: #{tpu_custom_call.1} parent=87 // pred_check_branch
          %723 = sbr.rel (%p721) target = $region112
        $region111: #{tpu_custom_call.1} parent=87 // pred_region
          %724 = dma.done [#allocation12], 1024
        $region112: #{tpu_custom_call.1} parent=87 // pred_fallthru
          _
        // Predicated region
        $region113: #{tpu_custom_call.1} parent=87 // pred_check
          %p725 = pneg %p194
        $region114: #{tpu_custom_call.1} parent=87 // pred_check_branch
          %727 = sbr.rel (%p725) target = $region116
        $region115: #{tpu_custom_call.1} parent=87 // pred_region
          %728 = dma.done [#allocation12], 16
        $region116: #{tpu_custom_call.1} parent=87 // pred_fallthru
          _
        // Predicated region
        $region117: #{tpu_custom_call.1} parent=87 // pred_check
          %p729 = pneg %p215
        $region118: #{tpu_custom_call.1} parent=87 // pred_check_branch
          %731 = sbr.rel (%p729) target = $region120
        $region119: #{tpu_custom_call.1} parent=87 // pred_region
          %732 = dma.done [#allocation15], 1024
        $region120: #{tpu_custom_call.1} parent=87 // pred_fallthru
          _
        // Predicated region
        $region121: #{tpu_custom_call.1} parent=87 // pred_check
          %p733 = pneg %p236
        $region122: #{tpu_custom_call.1} parent=87 // pred_check_branch
          %735 = sbr.rel (%p733) target = $region124
        $region123: #{tpu_custom_call.1} parent=87 // pred_region
          %736 = dma.done [#allocation15], 16
        $region124: #{tpu_custom_call.1} parent=87 // pred_fallthru
          _
        // Predicated region
        $region125: #{tpu_custom_call.1} parent=87 // pred_check
          %p737 = pneg %p257
        $region126: #{tpu_custom_call.1} parent=87 // pred_check_branch
          %739 = sbr.rel (%p737) target = $region128
        $region127: #{tpu_custom_call.1} parent=87 // pred_region
          %740 = dma.done [#allocation18], 1024
        $region128: #{tpu_custom_call.1} parent=87 // pred_fallthru
          _
        // Predicated region
        $region129: #{tpu_custom_call.1} parent=87 // pred_check
          %p741 = pneg %p278
        $region130: #{tpu_custom_call.1} parent=87 // pred_check_branch
          %743 = sbr.rel (%p741) target = $region132
        $region131: #{tpu_custom_call.1} parent=87 // pred_region
          %744 = dma.done [#allocation18], 16
        $region132: #{tpu_custom_call.1} parent=87 // pred_fallthru
          _
        // Predicated region
        $region133: #{tpu_custom_call.1} parent=87 // pred_check
          %p745 = pneg %p299
        $region134: #{tpu_custom_call.1} parent=87 // pred_check_branch
          %747 = sbr.rel (%p745) target = $region136
        $region135: #{tpu_custom_call.1} parent=87 // pred_region
          %748 = dma.done [#allocation21], 1024
        $region136: #{tpu_custom_call.1} parent=87 // pred_fallthru
          _
        // Predicated region
        $region137: #{tpu_custom_call.1} parent=87 // pred_check
          %p749 = pneg %p320
        $region138: #{tpu_custom_call.1} parent=87 // pred_check_branch
          %751 = sbr.rel (%p749) target = $region140
        $region139: #{tpu_custom_call.1} parent=87 // pred_region
          %752 = dma.done [#allocation21], 16
        $region140: #{tpu_custom_call.1} parent=87 // pred_fallthru
          _
        // Predicated region
        $region141: #{tpu_custom_call.1} parent=87 // pred_check
          %p753 = pneg %p341
        $region142: #{tpu_custom_call.1} parent=87 // pred_check_branch
          %755 = sbr.rel (%p753) target = $region144
        $region143: #{tpu_custom_call.1} parent=87 // pred_region
          %756 = dma.done [#allocation24], 1024
        $region144: #{tpu_custom_call.1} parent=87 // pred_fallthru
          _
        // Predicated region
        $region145: #{tpu_custom_call.1} parent=87 // pred_check
          %p757 = pneg %p362
        $region146: #{tpu_custom_call.1} parent=87 // pred_check_branch
          %759 = sbr.rel (%p757) target = $region148
        $region147: #{tpu_custom_call.1} parent=87 // pred_region
          %760 = dma.done [#allocation24], 16
        $region148: #{tpu_custom_call.1} parent=87 // pred_fallthru
          _
        // Predicated region
        $region149: #{tpu_custom_call.1} parent=87 // pred_check
          %p761 = pneg %p383
        $region150: #{tpu_custom_call.1} parent=87 // pred_check_branch
          %763 = sbr.rel (%p761) target = $region152
        $region151: #{tpu_custom_call.1} parent=87 // pred_region
          %764 = dma.done [#allocation27], 2048
        $region152: #{tpu_custom_call.1} parent=87 // pred_fallthru
          _
        // Predicated region
        $region153: #{tpu_custom_call.1} parent=87 // pred_check
          %p765 = pneg %p404
        $region154: #{tpu_custom_call.1} parent=87 // pred_check_branch
          %767 = sbr.rel (%p765) target = $region156
        $region155: #{tpu_custom_call.1} parent=87 // pred_region
          %768 = dma.done [#allocation27], 32
        $region156: #{tpu_custom_call.1} parent=87 // pred_fallthru
          _
        %s769 = sand.u32 %s55, 1
        %s770 = scalar_lea.sflag [#allocation3], %s769
        %s771 = sand.u32 %s55, 1
        %s772 = smul.addr %s771, 256
        %s773 = scalar_lea.vmem [#allocation2], %s772
        %p774 = pneg %p68
        %p775 = pneg %p65
        %p776 = pneg %p89
        %p777 = pneg %p86
        %p778 = pneg %p110
        %p779 = pneg %p107
        %p780 = pneg %p131
        %p781 = pneg %p128
        %p782 = pneg %p152
        %p783 = pneg %p149
        %p784 = pneg %p173
        %p785 = pneg %p170
        %p786 = pneg %p194
        %p787 = pneg %p191
        %p788 = pneg %p215
        %p789 = pneg %p212
        %p790 = pneg %p236
        %p791 = pneg %p233
        %p792 = pneg %p257
        %p793 = pneg %p254
        %p794 = pneg %p278
        %p795 = pneg %p275
        %p796 = pneg %p299
        %p797 = pneg %p296
        %p798 = pneg %p320
        %p799 = pneg %p317
        %p800 = pneg %p341
        %p801 = pneg %p338
        %p802 = pneg %p362
        %p803 = pneg %p359
        %p804 = pneg %p383
        %p805 = pneg %p380
        %p806 = pneg %p404
        %p807 = pneg %p401
        %p808 = pneg %p430
        %p809 = pneg %p427
        %s810 = sand.u32 %s417, 1
        %s811 = scalar_lea.sflag [#allocation4], %s810
        %s812 = sand.u32 %s417, 1
        %s813 = smul.addr %s812, 256
        %s814 = scalar_lea.vmem [#allocation29], %s813
        %p815 = pneg %p456
        %p816 = pneg %p453
        %s817 = sand.u32 %s443, 1
        %s818 = scalar_lea.sflag [#allocation31], %s817
        %s819 = sand.u32 %s443, 1
        %s820 = smul.addr %s819, 512
        %s821 = scalar_lea.vmem [#allocation30], %s820
        %s822 = smul.u32 32, %s47
        %s823 = smul.u32 32, %s47
        %s824 = smul.u32 32, %s47
        %v826 = vld [vmem:[%s700] sm:$0xff]
        %v827 = vld [vmem:[%s700 + $0x8] sm:$0xff]
        %v828 = vld [vmem:[%s700 + $0x10] sm:$0xff]
        %v829 = vld [vmem:[%s700 + $0x18] sm:$0xff]
        %v830 = vld [vmem:[%s700 + $0x20] sm:$0xff]
        %v831 = vld [vmem:[%s700 + $0x28] sm:$0xff]
        %v832 = vld [vmem:[%s700 + $0x30] sm:$0xff]
        %v833 = vld [vmem:[%s700 + $0x38] sm:$0xff]
        %v834 = vld [vmem:[%s700 + $0x40] sm:$0xff]
        %v835 = vld [vmem:[%s700 + $0x48] sm:$0xff]
        %v836 = vld [vmem:[%s700 + $0x50] sm:$0xff]
        %v837 = vld [vmem:[%s700 + $0x58] sm:$0xff]
        %v838 = vld [vmem:[%s700 + $0x60] sm:$0xff]
        %v839 = vld [vmem:[%s700 + $0x68] sm:$0xff]
        %v840 = vld [vmem:[%s700 + $0x70] sm:$0xff]
        %v841 = vld [vmem:[%s700 + $0x78] sm:$0xff]
        %v842 = vld [vmem:[%s700 + $0x80] sm:$0xff]
        %v843 = vld [vmem:[%s700 + $0x88] sm:$0xff]
        %v844 = vld [vmem:[%s700 + $0x90] sm:$0xff]
        %v845 = vld [vmem:[%s700 + $0x98] sm:$0xff]
        %v846 = vld [vmem:[%s700 + $0xa0] sm:$0xff]
        %v847 = vld [vmem:[%s700 + $0xa8] sm:$0xff]
        %v848 = vld [vmem:[%s700 + $0xb0] sm:$0xff]
        %v849 = vld [vmem:[%s700 + $0xb8] sm:$0xff]
        %v850 = vld [vmem:[%s700 + $0xc0] sm:$0xff]
        %v851 = vld [vmem:[%s700 + $0xc8] sm:$0xff]
        %v852 = vld [vmem:[%s700 + $0xd0] sm:$0xff]
        %v853 = vld [vmem:[%s700 + $0xd8] sm:$0xff]
        %v854 = vld [vmem:[%s700 + $0xe0] sm:$0xff]
        %v855 = vld [vmem:[%s700 + $0xe8] sm:$0xff]
        %v856 = vld [vmem:[%s700 + $0xf0] sm:$0xff]
        %v857 = vld [vmem:[%s700 + $0xf8] sm:$0xff]
        %v858 = vld [vmem:[#allocation5] sm:$0xf]
        %v859 = vld [vmem:[#allocation5 + $0x4] sm:$0xf]
        %v860 = vld [vmem:[#allocation5 + $0x8] sm:$0xf]
        %v861 = vld [vmem:[#allocation5 + $0xc] sm:$0xf]
        %v862 = vld [vmem:[#allocation5 + $0x10] sm:$0xf]
        %v863 = vld [vmem:[#allocation5 + $0x14] sm:$0xf]
        %v864 = vld [vmem:[#allocation5 + $0x18] sm:$0xf]
        %v865 = vld [vmem:[#allocation5 + $0x1c] sm:$0xf]
        %v866 = vld [vmem:[#allocation5 + $0x20] sm:$0xf]
        %v867 = vld [vmem:[#allocation5 + $0x24] sm:$0xf]
        %v868 = vld [vmem:[#allocation5 + $0x28] sm:$0xf]
        %v869 = vld [vmem:[#allocation5 + $0x2c] sm:$0xf]
        %v870 = vld [vmem:[#allocation5 + $0x30] sm:$0xf]
        %v871 = vld [vmem:[#allocation5 + $0x34] sm:$0xf]
        %v872 = vld [vmem:[#allocation5 + $0x38] sm:$0xf]
        %v873 = vld [vmem:[#allocation5 + $0x3c] sm:$0xf]
        %v874 = vld [vmem:[#allocation5 + $0x40] sm:$0xf]
        %v875 = vld [vmem:[#allocation5 + $0x44] sm:$0xf]
        %v876 = vld [vmem:[#allocation5 + $0x48] sm:$0xf]
        %v877 = vld [vmem:[#allocation5 + $0x4c] sm:$0xf]
        %v878 = vld [vmem:[#allocation5 + $0x50] sm:$0xf]
        %v879 = vld [vmem:[#allocation5 + $0x54] sm:$0xf]
        %v880 = vld [vmem:[#allocation5 + $0x58] sm:$0xf]
        %v881 = vld [vmem:[#allocation5 + $0x5c] sm:$0xf]
        %v882 = vld [vmem:[#allocation5 + $0x60] sm:$0xf]
        %v883 = vld [vmem:[#allocation5 + $0x64] sm:$0xf]
        %v884 = vld [vmem:[#allocation5 + $0x68] sm:$0xf]
        %v885 = vld [vmem:[#allocation5 + $0x6c] sm:$0xf]
        %v886 = vld [vmem:[#allocation5 + $0x70] sm:$0xf]
        %v887 = vld [vmem:[#allocation5 + $0x74] sm:$0xf]
        %v888 = vld [vmem:[#allocation5 + $0x78] sm:$0xf]
        %v889 = vld [vmem:[#allocation5 + $0x7c] sm:$0xf]
        %v890 = vld [vmem:[#allocation7] sm:$0x1]
        %v892 = vlaneseq
        %v893 = vshrl.u32 %v892, 7
        %v894 = vsub.s32 0, %v893
        %v895 = vrot.slane %v890, %v894
        %v929 = vunpack.c.l.b16 %v826
        %v930 = vunpack.c.h.b16 %v826
        %v931 = vunpack.c.l.b16 %v827
        %v932 = vunpack.c.h.b16 %v827
        %v933 = vunpack.c.l.b16 %v828
        %v934 = vunpack.c.h.b16 %v828
        %v935 = vunpack.c.l.b16 %v829
        %v936 = vunpack.c.h.b16 %v829
        %v937 = vunpack.c.l.b16 %v830
        %v938 = vunpack.c.h.b16 %v830
        %v939 = vunpack.c.l.b16 %v831
        %v940 = vunpack.c.h.b16 %v831
        %v941 = vunpack.c.l.b16 %v832
        %v942 = vunpack.c.h.b16 %v832
        %v943 = vunpack.c.l.b16 %v833
        %v944 = vunpack.c.h.b16 %v833
        %v945 = vunpack.c.l.b16 %v834
        %v946 = vunpack.c.h.b16 %v834
        %v947 = vunpack.c.l.b16 %v835
        %v948 = vunpack.c.h.b16 %v835
        %v949 = vunpack.c.l.b16 %v836
        %v950 = vunpack.c.h.b16 %v836
        %v951 = vunpack.c.l.b16 %v837
        %v952 = vunpack.c.h.b16 %v837
        %v953 = vunpack.c.l.b16 %v838
        %v954 = vunpack.c.h.b16 %v838
        %v955 = vunpack.c.l.b16 %v839
        %v956 = vunpack.c.h.b16 %v839
        %v957 = vunpack.c.l.b16 %v840
        %v958 = vunpack.c.h.b16 %v840
        %v959 = vunpack.c.l.b16 %v841
        %v960 = vunpack.c.h.b16 %v841
        %v961 = vunpack.c.l.b16 %v842
        %v962 = vunpack.c.h.b16 %v842
        %v963 = vunpack.c.l.b16 %v843
        %v964 = vunpack.c.h.b16 %v843
        %v965 = vunpack.c.l.b16 %v844
        %v966 = vunpack.c.h.b16 %v844
        %v967 = vunpack.c.l.b16 %v845
        %v968 = vunpack.c.h.b16 %v845
        %v969 = vunpack.c.l.b16 %v846
        %v970 = vunpack.c.h.b16 %v846
        %v971 = vunpack.c.l.b16 %v847
        %v972 = vunpack.c.h.b16 %v847
        %v973 = vunpack.c.l.b16 %v848
        %v974 = vunpack.c.h.b16 %v848
        %v975 = vunpack.c.l.b16 %v849
        %v976 = vunpack.c.h.b16 %v849
        %v977 = vunpack.c.l.b16 %v850
        %v978 = vunpack.c.h.b16 %v850
        %v979 = vunpack.c.l.b16 %v851
        %v980 = vunpack.c.h.b16 %v851
        %v981 = vunpack.c.l.b16 %v852
        %v982 = vunpack.c.h.b16 %v852
        %v983 = vunpack.c.l.b16 %v853
        %v984 = vunpack.c.h.b16 %v853
        %v985 = vunpack.c.l.b16 %v854
        %v986 = vunpack.c.h.b16 %v854
        %v987 = vunpack.c.l.b16 %v855
        %v988 = vunpack.c.h.b16 %v855
        %v989 = vunpack.c.l.b16 %v856
        %v990 = vunpack.c.h.b16 %v856
        %v991 = vunpack.c.l.b16 %v857
        %v992 = vunpack.c.h.b16 %v857
        %v993 = vpack.c.b16 %v931, %v929
        %v994 = vpack.c.b16 %v932, %v930
        %v995 = vpack.c.b16 %v935, %v933
        %v996 = vpack.c.b16 %v936, %v934
        %v997 = vpack.c.b16 %v939, %v937
        %v998 = vpack.c.b16 %v940, %v938
        %v999 = vpack.c.b16 %v943, %v941
        %v1000 = vpack.c.b16 %v944, %v942
        %v1001 = vpack.c.b16 %v947, %v945
        %v1002 = vpack.c.b16 %v948, %v946
        %v1003 = vpack.c.b16 %v951, %v949
        %v1004 = vpack.c.b16 %v952, %v950
        %v1005 = vpack.c.b16 %v955, %v953
        %v1006 = vpack.c.b16 %v956, %v954
        %v1007 = vpack.c.b16 %v959, %v957
        %v1008 = vpack.c.b16 %v960, %v958
        %v1009 = vpack.c.b16 %v963, %v961
        %v1010 = vpack.c.b16 %v964, %v962
        %v1011 = vpack.c.b16 %v967, %v965
        %v1012 = vpack.c.b16 %v968, %v966
        %v1013 = vpack.c.b16 %v971, %v969
        %v1014 = vpack.c.b16 %v972, %v970
        %v1015 = vpack.c.b16 %v975, %v973
        %v1016 = vpack.c.b16 %v976, %v974
        %v1017 = vpack.c.b16 %v979, %v977
        %v1018 = vpack.c.b16 %v980, %v978
        %v1019 = vpack.c.b16 %v983, %v981
        %v1020 = vpack.c.b16 %v984, %v982
        %v1021 = vpack.c.b16 %v987, %v985
        %v1022 = vpack.c.b16 %v988, %v986
        %v1023 = vpack.c.b16 %v991, %v989
        %v1024 = vpack.c.b16 %v992, %v990
        %v1089 = vunpack.c.l.b16 %v858
        %v1090 = vunpack.c.l.b16 %v859
        %v1091 = vunpack.c.l.b16 %v860
        %v1092 = vunpack.c.l.b16 %v861
        %v1093 = vunpack.c.l.b16 %v862
        %v1094 = vunpack.c.l.b16 %v863
        %v1095 = vunpack.c.l.b16 %v864
        %v1096 = vunpack.c.l.b16 %v865
        %v1097 = vunpack.c.l.b16 %v866
        %v1098 = vunpack.c.l.b16 %v867
        %v1099 = vunpack.c.l.b16 %v868
        %v1100 = vunpack.c.l.b16 %v869
        %v1101 = vunpack.c.l.b16 %v870
        %v1102 = vunpack.c.l.b16 %v871
        %v1103 = vunpack.c.l.b16 %v872
        %v1104 = vunpack.c.l.b16 %v873
        %v1105 = vunpack.c.l.b16 %v874
        %v1106 = vunpack.c.l.b16 %v875
        %v1107 = vunpack.c.l.b16 %v876
        %v1108 = vunpack.c.l.b16 %v877
        %v1109 = vunpack.c.l.b16 %v878
        %v1110 = vunpack.c.l.b16 %v879
        %v1111 = vunpack.c.l.b16 %v880
        %v1112 = vunpack.c.l.b16 %v881
        %v1113 = vunpack.c.l.b16 %v882
        %v1114 = vunpack.c.l.b16 %v883
        %v1115 = vunpack.c.l.b16 %v884
        %v1116 = vunpack.c.l.b16 %v885
        %v1117 = vunpack.c.l.b16 %v886
        %v1118 = vunpack.c.l.b16 %v887
        %v1119 = vunpack.c.l.b16 %v888
        %v1120 = vunpack.c.l.b16 %v889
        %v1121 = vpack.c.b16 %v1090, %v1089
        %v1122 = vpack.c.b16 %v1092, %v1091
        %v1123 = vpack.c.b16 %v1094, %v1093
        %v1124 = vpack.c.b16 %v1096, %v1095
        %v1125 = vpack.c.b16 %v1098, %v1097
        %v1126 = vpack.c.b16 %v1100, %v1099
        %v1127 = vpack.c.b16 %v1102, %v1101
        %v1128 = vpack.c.b16 %v1104, %v1103
        %v1129 = vpack.c.b16 %v1106, %v1105
        %v1130 = vpack.c.b16 %v1108, %v1107
        %v1131 = vpack.c.b16 %v1110, %v1109
        %v1132 = vpack.c.b16 %v1112, %v1111
        %v1133 = vpack.c.b16 %v1114, %v1113
        %v1134 = vpack.c.b16 %v1116, %v1115
        %v1135 = vpack.c.b16 %v1118, %v1117
        %v1136 = vpack.c.b16 %v1120, %v1119
        %1153 = vmatprep.subr.bf16.mxu0 0
        %1154 = vmatpush1.bf16.msra.mxu0 %v1121
        %1155 = vmatprep.subr.bf16.mxu0 0
        %1156 = vmatpush1.bf16.msra.mxu0 %v1122
        %1157 = vmatprep.subr.bf16.mxu0 0
        %1158 = vmatpush1.bf16.msra.mxu0 %v1123
        %1159 = vmatprep.subr.bf16.mxu0 0
        %1160 = vmatpush1.bf16.msra.mxu0 %v1124
        %1161 = vmatprep.subr.bf16.mxu0 0
        %1162 = vmatpush1.bf16.msra.mxu0 %v1125
        %1163 = vmatprep.subr.bf16.mxu0 0
        %1164 = vmatpush1.bf16.msra.mxu0 %v1126
        %1165 = vmatprep.subr.bf16.mxu0 0
        %1166 = vmatpush1.bf16.msra.mxu0 %v1127
        %1167 = vmatprep.subr.bf16.mxu0 0
        %1168 = vmatpush1.bf16.msra.mxu0 %v1128
        %1169 = vmatprep.subr.bf16.mxu0 0
        %1170 = vmatpush1.bf16.msra.mxu0 %v1129
        %1171 = vmatprep.subr.bf16.mxu0 0
        %1172 = vmatpush1.bf16.msra.mxu0 %v1130
        %1173 = vmatprep.subr.bf16.mxu0 0
        %1174 = vmatpush1.bf16.msra.mxu0 %v1131
        %1175 = vmatprep.subr.bf16.mxu0 0
        %1176 = vmatpush1.bf16.msra.mxu0 %v1132
        %1177 = vmatprep.subr.bf16.mxu0 0
        %1178 = vmatpush1.bf16.msra.mxu0 %v1133
        %1179 = vmatprep.subr.bf16.mxu0 0
        %1180 = vmatpush1.bf16.msra.mxu0 %v1134
        %1181 = vmatprep.subr.bf16.mxu0 0
        %1182 = vmatpush1.bf16.msra.mxu0 %v1135
        %1183 = vmatprep.subr.bf16.mxu0 0
        %1184 = vmatpush1.bf16.msra.mxu0 %v1136
        %1185 = vmatprep.mubr.bf16.mxu0 %v994
        %1186 = vmatmul.mubr.bf16.gmra.mrb[0].mxu0 %v993
        %v1187 = vpop.f32.mrb[0].mxu0
        %v1188 = vadd.f32 %v895, %v1187
        %v1189 = vpop.f32.mrb[0].mxu0
        %v1190 = vpop.f32.mrb[0].mxu0
        %v1191 = vadd.f32 %v895, %v1190
        %v1192 = vpop.f32.mrb[0].mxu0
        %1193 = vmatprep.mubr.bf16.mxu0 %v996
        %1194 = vmatmul.mubr.bf16.gmra.mrb[0].mxu0 %v995
        %v1195 = vpop.f32.mrb[0].mxu0
        %v1196 = vadd.f32 %v895, %v1195
        %v1197 = vpop.f32.mrb[0].mxu0
        %v1198 = vpop.f32.mrb[0].mxu0
        %v1199 = vadd.f32 %v895, %v1198
        %v1200 = vpop.f32.mrb[0].mxu0
        %1201 = vmatprep.mubr.bf16.mxu0 %v998
        %1202 = vmatmul.mubr.bf16.gmra.mrb[0].mxu0 %v997
        %v1203 = vpop.f32.mrb[0].mxu0
        %v1204 = vadd.f32 %v895, %v1203
        %v1205 = vpop.f32.mrb[0].mxu0
        %v1206 = vpop.f32.mrb[0].mxu0
        %v1207 = vadd.f32 %v895, %v1206
        %v1208 = vpop.f32.mrb[0].mxu0
        %1209 = vmatprep.mubr.bf16.mxu0 %v1000
        %1210 = vmatmul.mubr.bf16.gmra.mrb[0].mxu0 %v999
        %v1211 = vpop.f32.mrb[0].mxu0
        %v1212 = vadd.f32 %v895, %v1211
        %v1213 = vpop.f32.mrb[0].mxu0
        %v1214 = vpop.f32.mrb[0].mxu0
        %v1215 = vadd.f32 %v895, %v1214
        %v1216 = vpop.f32.mrb[0].mxu0
        %1217 = vmatprep.mubr.bf16.mxu0 %v1002
        %1218 = vmatmul.mubr.bf16.gmra.mrb[0].mxu0 %v1001
        %v1219 = vpop.f32.mrb[0].mxu0
        %v1220 = vadd.f32 %v895, %v1219
        %v1221 = vpop.f32.mrb[0].mxu0
        %v1222 = vpop.f32.mrb[0].mxu0
        %v1223 = vadd.f32 %v895, %v1222
        %v1224 = vpop.f32.mrb[0].mxu0
        %1225 = vmatprep.mubr.bf16.mxu0 %v1004
        %1226 = vmatmul.mubr.bf16.gmra.mrb[0].mxu0 %v1003
        %v1227 = vpop.f32.mrb[0].mxu0
        %v1228 = vadd.f32 %v895, %v1227
        %v1229 = vpop.f32.mrb[0].mxu0
        %v1230 = vpop.f32.mrb[0].mxu0
        %v1231 = vadd.f32 %v895, %v1230
        %v1232 = vpop.f32.mrb[0].mxu0
        %1233 = vmatprep.mubr.bf16.mxu0 %v1006
        %1234 = vmatmul.mubr.bf16.gmra.mrb[0].mxu0 %v1005
        %v1235 = vpop.f32.mrb[0].mxu0
        %v1236 = vadd.f32 %v895, %v1235
        %v1237 = vpop.f32.mrb[0].mxu0
        %v1238 = vpop.f32.mrb[0].mxu0
        %v1239 = vadd.f32 %v895, %v1238
        %v1240 = vpop.f32.mrb[0].mxu0
        %1241 = vmatprep.mubr.bf16.mxu0 %v1008
        %1242 = vmatmul.mubr.bf16.gmra.mrb[0].mxu0 %v1007
        %v1243 = vpop.f32.mrb[0].mxu0
        %v1244 = vadd.f32 %v895, %v1243
        %v1245 = vpop.f32.mrb[0].mxu0
        %v1246 = vpop.f32.mrb[0].mxu0
        %v1247 = vadd.f32 %v895, %v1246
        %v1248 = vpop.f32.mrb[0].mxu0
        %1249 = vmatprep.mubr.bf16.mxu0 %v1010
        %1250 = vmatmul.mubr.bf16.gmra.mrb[0].mxu0 %v1009
        %v1251 = vpop.f32.mrb[0].mxu0
        %v1252 = vadd.f32 %v895, %v1251
        %v1253 = vpop.f32.mrb[0].mxu0
        %v1254 = vpop.f32.mrb[0].mxu0
        %v1255 = vadd.f32 %v895, %v1254
        %v1256 = vpop.f32.mrb[0].mxu0
        %1257 = vmatprep.mubr.bf16.mxu0 %v1012
        %1258 = vmatmul.mubr.bf16.gmra.mrb[0].mxu0 %v1011
        %v1259 = vpop.f32.mrb[0].mxu0
        %v1260 = vadd.f32 %v895, %v1259
        %v1261 = vpop.f32.mrb[0].mxu0
        %v1262 = vpop.f32.mrb[0].mxu0
        %v1263 = vadd.f32 %v895, %v1262
        %v1264 = vpop.f32.mrb[0].mxu0
        %1265 = vmatprep.mubr.bf16.mxu0 %v1014
        %1266 = vmatmul.mubr.bf16.gmra.mrb[0].mxu0 %v1013
        %v1267 = vpop.f32.mrb[0].mxu0
        %v1268 = vadd.f32 %v895, %v1267
        %v1269 = vpop.f32.mrb[0].mxu0
        %v1270 = vpop.f32.mrb[0].mxu0
        %v1271 = vadd.f32 %v895, %v1270
        %v1272 = vpop.f32.mrb[0].mxu0
        %1273 = vmatprep.mubr.bf16.mxu0 %v1016
        %1274 = vmatmul.mubr.bf16.gmra.mrb[0].mxu0 %v1015
        %v1275 = vpop.f32.mrb[0].mxu0
        %v1276 = vadd.f32 %v895, %v1275
        %v1277 = vpop.f32.mrb[0].mxu0
        %v1278 = vpop.f32.mrb[0].mxu0
        %v1279 = vadd.f32 %v895, %v1278
        %v1280 = vpop.f32.mrb[0].mxu0
        %1281 = vmatprep.mubr.bf16.mxu0 %v1018
        %1282 = vmatmul.mubr.bf16.gmra.mrb[0].mxu0 %v1017
        %v1283 = vpop.f32.mrb[0].mxu0
        %v1284 = vadd.f32 %v895, %v1283
        %v1285 = vpop.f32.mrb[0].mxu0
        %v1286 = vpop.f32.mrb[0].mxu0
        %v1287 = vadd.f32 %v895, %v1286
        %v1288 = vpop.f32.mrb[0].mxu0
        %1289 = vmatprep.mubr.bf16.mxu0 %v1020
        %1290 = vmatmul.mubr.bf16.gmra.mrb[0].mxu0 %v1019
        %v1291 = vpop.f32.mrb[0].mxu0
        %v1292 = vadd.f32 %v895, %v1291
        %v1293 = vpop.f32.mrb[0].mxu0
        %v1294 = vpop.f32.mrb[0].mxu0
        %v1295 = vadd.f32 %v895, %v1294
        %v1296 = vpop.f32.mrb[0].mxu0
        %1297 = vmatprep.mubr.bf16.mxu0 %v1022
        %1298 = vmatmul.mubr.bf16.gmra.mrb[0].mxu0 %v1021
        %v1299 = vpop.f32.mrb[0].mxu0
        %v1300 = vadd.f32 %v895, %v1299
        %v1301 = vpop.f32.mrb[0].mxu0
        %v1302 = vpop.f32.mrb[0].mxu0
        %v1303 = vadd.f32 %v895, %v1302
        %v1304 = vpop.f32.mrb[0].mxu0
        %1305 = vmatprep.mubr.bf16.mxu0 %v1024
        %1306 = vmatmul.mubr.bf16.gmra.mrb[0].mxu0 %v1023
        %v1307 = vpop.f32.mrb[0].mxu0
        %v1308 = vadd.f32 %v895, %v1307
        %v1309 = vpop.f32.mrb[0].mxu0
        %v1310 = vpop.f32.mrb[0].mxu0
        %v1311 = vadd.f32 %v895, %v1310
        %v1312 = vpop.f32.mrb[0].mxu0
        %1313 = vdwg.mxu0
        %v1314 = vmul.f32 %v1188, 0.5
        %v1315 = vmul.f32 %v1191, 0.5
        %v1316 = vmul.f32 %v1196, 0.5
        %v1317 = vmul.f32 %v1199, 0.5
        %v1318 = vmul.f32 %v1204, 0.5
        %v1319 = vmul.f32 %v1207, 0.5
        %v1320 = vmul.f32 %v1212, 0.5
        %v1321 = vmul.f32 %v1215, 0.5
        %v1322 = vmul.f32 %v1220, 0.5
        %v1323 = vmul.f32 %v1223, 0.5
        %v1324 = vmul.f32 %v1228, 0.5
        %v1325 = vmul.f32 %v1231, 0.5
        %v1326 = vmul.f32 %v1236, 0.5
        %v1327 = vmul.f32 %v1239, 0.5
        %v1328 = vmul.f32 %v1244, 0.5
        %v1329 = vmul.f32 %v1247, 0.5
        %v1330 = vmul.f32 %v1252, 0.5
        %v1331 = vmul.f32 %v1255, 0.5
        %v1332 = vmul.f32 %v1260, 0.5
        %v1333 = vmul.f32 %v1263, 0.5
        %v1334 = vmul.f32 %v1268, 0.5
        %v1335 = vmul.f32 %v1271, 0.5
        %v1336 = vmul.f32 %v1276, 0.5
        %v1337 = vmul.f32 %v1279, 0.5
        %v1338 = vmul.f32 %v1284, 0.5
        %v1339 = vmul.f32 %v1287, 0.5
        %v1340 = vmul.f32 %v1292, 0.5
        %v1341 = vmul.f32 %v1295, 0.5
        %v1342 = vmul.f32 %v1300, 0.5
        %v1343 = vmul.f32 %v1303, 0.5
        %v1344 = vmul.f32 %v1308, 0.5
        %v1345 = vmul.f32 %v1311, 0.5
        %v1346 = vmul.f32 %v1188, 0.044715
        %v1347 = vmul.f32 %v1191, 0.044715
        %v1348 = vmul.f32 %v1196, 0.044715
        %v1349 = vmul.f32 %v1199, 0.044715
        %v1350 = vmul.f32 %v1204, 0.044715
        %v1351 = vmul.f32 %v1207, 0.044715
        %v1352 = vmul.f32 %v1212, 0.044715
        %v1353 = vmul.f32 %v1215, 0.044715
        %v1354 = vmul.f32 %v1220, 0.044715
        %v1355 = vmul.f32 %v1223, 0.044715
        %v1356 = vmul.f32 %v1228, 0.044715
        %v1357 = vmul.f32 %v1231, 0.044715
        %v1358 = vmul.f32 %v1236, 0.044715
        %v1359 = vmul.f32 %v1239, 0.044715
        %v1360 = vmul.f32 %v1244, 0.044715
        %v1361 = vmul.f32 %v1247, 0.044715
        %v1362 = vmul.f32 %v1252, 0.044715
        %v1363 = vmul.f32 %v1255, 0.044715
        %v1364 = vmul.f32 %v1260, 0.044715
        %v1365 = vmul.f32 %v1263, 0.044715
        %v1366 = vmul.f32 %v1268, 0.044715
        %v1367 = vmul.f32 %v1271, 0.044715
        %v1368 = vmul.f32 %v1276, 0.044715
        %v1369 = vmul.f32 %v1279, 0.044715
        %v1370 = vmul.f32 %v1284, 0.044715
        %v1371 = vmul.f32 %v1287, 0.044715
        %v1372 = vmul.f32 %v1292, 0.044715
        %v1373 = vmul.f32 %v1295, 0.044715
        %v1374 = vmul.f32 %v1300, 0.044715
        %v1375 = vmul.f32 %v1303, 0.044715
        %v1376 = vmul.f32 %v1308, 0.044715
        %v1377 = vmul.f32 %v1311, 0.044715
        %v1378 = vmul.f32 %v1346, %v1188
        %v1379 = vmul.f32 %v1347, %v1191
        %v1380 = vmul.f32 %v1348, %v1196
        %v1381 = vmul.f32 %v1349, %v1199
        %v1382 = vmul.f32 %v1350, %v1204
        %v1383 = vmul.f32 %v1351, %v1207
        %v1384 = vmul.f32 %v1352, %v1212
        %v1385 = vmul.f32 %v1353, %v1215
        %v1386 = vmul.f32 %v1354, %v1220
        %v1387 = vmul.f32 %v1355, %v1223
        %v1388 = vmul.f32 %v1356, %v1228
        %v1389 = vmul.f32 %v1357, %v1231
        %v1390 = vmul.f32 %v1358, %v1236
        %v1391 = vmul.f32 %v1359, %v1239
        %v1392 = vmul.f32 %v1360, %v1244
        %v1393 = vmul.f32 %v1361, %v1247
        %v1394 = vmul.f32 %v1362, %v1252
        %v1395 = vmul.f32 %v1363, %v1255
        %v1396 = vmul.f32 %v1364, %v1260
        %v1397 = vmul.f32 %v1365, %v1263
        %v1398 = vmul.f32 %v1366, %v1268
        %v1399 = vmul.f32 %v1367, %v1271
        %v1400 = vmul.f32 %v1368, %v1276
        %v1401 = vmul.f32 %v1369, %v1279
        %v1402 = vmul.f32 %v1370, %v1284
        %v1403 = vmul.f32 %v1371, %v1287
        %v1404 = vmul.f32 %v1372, %v1292
        %v1405 = vmul.f32 %v1373, %v1295
        %v1406 = vmul.f32 %v1374, %v1300
        %v1407 = vmul.f32 %v1375, %v1303
        %v1408 = vmul.f32 %v1376, %v1308
        %v1409 = vmul.f32 %v1377, %v1311
        %v1410 = vmul.f32 %v1378, %v1188
        %v1411 = vmul.f32 %v1379, %v1191
        %v1412 = vmul.f32 %v1380, %v1196
        %v1413 = vmul.f32 %v1381, %v1199
        %v1414 = vmul.f32 %v1382, %v1204
        %v1415 = vmul.f32 %v1383, %v1207
        %v1416 = vmul.f32 %v1384, %v1212
        %v1417 = vmul.f32 %v1385, %v1215
        %v1418 = vmul.f32 %v1386, %v1220
        %v1419 = vmul.f32 %v1387, %v1223
        %v1420 = vmul.f32 %v1388, %v1228
        %v1421 = vmul.f32 %v1389, %v1231
        %v1422 = vmul.f32 %v1390, %v1236
        %v1423 = vmul.f32 %v1391, %v1239
        %v1424 = vmul.f32 %v1392, %v1244
        %v1425 = vmul.f32 %v1393, %v1247
        %v1426 = vmul.f32 %v1394, %v1252
        %v1427 = vmul.f32 %v1395, %v1255
        %v1428 = vmul.f32 %v1396, %v1260
        %v1429 = vmul.f32 %v1397, %v1263
        %v1430 = vmul.f32 %v1398, %v1268
        %v1431 = vmul.f32 %v1399, %v1271
        %v1432 = vmul.f32 %v1400, %v1276
        %v1433 = vmul.f32 %v1401, %v1279
        %v1434 = vmul.f32 %v1402, %v1284
        %v1435 = vmul.f32 %v1403, %v1287
        %v1436 = vmul.f32 %v1404, %v1292
        %v1437 = vmul.f32 %v1405, %v1295
        %v1438 = vmul.f32 %v1406, %v1300
        %v1439 = vmul.f32 %v1407, %v1303
        %v1440 = vmul.f32 %v1408, %v1308
        %v1441 = vmul.f32 %v1409, %v1311
        %v1442 = vadd.f32 %v1188, %v1410
        %v1443 = vadd.f32 %v1191, %v1411
        %v1444 = vadd.f32 %v1196, %v1412
        %v1445 = vadd.f32 %v1199, %v1413
        %v1446 = vadd.f32 %v1204, %v1414
        %v1447 = vadd.f32 %v1207, %v1415
        %v1448 = vadd.f32 %v1212, %v1416
        %v1449 = vadd.f32 %v1215, %v1417
        %v1450 = vadd.f32 %v1220, %v1418
        %v1451 = vadd.f32 %v1223, %v1419
        %v1452 = vadd.f32 %v1228, %v1420
        %v1453 = vadd.f32 %v1231, %v1421
        %v1454 = vadd.f32 %v1236, %v1422
        %v1455 = vadd.f32 %v1239, %v1423
        %v1456 = vadd.f32 %v1244, %v1424
        %v1457 = vadd.f32 %v1247, %v1425
        %v1458 = vadd.f32 %v1252, %v1426
        %v1459 = vadd.f32 %v1255, %v1427
        %v1460 = vadd.f32 %v1260, %v1428
        %v1461 = vadd.f32 %v1263, %v1429
        %v1462 = vadd.f32 %v1268, %v1430
        %v1463 = vadd.f32 %v1271, %v1431
        %v1464 = vadd.f32 %v1276, %v1432
        %v1465 = vadd.f32 %v1279, %v1433
        %v1466 = vadd.f32 %v1284, %v1434
        %v1467 = vadd.f32 %v1287, %v1435
        %v1468 = vadd.f32 %v1292, %v1436
        %v1469 = vadd.f32 %v1295, %v1437
        %v1470 = vadd.f32 %v1300, %v1438
        %v1471 = vadd.f32 %v1303, %v1439
        %v1472 = vadd.f32 %v1308, %v1440
        %v1473 = vadd.f32 %v1311, %v1441
        %v1474 = vmul.f32 %v1442, 0.7978846
        %v1475 = vmul.f32 %v1443, 0.7978846
        %v1476 = vmul.f32 %v1444, 0.7978846
        %v1477 = vmul.f32 %v1445, 0.7978846
        %v1478 = vmul.f32 %v1446, 0.7978846
        %v1479 = vmul.f32 %v1447, 0.7978846
        %v1480 = vmul.f32 %v1448, 0.7978846
        %v1481 = vmul.f32 %v1449, 0.7978846
        %v1482 = vmul.f32 %v1450, 0.7978846
        %v1483 = vmul.f32 %v1451, 0.7978846
        %v1484 = vmul.f32 %v1452, 0.7978846
        %v1485 = vmul.f32 %v1453, 0.7978846
        %v1486 = vmul.f32 %v1454, 0.7978846
        %v1487 = vmul.f32 %v1455, 0.7978846
        %v1488 = vmul.f32 %v1456, 0.7978846
        %v1489 = vmul.f32 %v1457, 0.7978846
        %v1490 = vmul.f32 %v1458, 0.7978846
        %v1491 = vmul.f32 %v1459, 0.7978846
        %v1492 = vmul.f32 %v1460, 0.7978846
        %v1493 = vmul.f32 %v1461, 0.7978846
        %v1494 = vmul.f32 %v1462, 0.7978846
        %v1495 = vmul.f32 %v1463, 0.7978846
        %v1496 = vmul.f32 %v1464, 0.7978846
        %v1497 = vmul.f32 %v1465, 0.7978846
        %v1498 = vmul.f32 %v1466, 0.7978846
        %v1499 = vmul.f32 %v1467, 0.7978846
        %v1500 = vmul.f32 %v1468, 0.7978846
        %v1501 = vmul.f32 %v1469, 0.7978846
        %v1502 = vmul.f32 %v1470, 0.7978846
        %v1503 = vmul.f32 %v1471, 0.7978846
        %v1504 = vmul.f32 %v1472, 0.7978846
        %v1505 = vmul.f32 %v1473, 0.7978846
        %v1506 = vtanh.pop %v1474
        %v1507 = vtanh.pop %v1475
        %v1508 = vtanh.pop %v1476
        %v1509 = vtanh.pop %v1477
        %v1510 = vtanh.pop %v1478
        %v1511 = vtanh.pop %v1479
        %v1512 = vtanh.pop %v1480
        %v1513 = vtanh.pop %v1481
        %v1514 = vtanh.pop %v1482
        %v1515 = vtanh.pop %v1483
        %v1516 = vtanh.pop %v1484
        %v1517 = vtanh.pop %v1485
        %v1518 = vtanh.pop %v1486
        %v1519 = vtanh.pop %v1487
        %v1520 = vtanh.pop %v1488
        %v1521 = vtanh.pop %v1489
        %v1522 = vtanh.pop %v1490
        %v1523 = vtanh.pop %v1491
        %v1524 = vtanh.pop %v1492
        %v1525 = vtanh.pop %v1493
        %v1526 = vtanh.pop %v1494
        %v1527 = vtanh.pop %v1495
        %v1528 = vtanh.pop %v1496
        %v1529 = vtanh.pop %v1497
        %v1530 = vtanh.pop %v1498
        %v1531 = vtanh.pop %v1499
        %v1532 = vtanh.pop %v1500
        %v1533 = vtanh.pop %v1501
        %v1534 = vtanh.pop %v1502
        %v1535 = vtanh.pop %v1503
        %v1536 = vtanh.pop %v1504
        %v1537 = vtanh.pop %v1505
        %v1538 = vadd.f32 %v1506, 1.0
        %v1539 = vadd.f32 %v1507, 1.0
        %v1540 = vadd.f32 %v1508, 1.0
        %v1541 = vadd.f32 %v1509, 1.0
        %v1542 = vadd.f32 %v1510, 1.0
        %v1543 = vadd.f32 %v1511, 1.0
        %v1544 = vadd.f32 %v1512, 1.0
        %v1545 = vadd.f32 %v1513, 1.0
        %v1546 = vadd.f32 %v1514, 1.0
        %v1547 = vadd.f32 %v1515, 1.0
        %v1548 = vadd.f32 %v1516, 1.0
        %v1549 = vadd.f32 %v1517, 1.0
        %v1550 = vadd.f32 %v1518, 1.0
        %v1551 = vadd.f32 %v1519, 1.0
        %v1552 = vadd.f32 %v1520, 1.0
        %v1553 = vadd.f32 %v1521, 1.0
        %v1554 = vadd.f32 %v1522, 1.0
        %v1555 = vadd.f32 %v1523, 1.0
        %v1556 = vadd.f32 %v1524, 1.0
        %v1557 = vadd.f32 %v1525, 1.0
        %v1558 = vadd.f32 %v1526, 1.0
        %v1559 = vadd.f32 %v1527, 1.0
        %v1560 = vadd.f32 %v1528, 1.0
        %v1561 = vadd.f32 %v1529, 1.0
        %v1562 = vadd.f32 %v1530, 1.0
        %v1563 = vadd.f32 %v1531, 1.0
        %v1564 = vadd.f32 %v1532, 1.0
        %v1565 = vadd.f32 %v1533, 1.0
        %v1566 = vadd.f32 %v1534, 1.0
        %v1567 = vadd.f32 %v1535, 1.0
        %v1568 = vadd.f32 %v1536, 1.0
        %v1569 = vadd.f32 %v1537, 1.0
        %v1570 = vmul.f32 %v1314, %v1538
        %v1571 = vmul.f32 %v1315, %v1539
        %v1572 = vmul.f32 %v1316, %v1540
        %v1573 = vmul.f32 %v1317, %v1541
        %v1574 = vmul.f32 %v1318, %v1542
        %v1575 = vmul.f32 %v1319, %v1543
        %v1576 = vmul.f32 %v1320, %v1544
        %v1577 = vmul.f32 %v1321, %v1545
        %v1578 = vmul.f32 %v1322, %v1546
        %v1579 = vmul.f32 %v1323, %v1547
        %v1580 = vmul.f32 %v1324, %v1548
        %v1581 = vmul.f32 %v1325, %v1549
        %v1582 = vmul.f32 %v1326, %v1550
        %v1583 = vmul.f32 %v1327, %v1551
        %v1584 = vmul.f32 %v1328, %v1552
        %v1585 = vmul.f32 %v1329, %v1553
        %v1586 = vmul.f32 %v1330, %v1554
        %v1587 = vmul.f32 %v1331, %v1555
        %v1588 = vmul.f32 %v1332, %v1556
        %v1589 = vmul.f32 %v1333, %v1557
        %v1590 = vmul.f32 %v1334, %v1558
        %v1591 = vmul.f32 %v1335, %v1559
        %v1592 = vmul.f32 %v1336, %v1560
        %v1593 = vmul.f32 %v1337, %v1561
        %v1594 = vmul.f32 %v1338, %v1562
        %v1595 = vmul.f32 %v1339, %v1563
        %v1596 = vmul.f32 %v1340, %v1564
        %v1597 = vmul.f32 %v1341, %v1565
        %v1598 = vmul.f32 %v1342, %v1566
        %v1599 = vmul.f32 %v1343, %v1567
        %v1600 = vmul.f32 %v1344, %v1568
        %v1601 = vmul.f32 %v1345, %v1569
        %v1602 = vpack.c.bf16 %v1571, %v1570
        %v1603 = vpack.c.bf16 %v1573, %v1572
        %v1604 = vpack.c.bf16 %v1575, %v1574
        %v1605 = vpack.c.bf16 %v1577, %v1576
        %v1606 = vpack.c.bf16 %v1579, %v1578
        %v1607 = vpack.c.bf16 %v1581, %v1580
        %v1608 = vpack.c.bf16 %v1583, %v1582
        %v1609 = vpack.c.bf16 %v1585, %v1584
        %v1610 = vpack.c.bf16 %v1587, %v1586
        %v1611 = vpack.c.bf16 %v1589, %v1588
        %v1612 = vpack.c.bf16 %v1591, %v1590
        %v1613 = vpack.c.bf16 %v1593, %v1592
        %v1614 = vpack.c.bf16 %v1595, %v1594
        %v1615 = vpack.c.bf16 %v1597, %v1596
        %v1616 = vpack.c.bf16 %v1599, %v1598
        %v1617 = vpack.c.bf16 %v1601, %v1600
        %v1618 = vld [vmem:[#allocation8] sm:$0xf]
        %v1619 = vld [vmem:[#allocation8 + $0x4] sm:$0xf]
        %v1620 = vld [vmem:[#allocation8 + $0x8] sm:$0xf]
        %v1621 = vld [vmem:[#allocation8 + $0xc] sm:$0xf]
        %v1622 = vld [vmem:[#allocation8 + $0x10] sm:$0xf]
        %v1623 = vld [vmem:[#allocation8 + $0x14] sm:$0xf]
        %v1624 = vld [vmem:[#allocation8 + $0x18] sm:$0xf]
        %v1625 = vld [vmem:[#allocation8 + $0x1c] sm:$0xf]
        %v1626 = vld [vmem:[#allocation8 + $0x20] sm:$0xf]
        %v1627 = vld [vmem:[#allocation8 + $0x24] sm:$0xf]
        %v1628 = vld [vmem:[#allocation8 + $0x28] sm:$0xf]
        %v1629 = vld [vmem:[#allocation8 + $0x2c] sm:$0xf]
        %v1630 = vld [vmem:[#allocation8 + $0x30] sm:$0xf]
        %v1631 = vld [vmem:[#allocation8 + $0x34] sm:$0xf]
        %v1632 = vld [vmem:[#allocation8 + $0x38] sm:$0xf]
        %v1633 = vld [vmem:[#allocation8 + $0x3c] sm:$0xf]
        %v1634 = vld [vmem:[#allocation10] sm:$0x1]
        %v1636 = vlaneseq
        %v1637 = vshrl.u32 %v1636, 7
        %v1638 = vsub.s32 0, %v1637
        %v1639 = vrot.slane %v1634, %v1638
        %v1657 = vunpack.c.l.b16 %v1618
        %v1658 = vunpack.c.l.b16 %v1619
        %v1659 = vunpack.c.l.b16 %v1620
        %v1660 = vunpack.c.l.b16 %v1621
        %v1661 = vunpack.c.l.b16 %v1622
        %v1662 = vunpack.c.l.b16 %v1623
        %v1663 = vunpack.c.l.b16 %v1624
        %v1664 = vunpack.c.l.b16 %v1625
        %v1665 = vunpack.c.l.b16 %v1626
        %v1666 = vunpack.c.l.b16 %v1627
        %v1667 = vunpack.c.l.b16 %v1628
        %v1668 = vunpack.c.l.b16 %v1629
        %v1669 = vunpack.c.l.b16 %v1630
        %v1670 = vunpack.c.l.b16 %v1631
        %v1671 = vunpack.c.l.b16 %v1632
        %v1672 = vunpack.c.l.b16 %v1633
        %v1673 = vpack.c.b16 %v1658, %v1657
        %v1674 = vpack.c.b16 %v1660, %v1659
        %v1675 = vpack.c.b16 %v1662, %v1661
        %v1676 = vpack.c.b16 %v1664, %v1663
        %v1677 = vpack.c.b16 %v1666, %v1665
        %v1678 = vpack.c.b16 %v1668, %v1667
        %v1679 = vpack.c.b16 %v1670, %v1669
        %v1680 = vpack.c.b16 %v1672, %v1671
        %1689 = vmatprep.subr.bf16.mxu0 0
        %1690 = vmatpush1.bf16.msra.mxu0 %v1673
        %1691 = vmatprep.subr.bf16.mxu0 0
        %1692 = vmatpush1.bf16.msra.mxu0 %v1674
        %1693 = vmatprep.subr.bf16.mxu0 0
        %1694 = vmatpush1.bf16.msra.mxu0 %v1675
        %1695 = vmatprep.subr.bf16.mxu0 0
        %1696 = vmatpush1.bf16.msra.mxu0 %v1676
        %1697 = vmatprep.subr.bf16.mxu0 0
        %1698 = vmatpush1.bf16.msra.mxu0 %v1677
        %1699 = vmatprep.subr.bf16.mxu0 0
        %1700 = vmatpush1.bf16.msra.mxu0 %v1678
        %1701 = vmatprep.subr.bf16.mxu0 0
        %1702 = vmatpush1.bf16.msra.mxu0 %v1679
        %1703 = vmatprep.subr.bf16.mxu0 0
        %1704 = vmatpush1.bf16.msra.mxu0 %v1680
        %1705 = vmatprep.subr.bf16.mxu0 0
        %1706 = vmatpush1.bf16.msra.mxu0 0
        %1707 = vmatprep.subr.bf16.mxu0 0
        %1708 = vmatpush1.bf16.msra.mxu0 0
        %1709 = vmatprep.subr.bf16.mxu0 0
        %1710 = vmatpush1.bf16.msra.mxu0 0
        %1711 = vmatprep.subr.bf16.mxu0 0
        %1712 = vmatpush1.bf16.msra.mxu0 0
        %1713 = vmatprep.subr.bf16.mxu0 0
        %1714 = vmatpush1.bf16.msra.mxu0 0
        %1715 = vmatprep.subr.bf16.mxu0 0
        %1716 = vmatpush1.bf16.msra.mxu0 0
        %1717 = vmatprep.subr.bf16.mxu0 0
        %1718 = vmatpush1.bf16.msra.mxu0 0
        %1719 = vmatprep.subr.bf16.mxu0 0
        %1720 = vmatpush1.bf16.msra.mxu0 0
        %1721 = vmatprep.mubr.bf16.mxu0 0
        %1722 = vmatmul.mubr.bf16.gmra.mrb[0].mxu0 %v1602
        %v1723 = vpop.f32.mrb[0].mxu0
        %v1724 = vadd.f32 %v1639, %v1723
        %v1725 = vpop.f32.mrb[0].mxu0
        %v1726 = vpop.f32.mrb[0].mxu0
        %v1727 = vadd.f32 %v1639, %v1726
        %v1728 = vpop.f32.mrb[0].mxu0
        %1729 = vmatprep.mubr.bf16.mxu0 0
        %1730 = vmatmul.mubr.bf16.gmra.mrb[0].mxu0 %v1603
        %v1731 = vpop.f32.mrb[0].mxu0
        %v1732 = vadd.f32 %v1639, %v1731
        %v1733 = vpop.f32.mrb[0].mxu0
        %v1734 = vpop.f32.mrb[0].mxu0
        %v1735 = vadd.f32 %v1639, %v1734
        %v1736 = vpop.f32.mrb[0].mxu0
        %1737 = vmatprep.mubr.bf16.mxu0 0
        %1738 = vmatmul.mubr.bf16.gmra.mrb[0].mxu0 %v1604
        %v1739 = vpop.f32.mrb[0].mxu0
        %v1740 = vadd.f32 %v1639, %v1739
        %v1741 = vpop.f32.mrb[0].mxu0
        %v1742 = vpop.f32.mrb[0].mxu0
        %v1743 = vadd.f32 %v1639, %v1742
        %v1744 = vpop.f32.mrb[0].mxu0
        %1745 = vmatprep.mubr.bf16.mxu0 0
        %1746 = vmatmul.mubr.bf16.gmra.mrb[0].mxu0 %v1605
        %v1747 = vpop.f32.mrb[0].mxu0
        %v1748 = vadd.f32 %v1639, %v1747
        %v1749 = vpop.f32.mrb[0].mxu0
        %v1750 = vpop.f32.mrb[0].mxu0
        %v1751 = vadd.f32 %v1639, %v1750
        %v1752 = vpop.f32.mrb[0].mxu0
        %1753 = vmatprep.mubr.bf16.mxu0 0
        %1754 = vmatmul.mubr.bf16.gmra.mrb[0].mxu0 %v1606
        %v1755 = vpop.f32.mrb[0].mxu0
        %v1756 = vadd.f32 %v1639, %v1755
        %v1757 = vpop.f32.mrb[0].mxu0
        %v1758 = vpop.f32.mrb[0].mxu0
        %v1759 = vadd.f32 %v1639, %v1758
        %v1760 = vpop.f32.mrb[0].mxu0
        %1761 = vmatprep.mubr.bf16.mxu0 0
        %1762 = vmatmul.mubr.bf16.gmra.mrb[0].mxu0 %v1607
        %v1763 = vpop.f32.mrb[0].mxu0
        %v1764 = vadd.f32 %v1639, %v1763
        %v1765 = vpop.f32.mrb[0].mxu0
        %v1766 = vpop.f32.mrb[0].mxu0
        %v1767 = vadd.f32 %v1639, %v1766
        %v1768 = vpop.f32.mrb[0].mxu0
        %1769 = vmatprep.mubr.bf16.mxu0 0
        %1770 = vmatmul.mubr.bf16.gmra.mrb[0].mxu0 %v1608
        %v1771 = vpop.f32.mrb[0].mxu0
        %v1772 = vadd.f32 %v1639, %v1771
        %v1773 = vpop.f32.mrb[0].mxu0
        %v1774 = vpop.f32.mrb[0].mxu0
        %v1775 = vadd.f32 %v1639, %v1774
        %v1776 = vpop.f32.mrb[0].mxu0
        %1777 = vmatprep.mubr.bf16.mxu0 0
        %1778 = vmatmul.mubr.bf16.gmra.mrb[0].mxu0 %v1609
        %v1779 = vpop.f32.mrb[0].mxu0
        %v1780 = vadd.f32 %v1639, %v1779
        %v1781 = vpop.f32.mrb[0].mxu0
        %v1782 = vpop.f32.mrb[0].mxu0
        %v1783 = vadd.f32 %v1639, %v1782
        %v1784 = vpop.f32.mrb[0].mxu0
        %1785 = vmatprep.mubr.bf16.mxu0 0
        %1786 = vmatmul.mubr.bf16.gmra.mrb[0].mxu0 %v1610
        %v1787 = vpop.f32.mrb[0].mxu0
        %v1788 = vadd.f32 %v1639, %v1787
        %v1789 = vpop.f32.mrb[0].mxu0
        %v1790 = vpop.f32.mrb[0].mxu0
        %v1791 = vadd.f32 %v1639, %v1790
        %v1792 = vpop.f32.mrb[0].mxu0
        %1793 = vmatprep.mubr.bf16.mxu0 0
        %1794 = vmatmul.mubr.bf16.gmra.mrb[0].mxu0 %v1611
        %v1795 = vpop.f32.mrb[0].mxu0
        %v1796 = vadd.f32 %v1639, %v1795
        %v1797 = vpop.f32.mrb[0].mxu0
        %v1798 = vpop.f32.mrb[0].mxu0
        %v1799 = vadd.f32 %v1639, %v1798
        %v1800 = vpop.f32.mrb[0].mxu0
        %1801 = vmatprep.mubr.bf16.mxu0 0
        %1802 = vmatmul.mubr.bf16.gmra.mrb[0].mxu0 %v1612
        %v1803 = vpop.f32.mrb[0].mxu0
        %v1804 = vadd.f32 %v1639, %v1803
        %v1805 = vpop.f32.mrb[0].mxu0
        %v1806 = vpop.f32.mrb[0].mxu0
        %v1807 = vadd.f32 %v1639, %v1806
        %v1808 = vpop.f32.mrb[0].mxu0
        %1809 = vmatprep.mubr.bf16.mxu0 0
        %1810 = vmatmul.mubr.bf16.gmra.mrb[0].mxu0 %v1613
        %v1811 = vpop.f32.mrb[0].mxu0
        %v1812 = vadd.f32 %v1639, %v1811
        %v1813 = vpop.f32.mrb[0].mxu0
        %v1814 = vpop.f32.mrb[0].mxu0
        %v1815 = vadd.f32 %v1639, %v1814
        %v1816 = vpop.f32.mrb[0].mxu0
        %1817 = vmatprep.mubr.bf16.mxu0 0
        %1818 = vmatmul.mubr.bf16.gmra.mrb[0].mxu0 %v1614
        %v1819 = vpop.f32.mrb[0].mxu0
        %v1820 = vadd.f32 %v1639, %v1819
        %v1821 = vpop.f32.mrb[0].mxu0
        %v1822 = vpop.f32.mrb[0].mxu0
        %v1823 = vadd.f32 %v1639, %v1822
        %v1824 = vpop.f32.mrb[0].mxu0
        %1825 = vmatprep.mubr.bf16.mxu0 0
        %1826 = vmatmul.mubr.bf16.gmra.mrb[0].mxu0 %v1615
        %v1827 = vpop.f32.mrb[0].mxu0
        %v1828 = vadd.f32 %v1639, %v1827
        %v1829 = vpop.f32.mrb[0].mxu0
        %v1830 = vpop.f32.mrb[0].mxu0
        %v1831 = vadd.f32 %v1639, %v1830
        %v1832 = vpop.f32.mrb[0].mxu0
        %1833 = vmatprep.mubr.bf16.mxu0 0
        %1834 = vmatmul.mubr.bf16.gmra.mrb[0].mxu0 %v1616
        %v1835 = vpop.f32.mrb[0].mxu0
        %v1836 = vadd.f32 %v1639, %v1835
        %v1837 = vpop.f32.mrb[0].mxu0
        %v1838 = vpop.f32.mrb[0].mxu0
        %v1839 = vadd.f32 %v1639, %v1838
        %v1840 = vpop.f32.mrb[0].mxu0
        %1841 = vmatprep.mubr.bf16.mxu0 0
        %1842 = vmatmul.mubr.bf16.gmra.mrb[0].mxu0 %v1617
        %v1843 = vpop.f32.mrb[0].mxu0
        %v1844 = vadd.f32 %v1639, %v1843
        %v1845 = vpop.f32.mrb[0].mxu0
        %v1846 = vpop.f32.mrb[0].mxu0
        %v1847 = vadd.f32 %v1639, %v1846
        %v1848 = vpop.f32.mrb[0].mxu0
        %1849 = vdwg.mxu0
        %v1850 = vmul.f32 %v1724, 0.5
        %v1851 = vmul.f32 %v1727, 0.5
        %v1852 = vmul.f32 %v1732, 0.5
        %v1853 = vmul.f32 %v1735, 0.5
        %v1854 = vmul.f32 %v1740, 0.5
        %v1855 = vmul.f32 %v1743, 0.5
        %v1856 = vmul.f32 %v1748, 0.5
        %v1857 = vmul.f32 %v1751, 0.5
        %v1858 = vmul.f32 %v1756, 0.5
        %v1859 = vmul.f32 %v1759, 0.5
        %v1860 = vmul.f32 %v1764, 0.5
        %v1861 = vmul.f32 %v1767, 0.5
        %v1862 = vmul.f32 %v1772, 0.5
        %v1863 = vmul.f32 %v1775, 0.5
        %v1864 = vmul.f32 %v1780, 0.5
        %v1865 = vmul.f32 %v1783, 0.5
        %v1866 = vmul.f32 %v1788, 0.5
        %v1867 = vmul.f32 %v1791, 0.5
        %v1868 = vmul.f32 %v1796, 0.5
        %v1869 = vmul.f32 %v1799, 0.5
        %v1870 = vmul.f32 %v1804, 0.5
        %v1871 = vmul.f32 %v1807, 0.5
        %v1872 = vmul.f32 %v1812, 0.5
        %v1873 = vmul.f32 %v1815, 0.5
        %v1874 = vmul.f32 %v1820, 0.5
        %v1875 = vmul.f32 %v1823, 0.5
        %v1876 = vmul.f32 %v1828, 0.5
        %v1877 = vmul.f32 %v1831, 0.5
        %v1878 = vmul.f32 %v1836, 0.5
        %v1879 = vmul.f32 %v1839, 0.5
        %v1880 = vmul.f32 %v1844, 0.5
        %v1881 = vmul.f32 %v1847, 0.5
        %v1882 = vmul.f32 %v1724, 0.044715
        %v1883 = vmul.f32 %v1727, 0.044715
        %v1884 = vmul.f32 %v1732, 0.044715
        %v1885 = vmul.f32 %v1735, 0.044715
        %v1886 = vmul.f32 %v1740, 0.044715
        %v1887 = vmul.f32 %v1743, 0.044715
        %v1888 = vmul.f32 %v1748, 0.044715
        %v1889 = vmul.f32 %v1751, 0.044715
        %v1890 = vmul.f32 %v1756, 0.044715
        %v1891 = vmul.f32 %v1759, 0.044715
        %v1892 = vmul.f32 %v1764, 0.044715
        %v1893 = vmul.f32 %v1767, 0.044715
        %v1894 = vmul.f32 %v1772, 0.044715
        %v1895 = vmul.f32 %v1775, 0.044715
        %v1896 = vmul.f32 %v1780, 0.044715
        %v1897 = vmul.f32 %v1783, 0.044715
        %v1898 = vmul.f32 %v1788, 0.044715
        %v1899 = vmul.f32 %v1791, 0.044715
        %v1900 = vmul.f32 %v1796, 0.044715
        %v1901 = vmul.f32 %v1799, 0.044715
        %v1902 = vmul.f32 %v1804, 0.044715
        %v1903 = vmul.f32 %v1807, 0.044715
        %v1904 = vmul.f32 %v1812, 0.044715
        %v1905 = vmul.f32 %v1815, 0.044715
        %v1906 = vmul.f32 %v1820, 0.044715
        %v1907 = vmul.f32 %v1823, 0.044715
        %v1908 = vmul.f32 %v1828, 0.044715
        %v1909 = vmul.f32 %v1831, 0.044715
        %v1910 = vmul.f32 %v1836, 0.044715
        %v1911 = vmul.f32 %v1839, 0.044715
        %v1912 = vmul.f32 %v1844, 0.044715
        %v1913 = vmul.f32 %v1847, 0.044715
        %v1914 = vmul.f32 %v1882, %v1724
        %v1915 = vmul.f32 %v1883, %v1727
        %v1916 = vmul.f32 %v1884, %v1732
        %v1917 = vmul.f32 %v1885, %v1735
        %v1918 = vmul.f32 %v1886, %v1740
        %v1919 = vmul.f32 %v1887, %v1743
        %v1920 = vmul.f32 %v1888, %v1748
        %v1921 = vmul.f32 %v1889, %v1751
        %v1922 = vmul.f32 %v1890, %v1756
        %v1923 = vmul.f32 %v1891, %v1759
        %v1924 = vmul.f32 %v1892, %v1764
        %v1925 = vmul.f32 %v1893, %v1767
        %v1926 = vmul.f32 %v1894, %v1772
        %v1927 = vmul.f32 %v1895, %v1775
        %v1928 = vmul.f32 %v1896, %v1780
        %v1929 = vmul.f32 %v1897, %v1783
        %v1930 = vmul.f32 %v1898, %v1788
        %v1931 = vmul.f32 %v1899, %v1791
        %v1932 = vmul.f32 %v1900, %v1796
        %v1933 = vmul.f32 %v1901, %v1799
        %v1934 = vmul.f32 %v1902, %v1804
        %v1935 = vmul.f32 %v1903, %v1807
        %v1936 = vmul.f32 %v1904, %v1812
        %v1937 = vmul.f32 %v1905, %v1815
        %v1938 = vmul.f32 %v1906, %v1820
        %v1939 = vmul.f32 %v1907, %v1823
        %v1940 = vmul.f32 %v1908, %v1828
        %v1941 = vmul.f32 %v1909, %v1831
        %v1942 = vmul.f32 %v1910, %v1836
        %v1943 = vmul.f32 %v1911, %v1839
        %v1944 = vmul.f32 %v1912, %v1844
        %v1945 = vmul.f32 %v1913, %v1847
        %v1946 = vmul.f32 %v1914, %v1724
        %v1947 = vmul.f32 %v1915, %v1727
        %v1948 = vmul.f32 %v1916, %v1732
        %v1949 = vmul.f32 %v1917, %v1735
        %v1950 = vmul.f32 %v1918, %v1740
        %v1951 = vmul.f32 %v1919, %v1743
        %v1952 = vmul.f32 %v1920, %v1748
        %v1953 = vmul.f32 %v1921, %v1751
        %v1954 = vmul.f32 %v1922, %v1756
        %v1955 = vmul.f32 %v1923, %v1759
        %v1956 = vmul.f32 %v1924, %v1764
        %v1957 = vmul.f32 %v1925, %v1767
        %v1958 = vmul.f32 %v1926, %v1772
        %v1959 = vmul.f32 %v1927, %v1775
        %v1960 = vmul.f32 %v1928, %v1780
        %v1961 = vmul.f32 %v1929, %v1783
        %v1962 = vmul.f32 %v1930, %v1788
        %v1963 = vmul.f32 %v1931, %v1791
        %v1964 = vmul.f32 %v1932, %v1796
        %v1965 = vmul.f32 %v1933, %v1799
        %v1966 = vmul.f32 %v1934, %v1804
        %v1967 = vmul.f32 %v1935, %v1807
        %v1968 = vmul.f32 %v1936, %v1812
        %v1969 = vmul.f32 %v1937, %v1815
        %v1970 = vmul.f32 %v1938, %v1820
        %v1971 = vmul.f32 %v1939, %v1823
        %v1972 = vmul.f32 %v1940, %v1828
        %v1973 = vmul.f32 %v1941, %v1831
        %v1974 = vmul.f32 %v1942, %v1836
        %v1975 = vmul.f32 %v1943, %v1839
        %v1976 = vmul.f32 %v1944, %v1844
        %v1977 = vmul.f32 %v1945, %v1847
        %v1978 = vadd.f32 %v1724, %v1946
        %v1979 = vadd.f32 %v1727, %v1947
        %v1980 = vadd.f32 %v1732, %v1948
        %v1981 = vadd.f32 %v1735, %v1949
        %v1982 = vadd.f32 %v1740, %v1950
        %v1983 = vadd.f32 %v1743, %v1951
        %v1984 = vadd.f32 %v1748, %v1952
        %v1985 = vadd.f32 %v1751, %v1953
        %v1986 = vadd.f32 %v1756, %v1954
        %v1987 = vadd.f32 %v1759, %v1955
        %v1988 = vadd.f32 %v1764, %v1956
        %v1989 = vadd.f32 %v1767, %v1957
        %v1990 = vadd.f32 %v1772, %v1958
        %v1991 = vadd.f32 %v1775, %v1959
        %v1992 = vadd.f32 %v1780, %v1960
        %v1993 = vadd.f32 %v1783, %v1961
        %v1994 = vadd.f32 %v1788, %v1962
        %v1995 = vadd.f32 %v1791, %v1963
        %v1996 = vadd.f32 %v1796, %v1964
        %v1997 = vadd.f32 %v1799, %v1965
        %v1998 = vadd.f32 %v1804, %v1966
        %v1999 = vadd.f32 %v1807, %v1967
        %v2000 = vadd.f32 %v1812, %v1968
        %v2001 = vadd.f32 %v1815, %v1969
        %v2002 = vadd.f32 %v1820, %v1970
        %v2003 = vadd.f32 %v1823, %v1971
        %v2004 = vadd.f32 %v1828, %v1972
        %v2005 = vadd.f32 %v1831, %v1973
        %v2006 = vadd.f32 %v1836, %v1974
        %v2007 = vadd.f32 %v1839, %v1975
        %v2008 = vadd.f32 %v1844, %v1976
        %v2009 = vadd.f32 %v1847, %v1977
        %v2010 = vmul.f32 %v1978, 0.7978846
        %v2011 = vmul.f32 %v1979, 0.7978846
        %v2012 = vmul.f32 %v1980, 0.7978846
        %v2013 = vmul.f32 %v1981, 0.7978846
        %v2014 = vmul.f32 %v1982, 0.7978846
        %v2015 = vmul.f32 %v1983, 0.7978846
        %v2016 = vmul.f32 %v1984, 0.7978846
        %v2017 = vmul.f32 %v1985, 0.7978846
        %v2018 = vmul.f32 %v1986, 0.7978846
        %v2019 = vmul.f32 %v1987, 0.7978846
        %v2020 = vmul.f32 %v1988, 0.7978846
        %v2021 = vmul.f32 %v1989, 0.7978846
        %v2022 = vmul.f32 %v1990, 0.7978846
        %v2023 = vmul.f32 %v1991, 0.7978846
        %v2024 = vmul.f32 %v1992, 0.7978846
        %v2025 = vmul.f32 %v1993, 0.7978846
        %v2026 = vmul.f32 %v1994, 0.7978846
        %v2027 = vmul.f32 %v1995, 0.7978846
        %v2028 = vmul.f32 %v1996, 0.7978846
        %v2029 = vmul.f32 %v1997, 0.7978846
        %v2030 = vmul.f32 %v1998, 0.7978846
        %v2031 = vmul.f32 %v1999, 0.7978846
        %v2032 = vmul.f32 %v2000, 0.7978846
        %v2033 = vmul.f32 %v2001, 0.7978846
        %v2034 = vmul.f32 %v2002, 0.7978846
        %v2035 = vmul.f32 %v2003, 0.7978846
        %v2036 = vmul.f32 %v2004, 0.7978846
        %v2037 = vmul.f32 %v2005, 0.7978846
        %v2038 = vmul.f32 %v2006, 0.7978846
        %v2039 = vmul.f32 %v2007, 0.7978846
        %v2040 = vmul.f32 %v2008, 0.7978846
        %v2041 = vmul.f32 %v2009, 0.7978846
        %v2042 = vtanh.pop %v2010
        %v2043 = vtanh.pop %v2011
        %v2044 = vtanh.pop %v2012
        %v2045 = vtanh.pop %v2013
        %v2046 = vtanh.pop %v2014
        %v2047 = vtanh.pop %v2015
        %v2048 = vtanh.pop %v2016
        %v2049 = vtanh.pop %v2017
        %v2050 = vtanh.pop %v2018
        %v2051 = vtanh.pop %v2019
        %v2052 = vtanh.pop %v2020
        %v2053 = vtanh.pop %v2021
        %v2054 = vtanh.pop %v2022
        %v2055 = vtanh.pop %v2023
        %v2056 = vtanh.pop %v2024
        %v2057 = vtanh.pop %v2025
        %v2058 = vtanh.pop %v2026
        %v2059 = vtanh.pop %v2027
        %v2060 = vtanh.pop %v2028
        %v2061 = vtanh.pop %v2029
        %v2062 = vtanh.pop %v2030
        %v2063 = vtanh.pop %v2031
        %v2064 = vtanh.pop %v2032
        %v2065 = vtanh.pop %v2033
        %v2066 = vtanh.pop %v2034
        %v2067 = vtanh.pop %v2035
        %v2068 = vtanh.pop %v2036
        %v2069 = vtanh.pop %v2037
        %v2070 = vtanh.pop %v2038
        %v2071 = vtanh.pop %v2039
        %v2072 = vtanh.pop %v2040
        %v2073 = vtanh.pop %v2041
        %v2074 = vadd.f32 %v2042, 1.0
        %v2075 = vadd.f32 %v2043, 1.0
        %v2076 = vadd.f32 %v2044, 1.0
        %v2077 = vadd.f32 %v2045, 1.0
        %v2078 = vadd.f32 %v2046, 1.0
        %v2079 = vadd.f32 %v2047, 1.0
        %v2080 = vadd.f32 %v2048, 1.0
        %v2081 = vadd.f32 %v2049, 1.0
        %v2082 = vadd.f32 %v2050, 1.0
        %v2083 = vadd.f32 %v2051, 1.0
        %v2084 = vadd.f32 %v2052, 1.0
        %v2085 = vadd.f32 %v2053, 1.0
        %v2086 = vadd.f32 %v2054, 1.0
        %v2087 = vadd.f32 %v2055, 1.0
        %v2088 = vadd.f32 %v2056, 1.0
        %v2089 = vadd.f32 %v2057, 1.0
        %v2090 = vadd.f32 %v2058, 1.0
        %v2091 = vadd.f32 %v2059, 1.0
        %v2092 = vadd.f32 %v2060, 1.0
        %v2093 = vadd.f32 %v2061, 1.0
        %v2094 = vadd.f32 %v2062, 1.0
        %v2095 = vadd.f32 %v2063, 1.0
        %v2096 = vadd.f32 %v2064, 1.0
        %v2097 = vadd.f32 %v2065, 1.0
        %v2098 = vadd.f32 %v2066, 1.0
        %v2099 = vadd.f32 %v2067, 1.0
        %v2100 = vadd.f32 %v2068, 1.0
        %v2101 = vadd.f32 %v2069, 1.0
        %v2102 = vadd.f32 %v2070, 1.0
        %v2103 = vadd.f32 %v2071, 1.0
        %v2104 = vadd.f32 %v2072, 1.0
        %v2105 = vadd.f32 %v2073, 1.0
        %v2106 = vmul.f32 %v1850, %v2074
        %v2107 = vmul.f32 %v1851, %v2075
        %v2108 = vmul.f32 %v1852, %v2076
        %v2109 = vmul.f32 %v1853, %v2077
        %v2110 = vmul.f32 %v1854, %v2078
        %v2111 = vmul.f32 %v1855, %v2079
        %v2112 = vmul.f32 %v1856, %v2080
        %v2113 = vmul.f32 %v1857, %v2081
        %v2114 = vmul.f32 %v1858, %v2082
        %v2115 = vmul.f32 %v1859, %v2083
        %v2116 = vmul.f32 %v1860, %v2084
        %v2117 = vmul.f32 %v1861, %v2085
        %v2118 = vmul.f32 %v1862, %v2086
        %v2119 = vmul.f32 %v1863, %v2087
        %v2120 = vmul.f32 %v1864, %v2088
        %v2121 = vmul.f32 %v1865, %v2089
        %v2122 = vmul.f32 %v1866, %v2090
        %v2123 = vmul.f32 %v1867, %v2091
        %v2124 = vmul.f32 %v1868, %v2092
        %v2125 = vmul.f32 %v1869, %v2093
        %v2126 = vmul.f32 %v1870, %v2094
        %v2127 = vmul.f32 %v1871, %v2095
        %v2128 = vmul.f32 %v1872, %v2096
        %v2129 = vmul.f32 %v1873, %v2097
        %v2130 = vmul.f32 %v1874, %v2098
        %v2131 = vmul.f32 %v1875, %v2099
        %v2132 = vmul.f32 %v1876, %v2100
        %v2133 = vmul.f32 %v1877, %v2101
        %v2134 = vmul.f32 %v1878, %v2102
        %v2135 = vmul.f32 %v1879, %v2103
        %v2136 = vmul.f32 %v1880, %v2104
        %v2137 = vmul.f32 %v1881, %v2105
        %v2138 = vpack.c.bf16 %v2107, %v2106
        %v2139 = vpack.c.bf16 %v2109, %v2108
        %v2140 = vpack.c.bf16 %v2111, %v2110
        %v2141 = vpack.c.bf16 %v2113, %v2112
        %v2142 = vpack.c.bf16 %v2115, %v2114
        %v2143 = vpack.c.bf16 %v2117, %v2116
        %v2144 = vpack.c.bf16 %v2119, %v2118
        %v2145 = vpack.c.bf16 %v2121, %v2120
        %v2146 = vpack.c.bf16 %v2123, %v2122
        %v2147 = vpack.c.bf16 %v2125, %v2124
        %v2148 = vpack.c.bf16 %v2127, %v2126
        %v2149 = vpack.c.bf16 %v2129, %v2128
        %v2150 = vpack.c.bf16 %v2131, %v2130
        %v2151 = vpack.c.bf16 %v2133, %v2132
        %v2152 = vpack.c.bf16 %v2135, %v2134
        %v2153 = vpack.c.bf16 %v2137, %v2136
        %v2154 = vld [vmem:[#allocation11] sm:$0xf]
        %v2155 = vld [vmem:[#allocation11 + $0x4] sm:$0xf]
        %v2156 = vld [vmem:[#allocation11 + $0x8] sm:$0xf]
        %v2157 = vld [vmem:[#allocation11 + $0xc] sm:$0xf]
        %v2158 = vld [vmem:[#allocation11 + $0x10] sm:$0xf]
        %v2159 = vld [vmem:[#allocation11 + $0x14] sm:$0xf]
        %v2160 = vld [vmem:[#allocation11 + $0x18] sm:$0xf]
        %v2161 = vld [vmem:[#allocation11 + $0x1c] sm:$0xf]
        %v2162 = vld [vmem:[#allocation11 + $0x20] sm:$0xf]
        %v2163 = vld [vmem:[#allocation11 + $0x24] sm:$0xf]
        %v2164 = vld [vmem:[#allocation11 + $0x28] sm:$0xf]
        %v2165 = vld [vmem:[#allocation11 + $0x2c] sm:$0xf]
        %v2166 = vld [vmem:[#allocation11 + $0x30] sm:$0xf]
        %v2167 = vld [vmem:[#allocation11 + $0x34] sm:$0xf]
        %v2168 = vld [vmem:[#allocation11 + $0x38] sm:$0xf]
        %v2169 = vld [vmem:[#allocation11 + $0x3c] sm:$0xf]
        %v2170 = vld [vmem:[#allocation13] sm:$0x1]
        %v2172 = vlaneseq
        %v2173 = vshrl.u32 %v2172, 7
        %v2174 = vsub.s32 0, %v2173
        %v2175 = vrot.slane %v2170, %v2174
        %v2193 = vunpack.c.l.b16 %v2154
        %v2194 = vunpack.c.l.b16 %v2155
        %v2195 = vunpack.c.l.b16 %v2156
        %v2196 = vunpack.c.l.b16 %v2157
        %v2197 = vunpack.c.l.b16 %v2158
        %v2198 = vunpack.c.l.b16 %v2159
        %v2199 = vunpack.c.l.b16 %v2160
        %v2200 = vunpack.c.l.b16 %v2161
        %v2201 = vunpack.c.l.b16 %v2162
        %v2202 = vunpack.c.l.b16 %v2163
        %v2203 = vunpack.c.l.b16 %v2164
        %v2204 = vunpack.c.l.b16 %v2165
        %v2205 = vunpack.c.l.b16 %v2166
        %v2206 = vunpack.c.l.b16 %v2167
        %v2207 = vunpack.c.l.b16 %v2168
        %v2208 = vunpack.c.l.b16 %v2169
        %v2209 = vpack.c.b16 %v2194, %v2193
        %v2210 = vpack.c.b16 %v2196, %v2195
        %v2211 = vpack.c.b16 %v2198, %v2197
        %v2212 = vpack.c.b16 %v2200, %v2199
        %v2213 = vpack.c.b16 %v2202, %v2201
        %v2214 = vpack.c.b16 %v2204, %v2203
        %v2215 = vpack.c.b16 %v2206, %v2205
        %v2216 = vpack.c.b16 %v2208, %v2207
        %2225 = vmatprep.subr.bf16.mxu0 0
        %2226 = vmatpush1.bf16.msra.mxu0 %v2209
        %2227 = vmatprep.subr.bf16.mxu0 0
        %2228 = vmatpush1.bf16.msra.mxu0 %v2210
        %2229 = vmatprep.subr.bf16.mxu0 0
        %2230 = vmatpush1.bf16.msra.mxu0 %v2211
        %2231 = vmatprep.subr.bf16.mxu0 0
        %2232 = vmatpush1.bf16.msra.mxu0 %v2212
        %2233 = vmatprep.subr.bf16.mxu0 0
        %2234 = vmatpush1.bf16.msra.mxu0 %v2213
        %2235 = vmatprep.subr.bf16.mxu0 0
        %2236 = vmatpush1.bf16.msra.mxu0 %v2214
        %2237 = vmatprep.subr.bf16.mxu0 0
        %2238 = vmatpush1.bf16.msra.mxu0 %v2215
        %2239 = vmatprep.subr.bf16.mxu0 0
        %2240 = vmatpush1.bf16.msra.mxu0 %v2216
        %2241 = vmatprep.subr.bf16.mxu0 0
        %2242 = vmatpush1.bf16.msra.mxu0 0
        %2243 = vmatprep.subr.bf16.mxu0 0
        %2244 = vmatpush1.bf16.msra.mxu0 0
        %2245 = vmatprep.subr.bf16.mxu0 0
        %2246 = vmatpush1.bf16.msra.mxu0 0
        %2247 = vmatprep.subr.bf16.mxu0 0
        %2248 = vmatpush1.bf16.msra.mxu0 0
        %2249 = vmatprep.subr.bf16.mxu0 0
        %2250 = vmatpush1.bf16.msra.mxu0 0
        %2251 = vmatprep.subr.bf16.mxu0 0
        %2252 = vmatpush1.bf16.msra.mxu0 0
        %2253 = vmatprep.subr.bf16.mxu0 0
        %2254 = vmatpush1.bf16.msra.mxu0 0
        %2255 = vmatprep.subr.bf16.mxu0 0
        %2256 = vmatpush1.bf16.msra.mxu0 0
        %2257 = vmatprep.mubr.bf16.mxu0 0
        %2258 = vmatmul.mubr.bf16.gmra.mrb[0].mxu0 %v2138
        %v2259 = vpop.f32.mrb[0].mxu0
        %v2260 = vadd.f32 %v2175, %v2259
        %v2261 = vpop.f32.mrb[0].mxu0
        %v2262 = vpop.f32.mrb[0].mxu0
        %v2263 = vadd.f32 %v2175, %v2262
        %v2264 = vpop.f32.mrb[0].mxu0
        %2265 = vmatprep.mubr.bf16.mxu0 0
        %2266 = vmatmul.mubr.bf16.gmra.mrb[0].mxu0 %v2139
        %v2267 = vpop.f32.mrb[0].mxu0
        %v2268 = vadd.f32 %v2175, %v2267
        %v2269 = vpop.f32.mrb[0].mxu0
        %v2270 = vpop.f32.mrb[0].mxu0
        %v2271 = vadd.f32 %v2175, %v2270
        %v2272 = vpop.f32.mrb[0].mxu0
        %2273 = vmatprep.mubr.bf16.mxu0 0
        %2274 = vmatmul.mubr.bf16.gmra.mrb[0].mxu0 %v2140
        %v2275 = vpop.f32.mrb[0].mxu0
        %v2276 = vadd.f32 %v2175, %v2275
        %v2277 = vpop.f32.mrb[0].mxu0
        %v2278 = vpop.f32.mrb[0].mxu0
        %v2279 = vadd.f32 %v2175, %v2278
        %v2280 = vpop.f32.mrb[0].mxu0
        %2281 = vmatprep.mubr.bf16.mxu0 0
        %2282 = vmatmul.mubr.bf16.gmra.mrb[0].mxu0 %v2141
        %v2283 = vpop.f32.mrb[0].mxu0
        %v2284 = vadd.f32 %v2175, %v2283
        %v2285 = vpop.f32.mrb[0].mxu0
        %v2286 = vpop.f32.mrb[0].mxu0
        %v2287 = vadd.f32 %v2175, %v2286
        %v2288 = vpop.f32.mrb[0].mxu0
        %2289 = vmatprep.mubr.bf16.mxu0 0
        %2290 = vmatmul.mubr.bf16.gmra.mrb[0].mxu0 %v2142
        %v2291 = vpop.f32.mrb[0].mxu0
        %v2292 = vadd.f32 %v2175, %v2291
        %v2293 = vpop.f32.mrb[0].mxu0
        %v2294 = vpop.f32.mrb[0].mxu0
        %v2295 = vadd.f32 %v2175, %v2294
        %v2296 = vpop.f32.mrb[0].mxu0
        %2297 = vmatprep.mubr.bf16.mxu0 0
        %2298 = vmatmul.mubr.bf16.gmra.mrb[0].mxu0 %v2143
        %v2299 = vpop.f32.mrb[0].mxu0
        %v2300 = vadd.f32 %v2175, %v2299
        %v2301 = vpop.f32.mrb[0].mxu0
        %v2302 = vpop.f32.mrb[0].mxu0
        %v2303 = vadd.f32 %v2175, %v2302
        %v2304 = vpop.f32.mrb[0].mxu0
        %2305 = vmatprep.mubr.bf16.mxu0 0
        %2306 = vmatmul.mubr.bf16.gmra.mrb[0].mxu0 %v2144
        %v2307 = vpop.f32.mrb[0].mxu0
        %v2308 = vadd.f32 %v2175, %v2307
        %v2309 = vpop.f32.mrb[0].mxu0
        %v2310 = vpop.f32.mrb[0].mxu0
        %v2311 = vadd.f32 %v2175, %v2310
        %v2312 = vpop.f32.mrb[0].mxu0
        %2313 = vmatprep.mubr.bf16.mxu0 0
        %2314 = vmatmul.mubr.bf16.gmra.mrb[0].mxu0 %v2145
        %v2315 = vpop.f32.mrb[0].mxu0
        %v2316 = vadd.f32 %v2175, %v2315
        %v2317 = vpop.f32.mrb[0].mxu0
        %v2318 = vpop.f32.mrb[0].mxu0
        %v2319 = vadd.f32 %v2175, %v2318
        %v2320 = vpop.f32.mrb[0].mxu0
        %2321 = vmatprep.mubr.bf16.mxu0 0
        %2322 = vmatmul.mubr.bf16.gmra.mrb[0].mxu0 %v2146
        %v2323 = vpop.f32.mrb[0].mxu0
        %v2324 = vadd.f32 %v2175, %v2323
        %v2325 = vpop.f32.mrb[0].mxu0
        %v2326 = vpop.f32.mrb[0].mxu0
        %v2327 = vadd.f32 %v2175, %v2326
        %v2328 = vpop.f32.mrb[0].mxu0
        %2329 = vmatprep.mubr.bf16.mxu0 0
        %2330 = vmatmul.mubr.bf16.gmra.mrb[0].mxu0 %v2147
        %v2331 = vpop.f32.mrb[0].mxu0
        %v2332 = vadd.f32 %v2175, %v2331
        %v2333 = vpop.f32.mrb[0].mxu0
        %v2334 = vpop.f32.mrb[0].mxu0
        %v2335 = vadd.f32 %v2175, %v2334
        %v2336 = vpop.f32.mrb[0].mxu0
        %2337 = vmatprep.mubr.bf16.mxu0 0
        %2338 = vmatmul.mubr.bf16.gmra.mrb[0].mxu0 %v2148
        %v2339 = vpop.f32.mrb[0].mxu0
        %v2340 = vadd.f32 %v2175, %v2339
        %v2341 = vpop.f32.mrb[0].mxu0
        %v2342 = vpop.f32.mrb[0].mxu0
        %v2343 = vadd.f32 %v2175, %v2342
        %v2344 = vpop.f32.mrb[0].mxu0
        %2345 = vmatprep.mubr.bf16.mxu0 0
        %2346 = vmatmul.mubr.bf16.gmra.mrb[0].mxu0 %v2149
        %v2347 = vpop.f32.mrb[0].mxu0
        %v2348 = vadd.f32 %v2175, %v2347
        %v2349 = vpop.f32.mrb[0].mxu0
        %v2350 = vpop.f32.mrb[0].mxu0
        %v2351 = vadd.f32 %v2175, %v2350
        %v2352 = vpop.f32.mrb[0].mxu0
        %2353 = vmatprep.mubr.bf16.mxu0 0
        %2354 = vmatmul.mubr.bf16.gmra.mrb[0].mxu0 %v2150
        %v2355 = vpop.f32.mrb[0].mxu0
        %v2356 = vadd.f32 %v2175, %v2355
        %v2357 = vpop.f32.mrb[0].mxu0
        %v2358 = vpop.f32.mrb[0].mxu0
        %v2359 = vadd.f32 %v2175, %v2358
        %v2360 = vpop.f32.mrb[0].mxu0
        %2361 = vmatprep.mubr.bf16.mxu0 0
        %2362 = vmatmul.mubr.bf16.gmra.mrb[0].mxu0 %v2151
        %v2363 = vpop.f32.mrb[0].mxu0
        %v2364 = vadd.f32 %v2175, %v2363
        %v2365 = vpop.f32.mrb[0].mxu0
        %v2366 = vpop.f32.mrb[0].mxu0
        %v2367 = vadd.f32 %v2175, %v2366
        %v2368 = vpop.f32.mrb[0].mxu0
        %2369 = vmatprep.mubr.bf16.mxu0 0
        %2370 = vmatmul.mubr.bf16.gmra.mrb[0].mxu0 %v2152
        %v2371 = vpop.f32.mrb[0].mxu0
        %v2372 = vadd.f32 %v2175, %v2371
        %v2373 = vpop.f32.mrb[0].mxu0
        %v2374 = vpop.f32.mrb[0].mxu0
        %v2375 = vadd.f32 %v2175, %v2374
        %v2376 = vpop.f32.mrb[0].mxu0
        %2377 = vmatprep.mubr.bf16.mxu0 0
        %2378 = vmatmul.mubr.bf16.gmra.mrb[0].mxu0 %v2153
        %v2379 = vpop.f32.mrb[0].mxu0
        %v2380 = vadd.f32 %v2175, %v2379
        %v2381 = vpop.f32.mrb[0].mxu0
        %v2382 = vpop.f32.mrb[0].mxu0
        %v2383 = vadd.f32 %v2175, %v2382
        %v2384 = vpop.f32.mrb[0].mxu0
        %2385 = vdwg.mxu0
        %v2386 = vmul.f32 %v2260, 0.5
        %v2387 = vmul.f32 %v2263, 0.5
        %v2388 = vmul.f32 %v2268, 0.5
        %v2389 = vmul.f32 %v2271, 0.5
        %v2390 = vmul.f32 %v2276, 0.5
        %v2391 = vmul.f32 %v2279, 0.5
        %v2392 = vmul.f32 %v2284, 0.5
        %v2393 = vmul.f32 %v2287, 0.5
        %v2394 = vmul.f32 %v2292, 0.5
        %v2395 = vmul.f32 %v2295, 0.5
        %v2396 = vmul.f32 %v2300, 0.5
        %v2397 = vmul.f32 %v2303, 0.5
        %v2398 = vmul.f32 %v2308, 0.5
        %v2399 = vmul.f32 %v2311, 0.5
        %v2400 = vmul.f32 %v2316, 0.5
        %v2401 = vmul.f32 %v2319, 0.5
        %v2402 = vmul.f32 %v2324, 0.5
        %v2403 = vmul.f32 %v2327, 0.5
        %v2404 = vmul.f32 %v2332, 0.5
        %v2405 = vmul.f32 %v2335, 0.5
        %v2406 = vmul.f32 %v2340, 0.5
        %v2407 = vmul.f32 %v2343, 0.5
        %v2408 = vmul.f32 %v2348, 0.5
        %v2409 = vmul.f32 %v2351, 0.5
        %v2410 = vmul.f32 %v2356, 0.5
        %v2411 = vmul.f32 %v2359, 0.5
        %v2412 = vmul.f32 %v2364, 0.5
        %v2413 = vmul.f32 %v2367, 0.5
        %v2414 = vmul.f32 %v2372, 0.5
        %v2415 = vmul.f32 %v2375, 0.5
        %v2416 = vmul.f32 %v2380, 0.5
        %v2417 = vmul.f32 %v2383, 0.5
        %v2418 = vmul.f32 %v2260, 0.044715
        %v2419 = vmul.f32 %v2263, 0.044715
        %v2420 = vmul.f32 %v2268, 0.044715
        %v2421 = vmul.f32 %v2271, 0.044715
        %v2422 = vmul.f32 %v2276, 0.044715
        %v2423 = vmul.f32 %v2279, 0.044715
        %v2424 = vmul.f32 %v2284, 0.044715
        %v2425 = vmul.f32 %v2287, 0.044715
        %v2426 = vmul.f32 %v2292, 0.044715
        %v2427 = vmul.f32 %v2295, 0.044715
        %v2428 = vmul.f32 %v2300, 0.044715
        %v2429 = vmul.f32 %v2303, 0.044715
        %v2430 = vmul.f32 %v2308, 0.044715
        %v2431 = vmul.f32 %v2311, 0.044715
        %v2432 = vmul.f32 %v2316, 0.044715
        %v2433 = vmul.f32 %v2319, 0.044715
        %v2434 = vmul.f32 %v2324, 0.044715
        %v2435 = vmul.f32 %v2327, 0.044715
        %v2436 = vmul.f32 %v2332, 0.044715
        %v2437 = vmul.f32 %v2335, 0.044715
        %v2438 = vmul.f32 %v2340, 0.044715
        %v2439 = vmul.f32 %v2343, 0.044715
        %v2440 = vmul.f32 %v2348, 0.044715
        %v2441 = vmul.f32 %v2351, 0.044715
        %v2442 = vmul.f32 %v2356, 0.044715
        %v2443 = vmul.f32 %v2359, 0.044715
        %v2444 = vmul.f32 %v2364, 0.044715
        %v2445 = vmul.f32 %v2367, 0.044715
        %v2446 = vmul.f32 %v2372, 0.044715
        %v2447 = vmul.f32 %v2375, 0.044715
        %v2448 = vmul.f32 %v2380, 0.044715
        %v2449 = vmul.f32 %v2383, 0.044715
        %v2450 = vmul.f32 %v2418, %v2260
        %v2451 = vmul.f32 %v2419, %v2263
        %v2452 = vmul.f32 %v2420, %v2268
        %v2453 = vmul.f32 %v2421, %v2271
        %v2454 = vmul.f32 %v2422, %v2276
        %v2455 = vmul.f32 %v2423, %v2279
        %v2456 = vmul.f32 %v2424, %v2284
        %v2457 = vmul.f32 %v2425, %v2287
        %v2458 = vmul.f32 %v2426, %v2292
        %v2459 = vmul.f32 %v2427, %v2295
        %v2460 = vmul.f32 %v2428, %v2300
        %v2461 = vmul.f32 %v2429, %v2303
        %v2462 = vmul.f32 %v2430, %v2308
        %v2463 = vmul.f32 %v2431, %v2311
        %v2464 = vmul.f32 %v2432, %v2316
        %v2465 = vmul.f32 %v2433, %v2319
        %v2466 = vmul.f32 %v2434, %v2324
        %v2467 = vmul.f32 %v2435, %v2327
        %v2468 = vmul.f32 %v2436, %v2332
        %v2469 = vmul.f32 %v2437, %v2335
        %v2470 = vmul.f32 %v2438, %v2340
        %v2471 = vmul.f32 %v2439, %v2343
        %v2472 = vmul.f32 %v2440, %v2348
        %v2473 = vmul.f32 %v2441, %v2351
        %v2474 = vmul.f32 %v2442, %v2356
        %v2475 = vmul.f32 %v2443, %v2359
        %v2476 = vmul.f32 %v2444, %v2364
        %v2477 = vmul.f32 %v2445, %v2367
        %v2478 = vmul.f32 %v2446, %v2372
        %v2479 = vmul.f32 %v2447, %v2375
        %v2480 = vmul.f32 %v2448, %v2380
        %v2481 = vmul.f32 %v2449, %v2383
        %v2482 = vmul.f32 %v2450, %v2260
        %v2483 = vmul.f32 %v2451, %v2263
        %v2484 = vmul.f32 %v2452, %v2268
        %v2485 = vmul.f32 %v2453, %v2271
        %v2486 = vmul.f32 %v2454, %v2276
        %v2487 = vmul.f32 %v2455, %v2279
        %v2488 = vmul.f32 %v2456, %v2284
        %v2489 = vmul.f32 %v2457, %v2287
        %v2490 = vmul.f32 %v2458, %v2292
        %v2491 = vmul.f32 %v2459, %v2295
        %v2492 = vmul.f32 %v2460, %v2300
        %v2493 = vmul.f32 %v2461, %v2303
        %v2494 = vmul.f32 %v2462, %v2308
        %v2495 = vmul.f32 %v2463, %v2311
        %v2496 = vmul.f32 %v2464, %v2316
        %v2497 = vmul.f32 %v2465, %v2319
        %v2498 = vmul.f32 %v2466, %v2324
        %v2499 = vmul.f32 %v2467, %v2327
        %v2500 = vmul.f32 %v2468, %v2332
        %v2501 = vmul.f32 %v2469, %v2335
        %v2502 = vmul.f32 %v2470, %v2340
        %v2503 = vmul.f32 %v2471, %v2343
        %v2504 = vmul.f32 %v2472, %v2348
        %v2505 = vmul.f32 %v2473, %v2351
        %v2506 = vmul.f32 %v2474, %v2356
        %v2507 = vmul.f32 %v2475, %v2359
        %v2508 = vmul.f32 %v2476, %v2364
        %v2509 = vmul.f32 %v2477, %v2367
        %v2510 = vmul.f32 %v2478, %v2372
        %v2511 = vmul.f32 %v2479, %v2375
        %v2512 = vmul.f32 %v2480, %v2380
        %v2513 = vmul.f32 %v2481, %v2383
        %v2514 = vadd.f32 %v2260, %v2482
        %v2515 = vadd.f32 %v2263, %v2483
        %v2516 = vadd.f32 %v2268, %v2484
        %v2517 = vadd.f32 %v2271, %v2485
        %v2518 = vadd.f32 %v2276, %v2486
        %v2519 = vadd.f32 %v2279, %v2487
        %v2520 = vadd.f32 %v2284, %v2488
        %v2521 = vadd.f32 %v2287, %v2489
        %v2522 = vadd.f32 %v2292, %v2490
        %v2523 = vadd.f32 %v2295, %v2491
        %v2524 = vadd.f32 %v2300, %v2492
        %v2525 = vadd.f32 %v2303, %v2493
        %v2526 = vadd.f32 %v2308, %v2494
        %v2527 = vadd.f32 %v2311, %v2495
        %v2528 = vadd.f32 %v2316, %v2496
        %v2529 = vadd.f32 %v2319, %v2497
        %v2530 = vadd.f32 %v2324, %v2498
        %v2531 = vadd.f32 %v2327, %v2499
        %v2532 = vadd.f32 %v2332, %v2500
        %v2533 = vadd.f32 %v2335, %v2501
        %v2534 = vadd.f32 %v2340, %v2502
        %v2535 = vadd.f32 %v2343, %v2503
        %v2536 = vadd.f32 %v2348, %v2504
        %v2537 = vadd.f32 %v2351, %v2505
        %v2538 = vadd.f32 %v2356, %v2506
        %v2539 = vadd.f32 %v2359, %v2507
        %v2540 = vadd.f32 %v2364, %v2508
        %v2541 = vadd.f32 %v2367, %v2509
        %v2542 = vadd.f32 %v2372, %v2510
        %v2543 = vadd.f32 %v2375, %v2511
        %v2544 = vadd.f32 %v2380, %v2512
        %v2545 = vadd.f32 %v2383, %v2513
        %v2546 = vmul.f32 %v2514, 0.7978846
        %v2547 = vmul.f32 %v2515, 0.7978846
        %v2548 = vmul.f32 %v2516, 0.7978846
        %v2549 = vmul.f32 %v2517, 0.7978846
        %v2550 = vmul.f32 %v2518, 0.7978846
        %v2551 = vmul.f32 %v2519, 0.7978846
        %v2552 = vmul.f32 %v2520, 0.7978846
        %v2553 = vmul.f32 %v2521, 0.7978846
        %v2554 = vmul.f32 %v2522, 0.7978846
        %v2555 = vmul.f32 %v2523, 0.7978846
        %v2556 = vmul.f32 %v2524, 0.7978846
        %v2557 = vmul.f32 %v2525, 0.7978846
        %v2558 = vmul.f32 %v2526, 0.7978846
        %v2559 = vmul.f32 %v2527, 0.7978846
        %v2560 = vmul.f32 %v2528, 0.7978846
        %v2561 = vmul.f32 %v2529, 0.7978846
        %v2562 = vmul.f32 %v2530, 0.7978846
        %v2563 = vmul.f32 %v2531, 0.7978846
        %v2564 = vmul.f32 %v2532, 0.7978846
        %v2565 = vmul.f32 %v2533, 0.7978846
        %v2566 = vmul.f32 %v2534, 0.7978846
        %v2567 = vmul.f32 %v2535, 0.7978846
        %v2568 = vmul.f32 %v2536, 0.7978846
        %v2569 = vmul.f32 %v2537, 0.7978846
        %v2570 = vmul.f32 %v2538, 0.7978846
        %v2571 = vmul.f32 %v2539, 0.7978846
        %v2572 = vmul.f32 %v2540, 0.7978846
        %v2573 = vmul.f32 %v2541, 0.7978846
        %v2574 = vmul.f32 %v2542, 0.7978846
        %v2575 = vmul.f32 %v2543, 0.7978846
        %v2576 = vmul.f32 %v2544, 0.7978846
        %v2577 = vmul.f32 %v2545, 0.7978846
        %v2578 = vtanh.pop %v2546
        %v2579 = vtanh.pop %v2547
        %v2580 = vtanh.pop %v2548
        %v2581 = vtanh.pop %v2549
        %v2582 = vtanh.pop %v2550
        %v2583 = vtanh.pop %v2551
        %v2584 = vtanh.pop %v2552
        %v2585 = vtanh.pop %v2553
        %v2586 = vtanh.pop %v2554
        %v2587 = vtanh.pop %v2555
        %v2588 = vtanh.pop %v2556
        %v2589 = vtanh.pop %v2557
        %v2590 = vtanh.pop %v2558
        %v2591 = vtanh.pop %v2559
        %v2592 = vtanh.pop %v2560
        %v2593 = vtanh.pop %v2561
        %v2594 = vtanh.pop %v2562
        %v2595 = vtanh.pop %v2563
        %v2596 = vtanh.pop %v2564
        %v2597 = vtanh.pop %v2565
        %v2598 = vtanh.pop %v2566
        %v2599 = vtanh.pop %v2567
        %v2600 = vtanh.pop %v2568
        %v2601 = vtanh.pop %v2569
        %v2602 = vtanh.pop %v2570
        %v2603 = vtanh.pop %v2571
        %v2604 = vtanh.pop %v2572
        %v2605 = vtanh.pop %v2573
        %v2606 = vtanh.pop %v2574
        %v2607 = vtanh.pop %v2575
        %v2608 = vtanh.pop %v2576
        %v2609 = vtanh.pop %v2577
        %v2610 = vadd.f32 %v2578, 1.0
        %v2611 = vadd.f32 %v2579, 1.0
        %v2612 = vadd.f32 %v2580, 1.0
        %v2613 = vadd.f32 %v2581, 1.0
        %v2614 = vadd.f32 %v2582, 1.0
        %v2615 = vadd.f32 %v2583, 1.0
        %v2616 = vadd.f32 %v2584, 1.0
        %v2617 = vadd.f32 %v2585, 1.0
        %v2618 = vadd.f32 %v2586, 1.0
        %v2619 = vadd.f32 %v2587, 1.0
        %v2620 = vadd.f32 %v2588, 1.0
        %v2621 = vadd.f32 %v2589, 1.0
        %v2622 = vadd.f32 %v2590, 1.0
        %v2623 = vadd.f32 %v2591, 1.0
        %v2624 = vadd.f32 %v2592, 1.0
        %v2625 = vadd.f32 %v2593, 1.0
        %v2626 = vadd.f32 %v2594, 1.0
        %v2627 = vadd.f32 %v2595, 1.0
        %v2628 = vadd.f32 %v2596, 1.0
        %v2629 = vadd.f32 %v2597, 1.0
        %v2630 = vadd.f32 %v2598, 1.0
        %v2631 = vadd.f32 %v2599, 1.0
        %v2632 = vadd.f32 %v2600, 1.0
        %v2633 = vadd.f32 %v2601, 1.0
        %v2634 = vadd.f32 %v2602, 1.0
        %v2635 = vadd.f32 %v2603, 1.0
        %v2636 = vadd.f32 %v2604, 1.0
        %v2637 = vadd.f32 %v2605, 1.0
        %v2638 = vadd.f32 %v2606, 1.0
        %v2639 = vadd.f32 %v2607, 1.0
        %v2640 = vadd.f32 %v2608, 1.0
        %v2641 = vadd.f32 %v2609, 1.0
        %v2642 = vmul.f32 %v2386, %v2610
        %v2643 = vmul.f32 %v2387, %v2611
        %v2644 = vmul.f32 %v2388, %v2612
        %v2645 = vmul.f32 %v2389, %v2613
        %v2646 = vmul.f32 %v2390, %v2614
        %v2647 = vmul.f32 %v2391, %v2615
        %v2648 = vmul.f32 %v2392, %v2616
        %v2649 = vmul.f32 %v2393, %v2617
        %v2650 = vmul.f32 %v2394, %v2618
        %v2651 = vmul.f32 %v2395, %v2619
        %v2652 = vmul.f32 %v2396, %v2620
        %v2653 = vmul.f32 %v2397, %v2621
        %v2654 = vmul.f32 %v2398, %v2622
        %v2655 = vmul.f32 %v2399, %v2623
        %v2656 = vmul.f32 %v2400, %v2624
        %v2657 = vmul.f32 %v2401, %v2625
        %v2658 = vmul.f32 %v2402, %v2626
        %v2659 = vmul.f32 %v2403, %v2627
        %v2660 = vmul.f32 %v2404, %v2628
        %v2661 = vmul.f32 %v2405, %v2629
        %v2662 = vmul.f32 %v2406, %v2630
        %v2663 = vmul.f32 %v2407, %v2631
        %v2664 = vmul.f32 %v2408, %v2632
        %v2665 = vmul.f32 %v2409, %v2633
        %v2666 = vmul.f32 %v2410, %v2634
        %v2667 = vmul.f32 %v2411, %v2635
        %v2668 = vmul.f32 %v2412, %v2636
        %v2669 = vmul.f32 %v2413, %v2637
        %v2670 = vmul.f32 %v2414, %v2638
        %v2671 = vmul.f32 %v2415, %v2639
        %v2672 = vmul.f32 %v2416, %v2640
        %v2673 = vmul.f32 %v2417, %v2641
        %v2674 = vpack.c.bf16 %v2643, %v2642
        %v2675 = vpack.c.bf16 %v2645, %v2644
        %v2676 = vpack.c.bf16 %v2647, %v2646
        %v2677 = vpack.c.bf16 %v2649, %v2648
        %v2678 = vpack.c.bf16 %v2651, %v2650
        %v2679 = vpack.c.bf16 %v2653, %v2652
        %v2680 = vpack.c.bf16 %v2655, %v2654
        %v2681 = vpack.c.bf16 %v2657, %v2656
        %v2682 = vpack.c.bf16 %v2659, %v2658
        %v2683 = vpack.c.bf16 %v2661, %v2660
        %v2684 = vpack.c.bf16 %v2663, %v2662
        %v2685 = vpack.c.bf16 %v2665, %v2664
        %v2686 = vpack.c.bf16 %v2667, %v2666
        %v2687 = vpack.c.bf16 %v2669, %v2668
        %v2688 = vpack.c.bf16 %v2671, %v2670
        %v2689 = vpack.c.bf16 %v2673, %v2672
        %v2690 = vld [vmem:[#allocation14] sm:$0xf]
        %v2691 = vld [vmem:[#allocation14 + $0x4] sm:$0xf]
        %v2692 = vld [vmem:[#allocation14 + $0x8] sm:$0xf]
        %v2693 = vld [vmem:[#allocation14 + $0xc] sm:$0xf]
        %v2694 = vld [vmem:[#allocation14 + $0x10] sm:$0xf]
        %v2695 = vld [vmem:[#allocation14 + $0x14] sm:$0xf]
        %v2696 = vld [vmem:[#allocation14 + $0x18] sm:$0xf]
        %v2697 = vld [vmem:[#allocation14 + $0x1c] sm:$0xf]
        %v2698 = vld [vmem:[#allocation14 + $0x20] sm:$0xf]
        %v2699 = vld [vmem:[#allocation14 + $0x24] sm:$0xf]
        %v2700 = vld [vmem:[#allocation14 + $0x28] sm:$0xf]
        %v2701 = vld [vmem:[#allocation14 + $0x2c] sm:$0xf]
        %v2702 = vld [vmem:[#allocation14 + $0x30] sm:$0xf]
        %v2703 = vld [vmem:[#allocation14 + $0x34] sm:$0xf]
        %v2704 = vld [vmem:[#allocation14 + $0x38] sm:$0xf]
        %v2705 = vld [vmem:[#allocation14 + $0x3c] sm:$0xf]
        %v2706 = vld [vmem:[#allocation16] sm:$0x1]
        %v2708 = vlaneseq
        %v2709 = vshrl.u32 %v2708, 7
        %v2710 = vsub.s32 0, %v2709
        %v2711 = vrot.slane %v2706, %v2710
        %v2729 = vunpack.c.l.b16 %v2690
        %v2730 = vunpack.c.l.b16 %v2691
        %v2731 = vunpack.c.l.b16 %v2692
        %v2732 = vunpack.c.l.b16 %v2693
        %v2733 = vunpack.c.l.b16 %v2694
        %v2734 = vunpack.c.l.b16 %v2695
        %v2735 = vunpack.c.l.b16 %v2696
        %v2736 = vunpack.c.l.b16 %v2697
        %v2737 = vunpack.c.l.b16 %v2698
        %v2738 = vunpack.c.l.b16 %v2699
        %v2739 = vunpack.c.l.b16 %v2700
        %v2740 = vunpack.c.l.b16 %v2701
        %v2741 = vunpack.c.l.b16 %v2702
        %v2742 = vunpack.c.l.b16 %v2703
        %v2743 = vunpack.c.l.b16 %v2704
        %v2744 = vunpack.c.l.b16 %v2705
        %v2745 = vpack.c.b16 %v2730, %v2729
        %v2746 = vpack.c.b16 %v2732, %v2731
        %v2747 = vpack.c.b16 %v2734, %v2733
        %v2748 = vpack.c.b16 %v2736, %v2735
        %v2749 = vpack.c.b16 %v2738, %v2737
        %v2750 = vpack.c.b16 %v2740, %v2739
        %v2751 = vpack.c.b16 %v2742, %v2741
        %v2752 = vpack.c.b16 %v2744, %v2743
        %2761 = vmatprep.subr.bf16.mxu0 0
        %2762 = vmatpush1.bf16.msra.mxu0 %v2745
        %2763 = vmatprep.subr.bf16.mxu0 0
        %2764 = vmatpush1.bf16.msra.mxu0 %v2746
        %2765 = vmatprep.subr.bf16.mxu0 0
        %2766 = vmatpush1.bf16.msra.mxu0 %v2747
        %2767 = vmatprep.subr.bf16.mxu0 0
        %2768 = vmatpush1.bf16.msra.mxu0 %v2748
        %2769 = vmatprep.subr.bf16.mxu0 0
        %2770 = vmatpush1.bf16.msra.mxu0 %v2749
        %2771 = vmatprep.subr.bf16.mxu0 0
        %2772 = vmatpush1.bf16.msra.mxu0 %v2750
        %2773 = vmatprep.subr.bf16.mxu0 0
        %2774 = vmatpush1.bf16.msra.mxu0 %v2751
        %2775 = vmatprep.subr.bf16.mxu0 0
        %2776 = vmatpush1.bf16.msra.mxu0 %v2752
        %2777 = vmatprep.subr.bf16.mxu0 0
        %2778 = vmatpush1.bf16.msra.mxu0 0
        %2779 = vmatprep.subr.bf16.mxu0 0
        %2780 = vmatpush1.bf16.msra.mxu0 0
        %2781 = vmatprep.subr.bf16.mxu0 0
        %2782 = vmatpush1.bf16.msra.mxu0 0
        %2783 = vmatprep.subr.bf16.mxu0 0
        %2784 = vmatpush1.bf16.msra.mxu0 0
        %2785 = vmatprep.subr.bf16.mxu0 0
        %2786 = vmatpush1.bf16.msra.mxu0 0
        %2787 = vmatprep.subr.bf16.mxu0 0
        %2788 = vmatpush1.bf16.msra.mxu0 0
        %2789 = vmatprep.subr.bf16.mxu0 0
        %2790 = vmatpush1.bf16.msra.mxu0 0
        %2791 = vmatprep.subr.bf16.mxu0 0
        %2792 = vmatpush1.bf16.msra.mxu0 0
        %2793 = vmatprep.mubr.bf16.mxu0 0
        %2794 = vmatmul.mubr.bf16.gmra.mrb[0].mxu0 %v2674
        %v2795 = vpop.f32.mrb[0].mxu0
        %v2796 = vadd.f32 %v2711, %v2795
        %v2797 = vpop.f32.mrb[0].mxu0
        %v2798 = vpop.f32.mrb[0].mxu0
        %v2799 = vadd.f32 %v2711, %v2798
        %v2800 = vpop.f32.mrb[0].mxu0
        %2801 = vmatprep.mubr.bf16.mxu0 0
        %2802 = vmatmul.mubr.bf16.gmra.mrb[0].mxu0 %v2675
        %v2803 = vpop.f32.mrb[0].mxu0
        %v2804 = vadd.f32 %v2711, %v2803
        %v2805 = vpop.f32.mrb[0].mxu0
        %v2806 = vpop.f32.mrb[0].mxu0
        %v2807 = vadd.f32 %v2711, %v2806
        %v2808 = vpop.f32.mrb[0].mxu0
        %2809 = vmatprep.mubr.bf16.mxu0 0
        %2810 = vmatmul.mubr.bf16.gmra.mrb[0].mxu0 %v2676
        %v2811 = vpop.f32.mrb[0].mxu0
        %v2812 = vadd.f32 %v2711, %v2811
        %v2813 = vpop.f32.mrb[0].mxu0
        %v2814 = vpop.f32.mrb[0].mxu0
        %v2815 = vadd.f32 %v2711, %v2814
        %v2816 = vpop.f32.mrb[0].mxu0
        %2817 = vmatprep.mubr.bf16.mxu0 0
        %2818 = vmatmul.mubr.bf16.gmra.mrb[0].mxu0 %v2677
        %v2819 = vpop.f32.mrb[0].mxu0
        %v2820 = vadd.f32 %v2711, %v2819
        %v2821 = vpop.f32.mrb[0].mxu0
        %v2822 = vpop.f32.mrb[0].mxu0
        %v2823 = vadd.f32 %v2711, %v2822
        %v2824 = vpop.f32.mrb[0].mxu0
        %2825 = vmatprep.mubr.bf16.mxu0 0
        %2826 = vmatmul.mubr.bf16.gmra.mrb[0].mxu0 %v2678
        %v2827 = vpop.f32.mrb[0].mxu0
        %v2828 = vadd.f32 %v2711, %v2827
        %v2829 = vpop.f32.mrb[0].mxu0
        %v2830 = vpop.f32.mrb[0].mxu0
        %v2831 = vadd.f32 %v2711, %v2830
        %v2832 = vpop.f32.mrb[0].mxu0
        %2833 = vmatprep.mubr.bf16.mxu0 0
        %2834 = vmatmul.mubr.bf16.gmra.mrb[0].mxu0 %v2679
        %v2835 = vpop.f32.mrb[0].mxu0
        %v2836 = vadd.f32 %v2711, %v2835
        %v2837 = vpop.f32.mrb[0].mxu0
        %v2838 = vpop.f32.mrb[0].mxu0
        %v2839 = vadd.f32 %v2711, %v2838
        %v2840 = vpop.f32.mrb[0].mxu0
        %2841 = vmatprep.mubr.bf16.mxu0 0
        %2842 = vmatmul.mubr.bf16.gmra.mrb[0].mxu0 %v2680
        %v2843 = vpop.f32.mrb[0].mxu0
        %v2844 = vadd.f32 %v2711, %v2843
        %v2845 = vpop.f32.mrb[0].mxu0
        %v2846 = vpop.f32.mrb[0].mxu0
        %v2847 = vadd.f32 %v2711, %v2846
        %v2848 = vpop.f32.mrb[0].mxu0
        %2849 = vmatprep.mubr.bf16.mxu0 0
        %2850 = vmatmul.mubr.bf16.gmra.mrb[0].mxu0 %v2681
        %v2851 = vpop.f32.mrb[0].mxu0
        %v2852 = vadd.f32 %v2711, %v2851
        %v2853 = vpop.f32.mrb[0].mxu0
        %v2854 = vpop.f32.mrb[0].mxu0
        %v2855 = vadd.f32 %v2711, %v2854
        %v2856 = vpop.f32.mrb[0].mxu0
        %2857 = vmatprep.mubr.bf16.mxu0 0
        %2858 = vmatmul.mubr.bf16.gmra.mrb[0].mxu0 %v2682
        %v2859 = vpop.f32.mrb[0].mxu0
        %v2860 = vadd.f32 %v2711, %v2859
        %v2861 = vpop.f32.mrb[0].mxu0
        %v2862 = vpop.f32.mrb[0].mxu0
        %v2863 = vadd.f32 %v2711, %v2862
        %v2864 = vpop.f32.mrb[0].mxu0
        %2865 = vmatprep.mubr.bf16.mxu0 0
        %2866 = vmatmul.mubr.bf16.gmra.mrb[0].mxu0 %v2683
        %v2867 = vpop.f32.mrb[0].mxu0
        %v2868 = vadd.f32 %v2711, %v2867
        %v2869 = vpop.f32.mrb[0].mxu0
        %v2870 = vpop.f32.mrb[0].mxu0
        %v2871 = vadd.f32 %v2711, %v2870
        %v2872 = vpop.f32.mrb[0].mxu0
        %2873 = vmatprep.mubr.bf16.mxu0 0
        %2874 = vmatmul.mubr.bf16.gmra.mrb[0].mxu0 %v2684
        %v2875 = vpop.f32.mrb[0].mxu0
        %v2876 = vadd.f32 %v2711, %v2875
        %v2877 = vpop.f32.mrb[0].mxu0
        %v2878 = vpop.f32.mrb[0].mxu0
        %v2879 = vadd.f32 %v2711, %v2878
        %v2880 = vpop.f32.mrb[0].mxu0
        %2881 = vmatprep.mubr.bf16.mxu0 0
        %2882 = vmatmul.mubr.bf16.gmra.mrb[0].mxu0 %v2685
        %v2883 = vpop.f32.mrb[0].mxu0
        %v2884 = vadd.f32 %v2711, %v2883
        %v2885 = vpop.f32.mrb[0].mxu0
        %v2886 = vpop.f32.mrb[0].mxu0
        %v2887 = vadd.f32 %v2711, %v2886
        %v2888 = vpop.f32.mrb[0].mxu0
        %2889 = vmatprep.mubr.bf16.mxu0 0
        %2890 = vmatmul.mubr.bf16.gmra.mrb[0].mxu0 %v2686
        %v2891 = vpop.f32.mrb[0].mxu0
        %v2892 = vadd.f32 %v2711, %v2891
        %v2893 = vpop.f32.mrb[0].mxu0
        %v2894 = vpop.f32.mrb[0].mxu0
        %v2895 = vadd.f32 %v2711, %v2894
        %v2896 = vpop.f32.mrb[0].mxu0
        %2897 = vmatprep.mubr.bf16.mxu0 0
        %2898 = vmatmul.mubr.bf16.gmra.mrb[0].mxu0 %v2687
        %v2899 = vpop.f32.mrb[0].mxu0
        %v2900 = vadd.f32 %v2711, %v2899
        %v2901 = vpop.f32.mrb[0].mxu0
        %v2902 = vpop.f32.mrb[0].mxu0
        %v2903 = vadd.f32 %v2711, %v2902
        %v2904 = vpop.f32.mrb[0].mxu0
        %2905 = vmatprep.mubr.bf16.mxu0 0
        %2906 = vmatmul.mubr.bf16.gmra.mrb[0].mxu0 %v2688
        %v2907 = vpop.f32.mrb[0].mxu0
        %v2908 = vadd.f32 %v2711, %v2907
        %v2909 = vpop.f32.mrb[0].mxu0
        %v2910 = vpop.f32.mrb[0].mxu0
        %v2911 = vadd.f32 %v2711, %v2910
        %v2912 = vpop.f32.mrb[0].mxu0
        %2913 = vmatprep.mubr.bf16.mxu0 0
        %2914 = vmatmul.mubr.bf16.gmra.mrb[0].mxu0 %v2689
        %v2915 = vpop.f32.mrb[0].mxu0
        %v2916 = vadd.f32 %v2711, %v2915
        %v2917 = vpop.f32.mrb[0].mxu0
        %v2918 = vpop.f32.mrb[0].mxu0
        %v2919 = vadd.f32 %v2711, %v2918
        %v2920 = vpop.f32.mrb[0].mxu0
        %2921 = vdwg.mxu0
        %2922 = vst [vmem:[%s814] sm:$0xff] %v2796
        %2923 = vst [vmem:[%s814 + $0x8] sm:$0xff] %v2799
        %2924 = vst [vmem:[%s814 + $0x10] sm:$0xff] %v2804
        %2925 = vst [vmem:[%s814 + $0x18] sm:$0xff] %v2807
        %2926 = vst [vmem:[%s814 + $0x20] sm:$0xff] %v2812
        %2927 = vst [vmem:[%s814 + $0x28] sm:$0xff] %v2815
        %2928 = vst [vmem:[%s814 + $0x30] sm:$0xff] %v2820
        %2929 = vst [vmem:[%s814 + $0x38] sm:$0xff] %v2823
        %2930 = vst [vmem:[%s814 + $0x40] sm:$0xff] %v2828
        %2931 = vst [vmem:[%s814 + $0x48] sm:$0xff] %v2831
        %2932 = vst [vmem:[%s814 + $0x50] sm:$0xff] %v2836
        %2933 = vst [vmem:[%s814 + $0x58] sm:$0xff] %v2839
        %2934 = vst [vmem:[%s814 + $0x60] sm:$0xff] %v2844
        %2935 = vst [vmem:[%s814 + $0x68] sm:$0xff] %v2847
        %2936 = vst [vmem:[%s814 + $0x70] sm:$0xff] %v2852
        %2937 = vst [vmem:[%s814 + $0x78] sm:$0xff] %v2855
        %2938 = vst [vmem:[%s814 + $0x80] sm:$0xff] %v2860
        %2939 = vst [vmem:[%s814 + $0x88] sm:$0xff] %v2863
        %2940 = vst [vmem:[%s814 + $0x90] sm:$0xff] %v2868
        %2941 = vst [vmem:[%s814 + $0x98] sm:$0xff] %v2871
        %2942 = vst [vmem:[%s814 + $0xa0] sm:$0xff] %v2876
        %2943 = vst [vmem:[%s814 + $0xa8] sm:$0xff] %v2879
        %2944 = vst [vmem:[%s814 + $0xb0] sm:$0xff] %v2884
        %2945 = vst [vmem:[%s814 + $0xb8] sm:$0xff] %v2887
        %2946 = vst [vmem:[%s814 + $0xc0] sm:$0xff] %v2892
        %2947 = vst [vmem:[%s814 + $0xc8] sm:$0xff] %v2895
        %2948 = vst [vmem:[%s814 + $0xd0] sm:$0xff] %v2900
        %2949 = vst [vmem:[%s814 + $0xd8] sm:$0xff] %v2903
        %2950 = vst [vmem:[%s814 + $0xe0] sm:$0xff] %v2908
        %2951 = vst [vmem:[%s814 + $0xe8] sm:$0xff] %v2911
        %2952 = vst [vmem:[%s814 + $0xf0] sm:$0xff] %v2916
        %2953 = vst [vmem:[%s814 + $0xf8] sm:$0xff] %v2919
        %v2954 = vpack.c.bf16 %v2799, %v2796
        %v2955 = vpack.c.bf16 %v2807, %v2804
        %v2956 = vpack.c.bf16 %v2815, %v2812
        %v2957 = vpack.c.bf16 %v2823, %v2820
        %v2958 = vpack.c.bf16 %v2831, %v2828
        %v2959 = vpack.c.bf16 %v2839, %v2836
        %v2960 = vpack.c.bf16 %v2847, %v2844
        %v2961 = vpack.c.bf16 %v2855, %v2852
        %v2962 = vpack.c.bf16 %v2863, %v2860
        %v2963 = vpack.c.bf16 %v2871, %v2868
        %v2964 = vpack.c.bf16 %v2879, %v2876
        %v2965 = vpack.c.bf16 %v2887, %v2884
        %v2966 = vpack.c.bf16 %v2895, %v2892
        %v2967 = vpack.c.bf16 %v2903, %v2900
        %v2968 = vpack.c.bf16 %v2911, %v2908
        %v2969 = vpack.c.bf16 %v2919, %v2916
        %v2970 = vld [vmem:[#allocation17] sm:$0xf]
        %v2971 = vld [vmem:[#allocation17 + $0x4] sm:$0xf]
        %v2972 = vld [vmem:[#allocation17 + $0x8] sm:$0xf]
        %v2973 = vld [vmem:[#allocation17 + $0xc] sm:$0xf]
        %v2974 = vld [vmem:[#allocation17 + $0x10] sm:$0xf]
        %v2975 = vld [vmem:[#allocation17 + $0x14] sm:$0xf]
        %v2976 = vld [vmem:[#allocation17 + $0x18] sm:$0xf]
        %v2977 = vld [vmem:[#allocation17 + $0x1c] sm:$0xf]
        %v2978 = vld [vmem:[#allocation17 + $0x20] sm:$0xf]
        %v2979 = vld [vmem:[#allocation17 + $0x24] sm:$0xf]
        %v2980 = vld [vmem:[#allocation17 + $0x28] sm:$0xf]
        %v2981 = vld [vmem:[#allocation17 + $0x2c] sm:$0xf]
        %v2982 = vld [vmem:[#allocation17 + $0x30] sm:$0xf]
        %v2983 = vld [vmem:[#allocation17 + $0x34] sm:$0xf]
        %v2984 = vld [vmem:[#allocation17 + $0x38] sm:$0xf]
        %v2985 = vld [vmem:[#allocation17 + $0x3c] sm:$0xf]
        %v2986 = vld [vmem:[#allocation19] sm:$0x1]
        %v2988 = vlaneseq
        %v2989 = vshrl.u32 %v2988, 7
        %v2990 = vsub.s32 0, %v2989
        %v2991 = vrot.slane %v2986, %v2990
        %v3009 = vunpack.c.l.b16 %v2970
        %v3010 = vunpack.c.l.b16 %v2971
        %v3011 = vunpack.c.l.b16 %v2972
        %v3012 = vunpack.c.l.b16 %v2973
        %v3013 = vunpack.c.l.b16 %v2974
        %v3014 = vunpack.c.l.b16 %v2975
        %v3015 = vunpack.c.l.b16 %v2976
        %v3016 = vunpack.c.l.b16 %v2977
        %v3017 = vunpack.c.l.b16 %v2978
        %v3018 = vunpack.c.l.b16 %v2979
        %v3019 = vunpack.c.l.b16 %v2980
        %v3020 = vunpack.c.l.b16 %v2981
        %v3021 = vunpack.c.l.b16 %v2982
        %v3022 = vunpack.c.l.b16 %v2983
        %v3023 = vunpack.c.l.b16 %v2984
        %v3024 = vunpack.c.l.b16 %v2985
        %v3025 = vpack.c.b16 %v3010, %v3009
        %v3026 = vpack.c.b16 %v3012, %v3011
        %v3027 = vpack.c.b16 %v3014, %v3013
        %v3028 = vpack.c.b16 %v3016, %v3015
        %v3029 = vpack.c.b16 %v3018, %v3017
        %v3030 = vpack.c.b16 %v3020, %v3019
        %v3031 = vpack.c.b16 %v3022, %v3021
        %v3032 = vpack.c.b16 %v3024, %v3023
        %3041 = vmatprep.subr.bf16.mxu0 0
        %3042 = vmatpush1.bf16.msra.mxu0 %v3025
        %3043 = vmatprep.subr.bf16.mxu0 0
        %3044 = vmatpush1.bf16.msra.mxu0 %v3026
        %3045 = vmatprep.subr.bf16.mxu0 0
        %3046 = vmatpush1.bf16.msra.mxu0 %v3027
        %3047 = vmatprep.subr.bf16.mxu0 0
        %3048 = vmatpush1.bf16.msra.mxu0 %v3028
        %3049 = vmatprep.subr.bf16.mxu0 0
        %3050 = vmatpush1.bf16.msra.mxu0 %v3029
        %3051 = vmatprep.subr.bf16.mxu0 0
        %3052 = vmatpush1.bf16.msra.mxu0 %v3030
        %3053 = vmatprep.subr.bf16.mxu0 0
        %3054 = vmatpush1.bf16.msra.mxu0 %v3031
        %3055 = vmatprep.subr.bf16.mxu0 0
        %3056 = vmatpush1.bf16.msra.mxu0 %v3032
        %3057 = vmatprep.subr.bf16.mxu0 0
        %3058 = vmatpush1.bf16.msra.mxu0 0
        %3059 = vmatprep.subr.bf16.mxu0 0
        %3060 = vmatpush1.bf16.msra.mxu0 0
        %3061 = vmatprep.subr.bf16.mxu0 0
        %3062 = vmatpush1.bf16.msra.mxu0 0
        %3063 = vmatprep.subr.bf16.mxu0 0
        %3064 = vmatpush1.bf16.msra.mxu0 0
        %3065 = vmatprep.subr.bf16.mxu0 0
        %3066 = vmatpush1.bf16.msra.mxu0 0
        %3067 = vmatprep.subr.bf16.mxu0 0
        %3068 = vmatpush1.bf16.msra.mxu0 0
        %3069 = vmatprep.subr.bf16.mxu0 0
        %3070 = vmatpush1.bf16.msra.mxu0 0
        %3071 = vmatprep.subr.bf16.mxu0 0
        %3072 = vmatpush1.bf16.msra.mxu0 0
        %3073 = vmatprep.mubr.bf16.mxu0 0
        %3074 = vmatmul.mubr.bf16.gmra.mrb[0].mxu0 %v2954
        %v3075 = vpop.f32.mrb[0].mxu0
        %v3076 = vadd.f32 %v2991, %v3075
        %v3077 = vpop.f32.mrb[0].mxu0
        %v3078 = vpop.f32.mrb[0].mxu0
        %v3079 = vadd.f32 %v2991, %v3078
        %v3080 = vpop.f32.mrb[0].mxu0
        %3081 = vmatprep.mubr.bf16.mxu0 0
        %3082 = vmatmul.mubr.bf16.gmra.mrb[0].mxu0 %v2955
        %v3083 = vpop.f32.mrb[0].mxu0
        %v3084 = vadd.f32 %v2991, %v3083
        %v3085 = vpop.f32.mrb[0].mxu0
        %v3086 = vpop.f32.mrb[0].mxu0
        %v3087 = vadd.f32 %v2991, %v3086
        %v3088 = vpop.f32.mrb[0].mxu0
        %3089 = vmatprep.mubr.bf16.mxu0 0
        %3090 = vmatmul.mubr.bf16.gmra.mrb[0].mxu0 %v2956
        %v3091 = vpop.f32.mrb[0].mxu0
        %v3092 = vadd.f32 %v2991, %v3091
        %v3093 = vpop.f32.mrb[0].mxu0
        %v3094 = vpop.f32.mrb[0].mxu0
        %v3095 = vadd.f32 %v2991, %v3094
        %v3096 = vpop.f32.mrb[0].mxu0
        %3097 = vmatprep.mubr.bf16.mxu0 0
        %3098 = vmatmul.mubr.bf16.gmra.mrb[0].mxu0 %v2957
        %v3099 = vpop.f32.mrb[0].mxu0
        %v3100 = vadd.f32 %v2991, %v3099
        %v3101 = vpop.f32.mrb[0].mxu0
        %v3102 = vpop.f32.mrb[0].mxu0
        %v3103 = vadd.f32 %v2991, %v3102
        %v3104 = vpop.f32.mrb[0].mxu0
        %3105 = vmatprep.mubr.bf16.mxu0 0
        %3106 = vmatmul.mubr.bf16.gmra.mrb[0].mxu0 %v2958
        %v3107 = vpop.f32.mrb[0].mxu0
        %v3108 = vadd.f32 %v2991, %v3107
        %v3109 = vpop.f32.mrb[0].mxu0
        %v3110 = vpop.f32.mrb[0].mxu0
        %v3111 = vadd.f32 %v2991, %v3110
        %v3112 = vpop.f32.mrb[0].mxu0
        %3113 = vmatprep.mubr.bf16.mxu0 0
        %3114 = vmatmul.mubr.bf16.gmra.mrb[0].mxu0 %v2959
        %v3115 = vpop.f32.mrb[0].mxu0
        %v3116 = vadd.f32 %v2991, %v3115
        %v3117 = vpop.f32.mrb[0].mxu0
        %v3118 = vpop.f32.mrb[0].mxu0
        %v3119 = vadd.f32 %v2991, %v3118
        %v3120 = vpop.f32.mrb[0].mxu0
        %3121 = vmatprep.mubr.bf16.mxu0 0
        %3122 = vmatmul.mubr.bf16.gmra.mrb[0].mxu0 %v2960
        %v3123 = vpop.f32.mrb[0].mxu0
        %v3124 = vadd.f32 %v2991, %v3123
        %v3125 = vpop.f32.mrb[0].mxu0
        %v3126 = vpop.f32.mrb[0].mxu0
        %v3127 = vadd.f32 %v2991, %v3126
        %v3128 = vpop.f32.mrb[0].mxu0
        %3129 = vmatprep.mubr.bf16.mxu0 0
        %3130 = vmatmul.mubr.bf16.gmra.mrb[0].mxu0 %v2961
        %v3131 = vpop.f32.mrb[0].mxu0
        %v3132 = vadd.f32 %v2991, %v3131
        %v3133 = vpop.f32.mrb[0].mxu0
        %v3134 = vpop.f32.mrb[0].mxu0
        %v3135 = vadd.f32 %v2991, %v3134
        %v3136 = vpop.f32.mrb[0].mxu0
        %3137 = vmatprep.mubr.bf16.mxu0 0
        %3138 = vmatmul.mubr.bf16.gmra.mrb[0].mxu0 %v2962
        %v3139 = vpop.f32.mrb[0].mxu0
        %v3140 = vadd.f32 %v2991, %v3139
        %v3141 = vpop.f32.mrb[0].mxu0
        %v3142 = vpop.f32.mrb[0].mxu0
        %v3143 = vadd.f32 %v2991, %v3142
        %v3144 = vpop.f32.mrb[0].mxu0
        %3145 = vmatprep.mubr.bf16.mxu0 0
        %3146 = vmatmul.mubr.bf16.gmra.mrb[0].mxu0 %v2963
        %v3147 = vpop.f32.mrb[0].mxu0
        %v3148 = vadd.f32 %v2991, %v3147
        %v3149 = vpop.f32.mrb[0].mxu0
        %v3150 = vpop.f32.mrb[0].mxu0
        %v3151 = vadd.f32 %v2991, %v3150
        %v3152 = vpop.f32.mrb[0].mxu0
        %3153 = vmatprep.mubr.bf16.mxu0 0
        %3154 = vmatmul.mubr.bf16.gmra.mrb[0].mxu0 %v2964
        %v3155 = vpop.f32.mrb[0].mxu0
        %v3156 = vadd.f32 %v2991, %v3155
        %v3157 = vpop.f32.mrb[0].mxu0
        %v3158 = vpop.f32.mrb[0].mxu0
        %v3159 = vadd.f32 %v2991, %v3158
        %v3160 = vpop.f32.mrb[0].mxu0
        %3161 = vmatprep.mubr.bf16.mxu0 0
        %3162 = vmatmul.mubr.bf16.gmra.mrb[0].mxu0 %v2965
        %v3163 = vpop.f32.mrb[0].mxu0
        %v3164 = vadd.f32 %v2991, %v3163
        %v3165 = vpop.f32.mrb[0].mxu0
        %v3166 = vpop.f32.mrb[0].mxu0
        %v3167 = vadd.f32 %v2991, %v3166
        %v3168 = vpop.f32.mrb[0].mxu0
        %3169 = vmatprep.mubr.bf16.mxu0 0
        %3170 = vmatmul.mubr.bf16.gmra.mrb[0].mxu0 %v2966
        %v3171 = vpop.f32.mrb[0].mxu0
        %v3172 = vadd.f32 %v2991, %v3171
        %v3173 = vpop.f32.mrb[0].mxu0
        %v3174 = vpop.f32.mrb[0].mxu0
        %v3175 = vadd.f32 %v2991, %v3174
        %v3176 = vpop.f32.mrb[0].mxu0
        %3177 = vmatprep.mubr.bf16.mxu0 0
        %3178 = vmatmul.mubr.bf16.gmra.mrb[0].mxu0 %v2967
        %v3179 = vpop.f32.mrb[0].mxu0
        %v3180 = vadd.f32 %v2991, %v3179
        %v3181 = vpop.f32.mrb[0].mxu0
        %v3182 = vpop.f32.mrb[0].mxu0
        %v3183 = vadd.f32 %v2991, %v3182
        %v3184 = vpop.f32.mrb[0].mxu0
        %3185 = vmatprep.mubr.bf16.mxu0 0
        %3186 = vmatmul.mubr.bf16.gmra.mrb[0].mxu0 %v2968
        %v3187 = vpop.f32.mrb[0].mxu0
        %v3188 = vadd.f32 %v2991, %v3187
        %v3189 = vpop.f32.mrb[0].mxu0
        %v3190 = vpop.f32.mrb[0].mxu0
        %v3191 = vadd.f32 %v2991, %v3190
        %v3192 = vpop.f32.mrb[0].mxu0
        %3193 = vmatprep.mubr.bf16.mxu0 0
        %3194 = vmatmul.mubr.bf16.gmra.mrb[0].mxu0 %v2969
        %v3195 = vpop.f32.mrb[0].mxu0
        %v3196 = vadd.f32 %v2991, %v3195
        %v3197 = vpop.f32.mrb[0].mxu0
        %v3198 = vpop.f32.mrb[0].mxu0
        %v3199 = vadd.f32 %v2991, %v3198
        %v3200 = vpop.f32.mrb[0].mxu0
        %3201 = vdwg.mxu0
        %v3202 = vmul.f32 %v3076, 0.5
        %v3203 = vmul.f32 %v3079, 0.5
        %v3204 = vmul.f32 %v3084, 0.5
        %v3205 = vmul.f32 %v3087, 0.5
        %v3206 = vmul.f32 %v3092, 0.5
        %v3207 = vmul.f32 %v3095, 0.5
        %v3208 = vmul.f32 %v3100, 0.5
        %v3209 = vmul.f32 %v3103, 0.5
        %v3210 = vmul.f32 %v3108, 0.5
        %v3211 = vmul.f32 %v3111, 0.5
        %v3212 = vmul.f32 %v3116, 0.5
        %v3213 = vmul.f32 %v3119, 0.5
        %v3214 = vmul.f32 %v3124, 0.5
        %v3215 = vmul.f32 %v3127, 0.5
        %v3216 = vmul.f32 %v3132, 0.5
        %v3217 = vmul.f32 %v3135, 0.5
        %v3218 = vmul.f32 %v3140, 0.5
        %v3219 = vmul.f32 %v3143, 0.5
        %v3220 = vmul.f32 %v3148, 0.5
        %v3221 = vmul.f32 %v3151, 0.5
        %v3222 = vmul.f32 %v3156, 0.5
        %v3223 = vmul.f32 %v3159, 0.5
        %v3224 = vmul.f32 %v3164, 0.5
        %v3225 = vmul.f32 %v3167, 0.5
        %v3226 = vmul.f32 %v3172, 0.5
        %v3227 = vmul.f32 %v3175, 0.5
        %v3228 = vmul.f32 %v3180, 0.5
        %v3229 = vmul.f32 %v3183, 0.5
        %v3230 = vmul.f32 %v3188, 0.5
        %v3231 = vmul.f32 %v3191, 0.5
        %v3232 = vmul.f32 %v3196, 0.5
        %v3233 = vmul.f32 %v3199, 0.5
        %v3234 = vmul.f32 %v3076, 0.044715
        %v3235 = vmul.f32 %v3079, 0.044715
        %v3236 = vmul.f32 %v3084, 0.044715
        %v3237 = vmul.f32 %v3087, 0.044715
        %v3238 = vmul.f32 %v3092, 0.044715
        %v3239 = vmul.f32 %v3095, 0.044715
        %v3240 = vmul.f32 %v3100, 0.044715
        %v3241 = vmul.f32 %v3103, 0.044715
        %v3242 = vmul.f32 %v3108, 0.044715
        %v3243 = vmul.f32 %v3111, 0.044715
        %v3244 = vmul.f32 %v3116, 0.044715
        %v3245 = vmul.f32 %v3119, 0.044715
        %v3246 = vmul.f32 %v3124, 0.044715
        %v3247 = vmul.f32 %v3127, 0.044715
        %v3248 = vmul.f32 %v3132, 0.044715
        %v3249 = vmul.f32 %v3135, 0.044715
        %v3250 = vmul.f32 %v3140, 0.044715
        %v3251 = vmul.f32 %v3143, 0.044715
        %v3252 = vmul.f32 %v3148, 0.044715
        %v3253 = vmul.f32 %v3151, 0.044715
        %v3254 = vmul.f32 %v3156, 0.044715
        %v3255 = vmul.f32 %v3159, 0.044715
        %v3256 = vmul.f32 %v3164, 0.044715
        %v3257 = vmul.f32 %v3167, 0.044715
        %v3258 = vmul.f32 %v3172, 0.044715
        %v3259 = vmul.f32 %v3175, 0.044715
        %v3260 = vmul.f32 %v3180, 0.044715
        %v3261 = vmul.f32 %v3183, 0.044715
        %v3262 = vmul.f32 %v3188, 0.044715
        %v3263 = vmul.f32 %v3191, 0.044715
        %v3264 = vmul.f32 %v3196, 0.044715
        %v3265 = vmul.f32 %v3199, 0.044715
        %v3266 = vmul.f32 %v3234, %v3076
        %v3267 = vmul.f32 %v3235, %v3079
        %v3268 = vmul.f32 %v3236, %v3084
        %v3269 = vmul.f32 %v3237, %v3087
        %v3270 = vmul.f32 %v3238, %v3092
        %v3271 = vmul.f32 %v3239, %v3095
        %v3272 = vmul.f32 %v3240, %v3100
        %v3273 = vmul.f32 %v3241, %v3103
        %v3274 = vmul.f32 %v3242, %v3108
        %v3275 = vmul.f32 %v3243, %v3111
        %v3276 = vmul.f32 %v3244, %v3116
        %v3277 = vmul.f32 %v3245, %v3119
        %v3278 = vmul.f32 %v3246, %v3124
        %v3279 = vmul.f32 %v3247, %v3127
        %v3280 = vmul.f32 %v3248, %v3132
        %v3281 = vmul.f32 %v3249, %v3135
        %v3282 = vmul.f32 %v3250, %v3140
        %v3283 = vmul.f32 %v3251, %v3143
        %v3284 = vmul.f32 %v3252, %v3148
        %v3285 = vmul.f32 %v3253, %v3151
        %v3286 = vmul.f32 %v3254, %v3156
        %v3287 = vmul.f32 %v3255, %v3159
        %v3288 = vmul.f32 %v3256, %v3164
        %v3289 = vmul.f32 %v3257, %v3167
        %v3290 = vmul.f32 %v3258, %v3172
        %v3291 = vmul.f32 %v3259, %v3175
        %v3292 = vmul.f32 %v3260, %v3180
        %v3293 = vmul.f32 %v3261, %v3183
        %v3294 = vmul.f32 %v3262, %v3188
        %v3295 = vmul.f32 %v3263, %v3191
        %v3296 = vmul.f32 %v3264, %v3196
        %v3297 = vmul.f32 %v3265, %v3199
        %v3298 = vmul.f32 %v3266, %v3076
        %v3299 = vmul.f32 %v3267, %v3079
        %v3300 = vmul.f32 %v3268, %v3084
        %v3301 = vmul.f32 %v3269, %v3087
        %v3302 = vmul.f32 %v3270, %v3092
        %v3303 = vmul.f32 %v3271, %v3095
        %v3304 = vmul.f32 %v3272, %v3100
        %v3305 = vmul.f32 %v3273, %v3103
        %v3306 = vmul.f32 %v3274, %v3108
        %v3307 = vmul.f32 %v3275, %v3111
        %v3308 = vmul.f32 %v3276, %v3116
        %v3309 = vmul.f32 %v3277, %v3119
        %v3310 = vmul.f32 %v3278, %v3124
        %v3311 = vmul.f32 %v3279, %v3127
        %v3312 = vmul.f32 %v3280, %v3132
        %v3313 = vmul.f32 %v3281, %v3135
        %v3314 = vmul.f32 %v3282, %v3140
        %v3315 = vmul.f32 %v3283, %v3143
        %v3316 = vmul.f32 %v3284, %v3148
        %v3317 = vmul.f32 %v3285, %v3151
        %v3318 = vmul.f32 %v3286, %v3156
        %v3319 = vmul.f32 %v3287, %v3159
        %v3320 = vmul.f32 %v3288, %v3164
        %v3321 = vmul.f32 %v3289, %v3167
        %v3322 = vmul.f32 %v3290, %v3172
        %v3323 = vmul.f32 %v3291, %v3175
        %v3324 = vmul.f32 %v3292, %v3180
        %v3325 = vmul.f32 %v3293, %v3183
        %v3326 = vmul.f32 %v3294, %v3188
        %v3327 = vmul.f32 %v3295, %v3191
        %v3328 = vmul.f32 %v3296, %v3196
        %v3329 = vmul.f32 %v3297, %v3199
        %v3330 = vadd.f32 %v3076, %v3298
        %v3331 = vadd.f32 %v3079, %v3299
        %v3332 = vadd.f32 %v3084, %v3300
        %v3333 = vadd.f32 %v3087, %v3301
        %v3334 = vadd.f32 %v3092, %v3302
        %v3335 = vadd.f32 %v3095, %v3303
        %v3336 = vadd.f32 %v3100, %v3304
        %v3337 = vadd.f32 %v3103, %v3305
        %v3338 = vadd.f32 %v3108, %v3306
        %v3339 = vadd.f32 %v3111, %v3307
        %v3340 = vadd.f32 %v3116, %v3308
        %v3341 = vadd.f32 %v3119, %v3309
        %v3342 = vadd.f32 %v3124, %v3310
        %v3343 = vadd.f32 %v3127, %v3311
        %v3344 = vadd.f32 %v3132, %v3312
        %v3345 = vadd.f32 %v3135, %v3313
        %v3346 = vadd.f32 %v3140, %v3314
        %v3347 = vadd.f32 %v3143, %v3315
        %v3348 = vadd.f32 %v3148, %v3316
        %v3349 = vadd.f32 %v3151, %v3317
        %v3350 = vadd.f32 %v3156, %v3318
        %v3351 = vadd.f32 %v3159, %v3319
        %v3352 = vadd.f32 %v3164, %v3320
        %v3353 = vadd.f32 %v3167, %v3321
        %v3354 = vadd.f32 %v3172, %v3322
        %v3355 = vadd.f32 %v3175, %v3323
        %v3356 = vadd.f32 %v3180, %v3324
        %v3357 = vadd.f32 %v3183, %v3325
        %v3358 = vadd.f32 %v3188, %v3326
        %v3359 = vadd.f32 %v3191, %v3327
        %v3360 = vadd.f32 %v3196, %v3328
        %v3361 = vadd.f32 %v3199, %v3329
        %v3362 = vmul.f32 %v3330, 0.7978846
        %v3363 = vmul.f32 %v3331, 0.7978846
        %v3364 = vmul.f32 %v3332, 0.7978846
        %v3365 = vmul.f32 %v3333, 0.7978846
        %v3366 = vmul.f32 %v3334, 0.7978846
        %v3367 = vmul.f32 %v3335, 0.7978846
        %v3368 = vmul.f32 %v3336, 0.7978846
        %v3369 = vmul.f32 %v3337, 0.7978846
        %v3370 = vmul.f32 %v3338, 0.7978846
        %v3371 = vmul.f32 %v3339, 0.7978846
        %v3372 = vmul.f32 %v3340, 0.7978846
        %v3373 = vmul.f32 %v3341, 0.7978846
        %v3374 = vmul.f32 %v3342, 0.7978846
        %v3375 = vmul.f32 %v3343, 0.7978846
        %v3376 = vmul.f32 %v3344, 0.7978846
        %v3377 = vmul.f32 %v3345, 0.7978846
        %v3378 = vmul.f32 %v3346, 0.7978846
        %v3379 = vmul.f32 %v3347, 0.7978846
        %v3380 = vmul.f32 %v3348, 0.7978846
        %v3381 = vmul.f32 %v3349, 0.7978846
        %v3382 = vmul.f32 %v3350, 0.7978846
        %v3383 = vmul.f32 %v3351, 0.7978846
        %v3384 = vmul.f32 %v3352, 0.7978846
        %v3385 = vmul.f32 %v3353, 0.7978846
        %v3386 = vmul.f32 %v3354, 0.7978846
        %v3387 = vmul.f32 %v3355, 0.7978846
        %v3388 = vmul.f32 %v3356, 0.7978846
        %v3389 = vmul.f32 %v3357, 0.7978846
        %v3390 = vmul.f32 %v3358, 0.7978846
        %v3391 = vmul.f32 %v3359, 0.7978846
        %v3392 = vmul.f32 %v3360, 0.7978846
        %v3393 = vmul.f32 %v3361, 0.7978846
        %v3394 = vtanh.pop %v3362
        %v3395 = vtanh.pop %v3363
        %v3396 = vtanh.pop %v3364
        %v3397 = vtanh.pop %v3365
        %v3398 = vtanh.pop %v3366
        %v3399 = vtanh.pop %v3367
        %v3400 = vtanh.pop %v3368
        %v3401 = vtanh.pop %v3369
        %v3402 = vtanh.pop %v3370
        %v3403 = vtanh.pop %v3371
        %v3404 = vtanh.pop %v3372
        %v3405 = vtanh.pop %v3373
        %v3406 = vtanh.pop %v3374
        %v3407 = vtanh.pop %v3375
        %v3408 = vtanh.pop %v3376
        %v3409 = vtanh.pop %v3377
        %v3410 = vtanh.pop %v3378
        %v3411 = vtanh.pop %v3379
        %v3412 = vtanh.pop %v3380
        %v3413 = vtanh.pop %v3381
        %v3414 = vtanh.pop %v3382
        %v3415 = vtanh.pop %v3383
        %v3416 = vtanh.pop %v3384
        %v3417 = vtanh.pop %v3385
        %v3418 = vtanh.pop %v3386
        %v3419 = vtanh.pop %v3387
        %v3420 = vtanh.pop %v3388
        %v3421 = vtanh.pop %v3389
        %v3422 = vtanh.pop %v3390
        %v3423 = vtanh.pop %v3391
        %v3424 = vtanh.pop %v3392
        %v3425 = vtanh.pop %v3393
        %v3426 = vadd.f32 %v3394, 1.0
        %v3427 = vadd.f32 %v3395, 1.0
        %v3428 = vadd.f32 %v3396, 1.0
        %v3429 = vadd.f32 %v3397, 1.0
        %v3430 = vadd.f32 %v3398, 1.0
        %v3431 = vadd.f32 %v3399, 1.0
        %v3432 = vadd.f32 %v3400, 1.0
        %v3433 = vadd.f32 %v3401, 1.0
        %v3434 = vadd.f32 %v3402, 1.0
        %v3435 = vadd.f32 %v3403, 1.0
        %v3436 = vadd.f32 %v3404, 1.0
        %v3437 = vadd.f32 %v3405, 1.0
        %v3438 = vadd.f32 %v3406, 1.0
        %v3439 = vadd.f32 %v3407, 1.0
        %v3440 = vadd.f32 %v3408, 1.0
        %v3441 = vadd.f32 %v3409, 1.0
        %v3442 = vadd.f32 %v3410, 1.0
        %v3443 = vadd.f32 %v3411, 1.0
        %v3444 = vadd.f32 %v3412, 1.0
        %v3445 = vadd.f32 %v3413, 1.0
        %v3446 = vadd.f32 %v3414, 1.0
        %v3447 = vadd.f32 %v3415, 1.0
        %v3448 = vadd.f32 %v3416, 1.0
        %v3449 = vadd.f32 %v3417, 1.0
        %v3450 = vadd.f32 %v3418, 1.0
        %v3451 = vadd.f32 %v3419, 1.0
        %v3452 = vadd.f32 %v3420, 1.0
        %v3453 = vadd.f32 %v3421, 1.0
        %v3454 = vadd.f32 %v3422, 1.0
        %v3455 = vadd.f32 %v3423, 1.0
        %v3456 = vadd.f32 %v3424, 1.0
        %v3457 = vadd.f32 %v3425, 1.0
        %v3458 = vmul.f32 %v3202, %v3426
        %v3459 = vmul.f32 %v3203, %v3427
        %v3460 = vmul.f32 %v3204, %v3428
        %v3461 = vmul.f32 %v3205, %v3429
        %v3462 = vmul.f32 %v3206, %v3430
        %v3463 = vmul.f32 %v3207, %v3431
        %v3464 = vmul.f32 %v3208, %v3432
        %v3465 = vmul.f32 %v3209, %v3433
        %v3466 = vmul.f32 %v3210, %v3434
        %v3467 = vmul.f32 %v3211, %v3435
        %v3468 = vmul.f32 %v3212, %v3436
        %v3469 = vmul.f32 %v3213, %v3437
        %v3470 = vmul.f32 %v3214, %v3438
        %v3471 = vmul.f32 %v3215, %v3439
        %v3472 = vmul.f32 %v3216, %v3440
        %v3473 = vmul.f32 %v3217, %v3441
        %v3474 = vmul.f32 %v3218, %v3442
        %v3475 = vmul.f32 %v3219, %v3443
        %v3476 = vmul.f32 %v3220, %v3444
        %v3477 = vmul.f32 %v3221, %v3445
        %v3478 = vmul.f32 %v3222, %v3446
        %v3479 = vmul.f32 %v3223, %v3447
        %v3480 = vmul.f32 %v3224, %v3448
        %v3481 = vmul.f32 %v3225, %v3449
        %v3482 = vmul.f32 %v3226, %v3450
        %v3483 = vmul.f32 %v3227, %v3451
        %v3484 = vmul.f32 %v3228, %v3452
        %v3485 = vmul.f32 %v3229, %v3453
        %v3486 = vmul.f32 %v3230, %v3454
        %v3487 = vmul.f32 %v3231, %v3455
        %v3488 = vmul.f32 %v3232, %v3456
        %v3489 = vmul.f32 %v3233, %v3457
        %v3490 = vpack.c.bf16 %v3459, %v3458
        %v3491 = vpack.c.bf16 %v3461, %v3460
        %v3492 = vpack.c.bf16 %v3463, %v3462
        %v3493 = vpack.c.bf16 %v3465, %v3464
        %v3494 = vpack.c.bf16 %v3467, %v3466
        %v3495 = vpack.c.bf16 %v3469, %v3468
        %v3496 = vpack.c.bf16 %v3471, %v3470
        %v3497 = vpack.c.bf16 %v3473, %v3472
        %v3498 = vpack.c.bf16 %v3475, %v3474
        %v3499 = vpack.c.bf16 %v3477, %v3476
        %v3500 = vpack.c.bf16 %v3479, %v3478
        %v3501 = vpack.c.bf16 %v3481, %v3480
        %v3502 = vpack.c.bf16 %v3483, %v3482
        %v3503 = vpack.c.bf16 %v3485, %v3484
        %v3504 = vpack.c.bf16 %v3487, %v3486
        %v3505 = vpack.c.bf16 %v3489, %v3488
        %v3506 = vld [vmem:[#allocation20] sm:$0xf]
        %v3507 = vld [vmem:[#allocation20 + $0x4] sm:$0xf]
        %v3508 = vld [vmem:[#allocation20 + $0x8] sm:$0xf]
        %v3509 = vld [vmem:[#allocation20 + $0xc] sm:$0xf]
        %v3510 = vld [vmem:[#allocation20 + $0x10] sm:$0xf]
        %v3511 = vld [vmem:[#allocation20 + $0x14] sm:$0xf]
        %v3512 = vld [vmem:[#allocation20 + $0x18] sm:$0xf]
        %v3513 = vld [vmem:[#allocation20 + $0x1c] sm:$0xf]
        %v3514 = vld [vmem:[#allocation20 + $0x20] sm:$0xf]
        %v3515 = vld [vmem:[#allocation20 + $0x24] sm:$0xf]
        %v3516 = vld [vmem:[#allocation20 + $0x28] sm:$0xf]
        %v3517 = vld [vmem:[#allocation20 + $0x2c] sm:$0xf]
        %v3518 = vld [vmem:[#allocation20 + $0x30] sm:$0xf]
        %v3519 = vld [vmem:[#allocation20 + $0x34] sm:$0xf]
        %v3520 = vld [vmem:[#allocation20 + $0x38] sm:$0xf]
        %v3521 = vld [vmem:[#allocation20 + $0x3c] sm:$0xf]
        %v3522 = vld [vmem:[#allocation22] sm:$0x1]
        %v3524 = vlaneseq
        %v3525 = vshrl.u32 %v3524, 7
        %v3526 = vsub.s32 0, %v3525
        %v3527 = vrot.slane %v3522, %v3526
        %v3545 = vunpack.c.l.b16 %v3506
        %v3546 = vunpack.c.l.b16 %v3507
        %v3547 = vunpack.c.l.b16 %v3508
        %v3548 = vunpack.c.l.b16 %v3509
        %v3549 = vunpack.c.l.b16 %v3510
        %v3550 = vunpack.c.l.b16 %v3511
        %v3551 = vunpack.c.l.b16 %v3512
        %v3552 = vunpack.c.l.b16 %v3513
        %v3553 = vunpack.c.l.b16 %v3514
        %v3554 = vunpack.c.l.b16 %v3515
        %v3555 = vunpack.c.l.b16 %v3516
        %v3556 = vunpack.c.l.b16 %v3517
        %v3557 = vunpack.c.l.b16 %v3518
        %v3558 = vunpack.c.l.b16 %v3519
        %v3559 = vunpack.c.l.b16 %v3520
        %v3560 = vunpack.c.l.b16 %v3521
        %v3561 = vpack.c.b16 %v3546, %v3545
        %v3562 = vpack.c.b16 %v3548, %v3547
        %v3563 = vpack.c.b16 %v3550, %v3549
        %v3564 = vpack.c.b16 %v3552, %v3551
        %v3565 = vpack.c.b16 %v3554, %v3553
        %v3566 = vpack.c.b16 %v3556, %v3555
        %v3567 = vpack.c.b16 %v3558, %v3557
        %v3568 = vpack.c.b16 %v3560, %v3559
        %3577 = vmatprep.subr.bf16.mxu0 0
        %3578 = vmatpush1.bf16.msra.mxu0 %v3561
        %3579 = vmatprep.subr.bf16.mxu0 0
        %3580 = vmatpush1.bf16.msra.mxu0 %v3562
        %3581 = vmatprep.subr.bf16.mxu0 0
        %3582 = vmatpush1.bf16.msra.mxu0 %v3563
        %3583 = vmatprep.subr.bf16.mxu0 0
        %3584 = vmatpush1.bf16.msra.mxu0 %v3564
        %3585 = vmatprep.subr.bf16.mxu0 0
        %3586 = vmatpush1.bf16.msra.mxu0 %v3565
        %3587 = vmatprep.subr.bf16.mxu0 0
        %3588 = vmatpush1.bf16.msra.mxu0 %v3566
        %3589 = vmatprep.subr.bf16.mxu0 0
        %3590 = vmatpush1.bf16.msra.mxu0 %v3567
        %3591 = vmatprep.subr.bf16.mxu0 0
        %3592 = vmatpush1.bf16.msra.mxu0 %v3568
        %3593 = vmatprep.subr.bf16.mxu0 0
        %3594 = vmatpush1.bf16.msra.mxu0 0
        %3595 = vmatprep.subr.bf16.mxu0 0
        %3596 = vmatpush1.bf16.msra.mxu0 0
        %3597 = vmatprep.subr.bf16.mxu0 0
        %3598 = vmatpush1.bf16.msra.mxu0 0
        %3599 = vmatprep.subr.bf16.mxu0 0
        %3600 = vmatpush1.bf16.msra.mxu0 0
        %3601 = vmatprep.subr.bf16.mxu0 0
        %3602 = vmatpush1.bf16.msra.mxu0 0
        %3603 = vmatprep.subr.bf16.mxu0 0
        %3604 = vmatpush1.bf16.msra.mxu0 0
        %3605 = vmatprep.subr.bf16.mxu0 0
        %3606 = vmatpush1.bf16.msra.mxu0 0
        %3607 = vmatprep.subr.bf16.mxu0 0
        %3608 = vmatpush1.bf16.msra.mxu0 0
        %3609 = vmatprep.mubr.bf16.mxu0 0
        %3610 = vmatmul.mubr.bf16.gmra.mrb[0].mxu0 %v3490
        %v3611 = vpop.f32.mrb[0].mxu0
        %v3612 = vadd.f32 %v3527, %v3611
        %v3613 = vpop.f32.mrb[0].mxu0
        %v3614 = vpop.f32.mrb[0].mxu0
        %v3615 = vadd.f32 %v3527, %v3614
        %v3616 = vpop.f32.mrb[0].mxu0
        %3617 = vmatprep.mubr.bf16.mxu0 0
        %3618 = vmatmul.mubr.bf16.gmra.mrb[0].mxu0 %v3491
        %v3619 = vpop.f32.mrb[0].mxu0
        %v3620 = vadd.f32 %v3527, %v3619
        %v3621 = vpop.f32.mrb[0].mxu0
        %v3622 = vpop.f32.mrb[0].mxu0
        %v3623 = vadd.f32 %v3527, %v3622
        %v3624 = vpop.f32.mrb[0].mxu0
        %3625 = vmatprep.mubr.bf16.mxu0 0
        %3626 = vmatmul.mubr.bf16.gmra.mrb[0].mxu0 %v3492
        %v3627 = vpop.f32.mrb[0].mxu0
        %v3628 = vadd.f32 %v3527, %v3627
        %v3629 = vpop.f32.mrb[0].mxu0
        %v3630 = vpop.f32.mrb[0].mxu0
        %v3631 = vadd.f32 %v3527, %v3630
        %v3632 = vpop.f32.mrb[0].mxu0
        %3633 = vmatprep.mubr.bf16.mxu0 0
        %3634 = vmatmul.mubr.bf16.gmra.mrb[0].mxu0 %v3493
        %v3635 = vpop.f32.mrb[0].mxu0
        %v3636 = vadd.f32 %v3527, %v3635
        %v3637 = vpop.f32.mrb[0].mxu0
        %v3638 = vpop.f32.mrb[0].mxu0
        %v3639 = vadd.f32 %v3527, %v3638
        %v3640 = vpop.f32.mrb[0].mxu0
        %3641 = vmatprep.mubr.bf16.mxu0 0
        %3642 = vmatmul.mubr.bf16.gmra.mrb[0].mxu0 %v3494
        %v3643 = vpop.f32.mrb[0].mxu0
        %v3644 = vadd.f32 %v3527, %v3643
        %v3645 = vpop.f32.mrb[0].mxu0
        %v3646 = vpop.f32.mrb[0].mxu0
        %v3647 = vadd.f32 %v3527, %v3646
        %v3648 = vpop.f32.mrb[0].mxu0
        %3649 = vmatprep.mubr.bf16.mxu0 0
        %3650 = vmatmul.mubr.bf16.gmra.mrb[0].mxu0 %v3495
        %v3651 = vpop.f32.mrb[0].mxu0
        %v3652 = vadd.f32 %v3527, %v3651
        %v3653 = vpop.f32.mrb[0].mxu0
        %v3654 = vpop.f32.mrb[0].mxu0
        %v3655 = vadd.f32 %v3527, %v3654
        %v3656 = vpop.f32.mrb[0].mxu0
        %3657 = vmatprep.mubr.bf16.mxu0 0
        %3658 = vmatmul.mubr.bf16.gmra.mrb[0].mxu0 %v3496
        %v3659 = vpop.f32.mrb[0].mxu0
        %v3660 = vadd.f32 %v3527, %v3659
        %v3661 = vpop.f32.mrb[0].mxu0
        %v3662 = vpop.f32.mrb[0].mxu0
        %v3663 = vadd.f32 %v3527, %v3662
        %v3664 = vpop.f32.mrb[0].mxu0
        %3665 = vmatprep.mubr.bf16.mxu0 0
        %3666 = vmatmul.mubr.bf16.gmra.mrb[0].mxu0 %v3497
        %v3667 = vpop.f32.mrb[0].mxu0
        %v3668 = vadd.f32 %v3527, %v3667
        %v3669 = vpop.f32.mrb[0].mxu0
        %v3670 = vpop.f32.mrb[0].mxu0
        %v3671 = vadd.f32 %v3527, %v3670
        %v3672 = vpop.f32.mrb[0].mxu0
        %3673 = vmatprep.mubr.bf16.mxu0 0
        %3674 = vmatmul.mubr.bf16.gmra.mrb[0].mxu0 %v3498
        %v3675 = vpop.f32.mrb[0].mxu0
        %v3676 = vadd.f32 %v3527, %v3675
        %v3677 = vpop.f32.mrb[0].mxu0
        %v3678 = vpop.f32.mrb[0].mxu0
        %v3679 = vadd.f32 %v3527, %v3678
        %v3680 = vpop.f32.mrb[0].mxu0
        %3681 = vmatprep.mubr.bf16.mxu0 0
        %3682 = vmatmul.mubr.bf16.gmra.mrb[0].mxu0 %v3499
        %v3683 = vpop.f32.mrb[0].mxu0
        %v3684 = vadd.f32 %v3527, %v3683
        %v3685 = vpop.f32.mrb[0].mxu0
        %v3686 = vpop.f32.mrb[0].mxu0
        %v3687 = vadd.f32 %v3527, %v3686
        %v3688 = vpop.f32.mrb[0].mxu0
        %3689 = vmatprep.mubr.bf16.mxu0 0
        %3690 = vmatmul.mubr.bf16.gmra.mrb[0].mxu0 %v3500
        %v3691 = vpop.f32.mrb[0].mxu0
        %v3692 = vadd.f32 %v3527, %v3691
        %v3693 = vpop.f32.mrb[0].mxu0
        %v3694 = vpop.f32.mrb[0].mxu0
        %v3695 = vadd.f32 %v3527, %v3694
        %v3696 = vpop.f32.mrb[0].mxu0
        %3697 = vmatprep.mubr.bf16.mxu0 0
        %3698 = vmatmul.mubr.bf16.gmra.mrb[0].mxu0 %v3501
        %v3699 = vpop.f32.mrb[0].mxu0
        %v3700 = vadd.f32 %v3527, %v3699
        %v3701 = vpop.f32.mrb[0].mxu0
        %v3702 = vpop.f32.mrb[0].mxu0
        %v3703 = vadd.f32 %v3527, %v3702
        %v3704 = vpop.f32.mrb[0].mxu0
        %3705 = vmatprep.mubr.bf16.mxu0 0
        %3706 = vmatmul.mubr.bf16.gmra.mrb[0].mxu0 %v3502
        %v3707 = vpop.f32.mrb[0].mxu0
        %v3708 = vadd.f32 %v3527, %v3707
        %v3709 = vpop.f32.mrb[0].mxu0
        %v3710 = vpop.f32.mrb[0].mxu0
        %v3711 = vadd.f32 %v3527, %v3710
        %v3712 = vpop.f32.mrb[0].mxu0
        %3713 = vmatprep.mubr.bf16.mxu0 0
        %3714 = vmatmul.mubr.bf16.gmra.mrb[0].mxu0 %v3503
        %v3715 = vpop.f32.mrb[0].mxu0
        %v3716 = vadd.f32 %v3527, %v3715
        %v3717 = vpop.f32.mrb[0].mxu0
        %v3718 = vpop.f32.mrb[0].mxu0
        %v3719 = vadd.f32 %v3527, %v3718
        %v3720 = vpop.f32.mrb[0].mxu0
        %3721 = vmatprep.mubr.bf16.mxu0 0
        %3722 = vmatmul.mubr.bf16.gmra.mrb[0].mxu0 %v3504
        %v3723 = vpop.f32.mrb[0].mxu0
        %v3724 = vadd.f32 %v3527, %v3723
        %v3725 = vpop.f32.mrb[0].mxu0
        %v3726 = vpop.f32.mrb[0].mxu0
        %v3727 = vadd.f32 %v3527, %v3726
        %v3728 = vpop.f32.mrb[0].mxu0
        %3729 = vmatprep.mubr.bf16.mxu0 0
        %3730 = vmatmul.mubr.bf16.gmra.mrb[0].mxu0 %v3505
        %v3731 = vpop.f32.mrb[0].mxu0
        %v3732 = vadd.f32 %v3527, %v3731
        %v3733 = vpop.f32.mrb[0].mxu0
        %v3734 = vpop.f32.mrb[0].mxu0
        %v3735 = vadd.f32 %v3527, %v3734
        %v3736 = vpop.f32.mrb[0].mxu0
        %3737 = vdwg.mxu0
        %v3738 = vmul.f32 %v3612, 0.5
        %v3739 = vmul.f32 %v3615, 0.5
        %v3740 = vmul.f32 %v3620, 0.5
        %v3741 = vmul.f32 %v3623, 0.5
        %v3742 = vmul.f32 %v3628, 0.5
        %v3743 = vmul.f32 %v3631, 0.5
        %v3744 = vmul.f32 %v3636, 0.5
        %v3745 = vmul.f32 %v3639, 0.5
        %v3746 = vmul.f32 %v3644, 0.5
        %v3747 = vmul.f32 %v3647, 0.5
        %v3748 = vmul.f32 %v3652, 0.5
        %v3749 = vmul.f32 %v3655, 0.5
        %v3750 = vmul.f32 %v3660, 0.5
        %v3751 = vmul.f32 %v3663, 0.5
        %v3752 = vmul.f32 %v3668, 0.5
        %v3753 = vmul.f32 %v3671, 0.5
        %v3754 = vmul.f32 %v3676, 0.5
        %v3755 = vmul.f32 %v3679, 0.5
        %v3756 = vmul.f32 %v3684, 0.5
        %v3757 = vmul.f32 %v3687, 0.5
        %v3758 = vmul.f32 %v3692, 0.5
        %v3759 = vmul.f32 %v3695, 0.5
        %v3760 = vmul.f32 %v3700, 0.5
        %v3761 = vmul.f32 %v3703, 0.5
        %v3762 = vmul.f32 %v3708, 0.5
        %v3763 = vmul.f32 %v3711, 0.5
        %v3764 = vmul.f32 %v3716, 0.5
        %v3765 = vmul.f32 %v3719, 0.5
        %v3766 = vmul.f32 %v3724, 0.5
        %v3767 = vmul.f32 %v3727, 0.5
        %v3768 = vmul.f32 %v3732, 0.5
        %v3769 = vmul.f32 %v3735, 0.5
        %v3770 = vmul.f32 %v3612, 0.044715
        %v3771 = vmul.f32 %v3615, 0.044715
        %v3772 = vmul.f32 %v3620, 0.044715
        %v3773 = vmul.f32 %v3623, 0.044715
        %v3774 = vmul.f32 %v3628, 0.044715
        %v3775 = vmul.f32 %v3631, 0.044715
        %v3776 = vmul.f32 %v3636, 0.044715
        %v3777 = vmul.f32 %v3639, 0.044715
        %v3778 = vmul.f32 %v3644, 0.044715
        %v3779 = vmul.f32 %v3647, 0.044715
        %v3780 = vmul.f32 %v3652, 0.044715
        %v3781 = vmul.f32 %v3655, 0.044715
        %v3782 = vmul.f32 %v3660, 0.044715
        %v3783 = vmul.f32 %v3663, 0.044715
        %v3784 = vmul.f32 %v3668, 0.044715
        %v3785 = vmul.f32 %v3671, 0.044715
        %v3786 = vmul.f32 %v3676, 0.044715
        %v3787 = vmul.f32 %v3679, 0.044715
        %v3788 = vmul.f32 %v3684, 0.044715
        %v3789 = vmul.f32 %v3687, 0.044715
        %v3790 = vmul.f32 %v3692, 0.044715
        %v3791 = vmul.f32 %v3695, 0.044715
        %v3792 = vmul.f32 %v3700, 0.044715
        %v3793 = vmul.f32 %v3703, 0.044715
        %v3794 = vmul.f32 %v3708, 0.044715
        %v3795 = vmul.f32 %v3711, 0.044715
        %v3796 = vmul.f32 %v3716, 0.044715
        %v3797 = vmul.f32 %v3719, 0.044715
        %v3798 = vmul.f32 %v3724, 0.044715
        %v3799 = vmul.f32 %v3727, 0.044715
        %v3800 = vmul.f32 %v3732, 0.044715
        %v3801 = vmul.f32 %v3735, 0.044715
        %v3802 = vmul.f32 %v3770, %v3612
        %v3803 = vmul.f32 %v3771, %v3615
        %v3804 = vmul.f32 %v3772, %v3620
        %v3805 = vmul.f32 %v3773, %v3623
        %v3806 = vmul.f32 %v3774, %v3628
        %v3807 = vmul.f32 %v3775, %v3631
        %v3808 = vmul.f32 %v3776, %v3636
        %v3809 = vmul.f32 %v3777, %v3639
        %v3810 = vmul.f32 %v3778, %v3644
        %v3811 = vmul.f32 %v3779, %v3647
        %v3812 = vmul.f32 %v3780, %v3652
        %v3813 = vmul.f32 %v3781, %v3655
        %v3814 = vmul.f32 %v3782, %v3660
        %v3815 = vmul.f32 %v3783, %v3663
        %v3816 = vmul.f32 %v3784, %v3668
        %v3817 = vmul.f32 %v3785, %v3671
        %v3818 = vmul.f32 %v3786, %v3676
        %v3819 = vmul.f32 %v3787, %v3679
        %v3820 = vmul.f32 %v3788, %v3684
        %v3821 = vmul.f32 %v3789, %v3687
        %v3822 = vmul.f32 %v3790, %v3692
        %v3823 = vmul.f32 %v3791, %v3695
        %v3824 = vmul.f32 %v3792, %v3700
        %v3825 = vmul.f32 %v3793, %v3703
        %v3826 = vmul.f32 %v3794, %v3708
        %v3827 = vmul.f32 %v3795, %v3711
        %v3828 = vmul.f32 %v3796, %v3716
        %v3829 = vmul.f32 %v3797, %v3719
        %v3830 = vmul.f32 %v3798, %v3724
        %v3831 = vmul.f32 %v3799, %v3727
        %v3832 = vmul.f32 %v3800, %v3732
        %v3833 = vmul.f32 %v3801, %v3735
        %v3834 = vmul.f32 %v3802, %v3612
        %v3835 = vmul.f32 %v3803, %v3615
        %v3836 = vmul.f32 %v3804, %v3620
        %v3837 = vmul.f32 %v3805, %v3623
        %v3838 = vmul.f32 %v3806, %v3628
        %v3839 = vmul.f32 %v3807, %v3631
        %v3840 = vmul.f32 %v3808, %v3636
        %v3841 = vmul.f32 %v3809, %v3639
        %v3842 = vmul.f32 %v3810, %v3644
        %v3843 = vmul.f32 %v3811, %v3647
        %v3844 = vmul.f32 %v3812, %v3652
        %v3845 = vmul.f32 %v3813, %v3655
        %v3846 = vmul.f32 %v3814, %v3660
        %v3847 = vmul.f32 %v3815, %v3663
        %v3848 = vmul.f32 %v3816, %v3668
        %v3849 = vmul.f32 %v3817, %v3671
        %v3850 = vmul.f32 %v3818, %v3676
        %v3851 = vmul.f32 %v3819, %v3679
        %v3852 = vmul.f32 %v3820, %v3684
        %v3853 = vmul.f32 %v3821, %v3687
        %v3854 = vmul.f32 %v3822, %v3692
        %v3855 = vmul.f32 %v3823, %v3695
        %v3856 = vmul.f32 %v3824, %v3700
        %v3857 = vmul.f32 %v3825, %v3703
        %v3858 = vmul.f32 %v3826, %v3708
        %v3859 = vmul.f32 %v3827, %v3711
        %v3860 = vmul.f32 %v3828, %v3716
        %v3861 = vmul.f32 %v3829, %v3719
        %v3862 = vmul.f32 %v3830, %v3724
        %v3863 = vmul.f32 %v3831, %v3727
        %v3864 = vmul.f32 %v3832, %v3732
        %v3865 = vmul.f32 %v3833, %v3735
        %v3866 = vadd.f32 %v3612, %v3834
        %v3867 = vadd.f32 %v3615, %v3835
        %v3868 = vadd.f32 %v3620, %v3836
        %v3869 = vadd.f32 %v3623, %v3837
        %v3870 = vadd.f32 %v3628, %v3838
        %v3871 = vadd.f32 %v3631, %v3839
        %v3872 = vadd.f32 %v3636, %v3840
        %v3873 = vadd.f32 %v3639, %v3841
        %v3874 = vadd.f32 %v3644, %v3842
        %v3875 = vadd.f32 %v3647, %v3843
        %v3876 = vadd.f32 %v3652, %v3844
        %v3877 = vadd.f32 %v3655, %v3845
        %v3878 = vadd.f32 %v3660, %v3846
        %v3879 = vadd.f32 %v3663, %v3847
        %v3880 = vadd.f32 %v3668, %v3848
        %v3881 = vadd.f32 %v3671, %v3849
        %v3882 = vadd.f32 %v3676, %v3850
        %v3883 = vadd.f32 %v3679, %v3851
        %v3884 = vadd.f32 %v3684, %v3852
        %v3885 = vadd.f32 %v3687, %v3853
        %v3886 = vadd.f32 %v3692, %v3854
        %v3887 = vadd.f32 %v3695, %v3855
        %v3888 = vadd.f32 %v3700, %v3856
        %v3889 = vadd.f32 %v3703, %v3857
        %v3890 = vadd.f32 %v3708, %v3858
        %v3891 = vadd.f32 %v3711, %v3859
        %v3892 = vadd.f32 %v3716, %v3860
        %v3893 = vadd.f32 %v3719, %v3861
        %v3894 = vadd.f32 %v3724, %v3862
        %v3895 = vadd.f32 %v3727, %v3863
        %v3896 = vadd.f32 %v3732, %v3864
        %v3897 = vadd.f32 %v3735, %v3865
        %v3898 = vmul.f32 %v3866, 0.7978846
        %v3899 = vmul.f32 %v3867, 0.7978846
        %v3900 = vmul.f32 %v3868, 0.7978846
        %v3901 = vmul.f32 %v3869, 0.7978846
        %v3902 = vmul.f32 %v3870, 0.7978846
        %v3903 = vmul.f32 %v3871, 0.7978846
        %v3904 = vmul.f32 %v3872, 0.7978846
        %v3905 = vmul.f32 %v3873, 0.7978846
        %v3906 = vmul.f32 %v3874, 0.7978846
        %v3907 = vmul.f32 %v3875, 0.7978846
        %v3908 = vmul.f32 %v3876, 0.7978846
        %v3909 = vmul.f32 %v3877, 0.7978846
        %v3910 = vmul.f32 %v3878, 0.7978846
        %v3911 = vmul.f32 %v3879, 0.7978846
        %v3912 = vmul.f32 %v3880, 0.7978846
        %v3913 = vmul.f32 %v3881, 0.7978846
        %v3914 = vmul.f32 %v3882, 0.7978846
        %v3915 = vmul.f32 %v3883, 0.7978846
        %v3916 = vmul.f32 %v3884, 0.7978846
        %v3917 = vmul.f32 %v3885, 0.7978846
        %v3918 = vmul.f32 %v3886, 0.7978846
        %v3919 = vmul.f32 %v3887, 0.7978846
        %v3920 = vmul.f32 %v3888, 0.7978846
        %v3921 = vmul.f32 %v3889, 0.7978846
        %v3922 = vmul.f32 %v3890, 0.7978846
        %v3923 = vmul.f32 %v3891, 0.7978846
        %v3924 = vmul.f32 %v3892, 0.7978846
        %v3925 = vmul.f32 %v3893, 0.7978846
        %v3926 = vmul.f32 %v3894, 0.7978846
        %v3927 = vmul.f32 %v3895, 0.7978846
        %v3928 = vmul.f32 %v3896, 0.7978846
        %v3929 = vmul.f32 %v3897, 0.7978846
        %v3930 = vtanh.pop %v3898
        %v3931 = vtanh.pop %v3899
        %v3932 = vtanh.pop %v3900
        %v3933 = vtanh.pop %v3901
        %v3934 = vtanh.pop %v3902
        %v3935 = vtanh.pop %v3903
        %v3936 = vtanh.pop %v3904
        %v3937 = vtanh.pop %v3905
        %v3938 = vtanh.pop %v3906
        %v3939 = vtanh.pop %v3907
        %v3940 = vtanh.pop %v3908
        %v3941 = vtanh.pop %v3909
        %v3942 = vtanh.pop %v3910
        %v3943 = vtanh.pop %v3911
        %v3944 = vtanh.pop %v3912
        %v3945 = vtanh.pop %v3913
        %v3946 = vtanh.pop %v3914
        %v3947 = vtanh.pop %v3915
        %v3948 = vtanh.pop %v3916
        %v3949 = vtanh.pop %v3917
        %v3950 = vtanh.pop %v3918
        %v3951 = vtanh.pop %v3919
        %v3952 = vtanh.pop %v3920
        %v3953 = vtanh.pop %v3921
        %v3954 = vtanh.pop %v3922
        %v3955 = vtanh.pop %v3923
        %v3956 = vtanh.pop %v3924
        %v3957 = vtanh.pop %v3925
        %v3958 = vtanh.pop %v3926
        %v3959 = vtanh.pop %v3927
        %v3960 = vtanh.pop %v3928
        %v3961 = vtanh.pop %v3929
        %v3962 = vadd.f32 %v3930, 1.0
        %v3963 = vadd.f32 %v3931, 1.0
        %v3964 = vadd.f32 %v3932, 1.0
        %v3965 = vadd.f32 %v3933, 1.0
        %v3966 = vadd.f32 %v3934, 1.0
        %v3967 = vadd.f32 %v3935, 1.0
        %v3968 = vadd.f32 %v3936, 1.0
        %v3969 = vadd.f32 %v3937, 1.0
        %v3970 = vadd.f32 %v3938, 1.0
        %v3971 = vadd.f32 %v3939, 1.0
        %v3972 = vadd.f32 %v3940, 1.0
        %v3973 = vadd.f32 %v3941, 1.0
        %v3974 = vadd.f32 %v3942, 1.0
        %v3975 = vadd.f32 %v3943, 1.0
        %v3976 = vadd.f32 %v3944, 1.0
        %v3977 = vadd.f32 %v3945, 1.0
        %v3978 = vadd.f32 %v3946, 1.0
        %v3979 = vadd.f32 %v3947, 1.0
        %v3980 = vadd.f32 %v3948, 1.0
        %v3981 = vadd.f32 %v3949, 1.0
        %v3982 = vadd.f32 %v3950, 1.0
        %v3983 = vadd.f32 %v3951, 1.0
        %v3984 = vadd.f32 %v3952, 1.0
        %v3985 = vadd.f32 %v3953, 1.0
        %v3986 = vadd.f32 %v3954, 1.0
        %v3987 = vadd.f32 %v3955, 1.0
        %v3988 = vadd.f32 %v3956, 1.0
        %v3989 = vadd.f32 %v3957, 1.0
        %v3990 = vadd.f32 %v3958, 1.0
        %v3991 = vadd.f32 %v3959, 1.0
        %v3992 = vadd.f32 %v3960, 1.0
        %v3993 = vadd.f32 %v3961, 1.0
        %v3994 = vmul.f32 %v3738, %v3962
        %v3995 = vmul.f32 %v3739, %v3963
        %v3996 = vmul.f32 %v3740, %v3964
        %v3997 = vmul.f32 %v3741, %v3965
        %v3998 = vmul.f32 %v3742, %v3966
        %v3999 = vmul.f32 %v3743, %v3967
        %v4000 = vmul.f32 %v3744, %v3968
        %v4001 = vmul.f32 %v3745, %v3969
        %v4002 = vmul.f32 %v3746, %v3970
        %v4003 = vmul.f32 %v3747, %v3971
        %v4004 = vmul.f32 %v3748, %v3972
        %v4005 = vmul.f32 %v3749, %v3973
        %v4006 = vmul.f32 %v3750, %v3974
        %v4007 = vmul.f32 %v3751, %v3975
        %v4008 = vmul.f32 %v3752, %v3976
        %v4009 = vmul.f32 %v3753, %v3977
        %v4010 = vmul.f32 %v3754, %v3978
        %v4011 = vmul.f32 %v3755, %v3979
        %v4012 = vmul.f32 %v3756, %v3980
        %v4013 = vmul.f32 %v3757, %v3981
        %v4014 = vmul.f32 %v3758, %v3982
        %v4015 = vmul.f32 %v3759, %v3983
        %v4016 = vmul.f32 %v3760, %v3984
        %v4017 = vmul.f32 %v3761, %v3985
        %v4018 = vmul.f32 %v3762, %v3986
        %v4019 = vmul.f32 %v3763, %v3987
        %v4020 = vmul.f32 %v3764, %v3988
        %v4021 = vmul.f32 %v3765, %v3989
        %v4022 = vmul.f32 %v3766, %v3990
        %v4023 = vmul.f32 %v3767, %v3991
        %v4024 = vmul.f32 %v3768, %v3992
        %v4025 = vmul.f32 %v3769, %v3993
        %v4026 = vpack.c.bf16 %v3995, %v3994
        %v4027 = vpack.c.bf16 %v3997, %v3996
        %v4028 = vpack.c.bf16 %v3999, %v3998
        %v4029 = vpack.c.bf16 %v4001, %v4000
        %v4030 = vpack.c.bf16 %v4003, %v4002
        %v4031 = vpack.c.bf16 %v4005, %v4004
        %v4032 = vpack.c.bf16 %v4007, %v4006
        %v4033 = vpack.c.bf16 %v4009, %v4008
        %v4034 = vpack.c.bf16 %v4011, %v4010
        %v4035 = vpack.c.bf16 %v4013, %v4012
        %v4036 = vpack.c.bf16 %v4015, %v4014
        %v4037 = vpack.c.bf16 %v4017, %v4016
        %v4038 = vpack.c.bf16 %v4019, %v4018
        %v4039 = vpack.c.bf16 %v4021, %v4020
        %v4040 = vpack.c.bf16 %v4023, %v4022
        %v4041 = vpack.c.bf16 %v4025, %v4024
        %v4042 = vld [vmem:[#allocation23] sm:$0xf]
        %v4043 = vld [vmem:[#allocation23 + $0x4] sm:$0xf]
        %v4044 = vld [vmem:[#allocation23 + $0x8] sm:$0xf]
        %v4045 = vld [vmem:[#allocation23 + $0xc] sm:$0xf]
        %v4046 = vld [vmem:[#allocation23 + $0x10] sm:$0xf]
        %v4047 = vld [vmem:[#allocation23 + $0x14] sm:$0xf]
        %v4048 = vld [vmem:[#allocation23 + $0x18] sm:$0xf]
        %v4049 = vld [vmem:[#allocation23 + $0x1c] sm:$0xf]
        %v4050 = vld [vmem:[#allocation23 + $0x20] sm:$0xf]
        %v4051 = vld [vmem:[#allocation23 + $0x24] sm:$0xf]
        %v4052 = vld [vmem:[#allocation23 + $0x28] sm:$0xf]
        %v4053 = vld [vmem:[#allocation23 + $0x2c] sm:$0xf]
        %v4054 = vld [vmem:[#allocation23 + $0x30] sm:$0xf]
        %v4055 = vld [vmem:[#allocation23 + $0x34] sm:$0xf]
        %v4056 = vld [vmem:[#allocation23 + $0x38] sm:$0xf]
        %v4057 = vld [vmem:[#allocation23 + $0x3c] sm:$0xf]
        %v4058 = vld [vmem:[#allocation25] sm:$0x1]
        %v4060 = vlaneseq
        %v4061 = vshrl.u32 %v4060, 7
        %v4062 = vsub.s32 0, %v4061
        %v4063 = vrot.slane %v4058, %v4062
        %v4081 = vunpack.c.l.b16 %v4042
        %v4082 = vunpack.c.l.b16 %v4043
        %v4083 = vunpack.c.l.b16 %v4044
        %v4084 = vunpack.c.l.b16 %v4045
        %v4085 = vunpack.c.l.b16 %v4046
        %v4086 = vunpack.c.l.b16 %v4047
        %v4087 = vunpack.c.l.b16 %v4048
        %v4088 = vunpack.c.l.b16 %v4049
        %v4089 = vunpack.c.l.b16 %v4050
        %v4090 = vunpack.c.l.b16 %v4051
        %v4091 = vunpack.c.l.b16 %v4052
        %v4092 = vunpack.c.l.b16 %v4053
        %v4093 = vunpack.c.l.b16 %v4054
        %v4094 = vunpack.c.l.b16 %v4055
        %v4095 = vunpack.c.l.b16 %v4056
        %v4096 = vunpack.c.l.b16 %v4057
        %v4097 = vpack.c.b16 %v4082, %v4081
        %v4098 = vpack.c.b16 %v4084, %v4083
        %v4099 = vpack.c.b16 %v4086, %v4085
        %v4100 = vpack.c.b16 %v4088, %v4087
        %v4101 = vpack.c.b16 %v4090, %v4089
        %v4102 = vpack.c.b16 %v4092, %v4091
        %v4103 = vpack.c.b16 %v4094, %v4093
        %v4104 = vpack.c.b16 %v4096, %v4095
        %4113 = vmatprep.subr.bf16.mxu0 0
        %4114 = vmatpush1.bf16.msra.mxu0 %v4097
        %4115 = vmatprep.subr.bf16.mxu0 0
        %4116 = vmatpush1.bf16.msra.mxu0 %v4098
        %4117 = vmatprep.subr.bf16.mxu0 0
        %4118 = vmatpush1.bf16.msra.mxu0 %v4099
        %4119 = vmatprep.subr.bf16.mxu0 0
        %4120 = vmatpush1.bf16.msra.mxu0 %v4100
        %4121 = vmatprep.subr.bf16.mxu0 0
        %4122 = vmatpush1.bf16.msra.mxu0 %v4101
        %4123 = vmatprep.subr.bf16.mxu0 0
        %4124 = vmatpush1.bf16.msra.mxu0 %v4102
        %4125 = vmatprep.subr.bf16.mxu0 0
        %4126 = vmatpush1.bf16.msra.mxu0 %v4103
        %4127 = vmatprep.subr.bf16.mxu0 0
        %4128 = vmatpush1.bf16.msra.mxu0 %v4104
        %4129 = vmatprep.subr.bf16.mxu0 0
        %4130 = vmatpush1.bf16.msra.mxu0 0
        %4131 = vmatprep.subr.bf16.mxu0 0
        %4132 = vmatpush1.bf16.msra.mxu0 0
        %4133 = vmatprep.subr.bf16.mxu0 0
        %4134 = vmatpush1.bf16.msra.mxu0 0
        %4135 = vmatprep.subr.bf16.mxu0 0
        %4136 = vmatpush1.bf16.msra.mxu0 0
        %4137 = vmatprep.subr.bf16.mxu0 0
        %4138 = vmatpush1.bf16.msra.mxu0 0
        %4139 = vmatprep.subr.bf16.mxu0 0
        %4140 = vmatpush1.bf16.msra.mxu0 0
        %4141 = vmatprep.subr.bf16.mxu0 0
        %4142 = vmatpush1.bf16.msra.mxu0 0
        %4143 = vmatprep.subr.bf16.mxu0 0
        %4144 = vmatpush1.bf16.msra.mxu0 0
        %4145 = vmatprep.mubr.bf16.mxu0 0
        %4146 = vmatmul.mubr.bf16.gmra.mrb[0].mxu0 %v4026
        %v4147 = vpop.f32.mrb[0].mxu0
        %v4148 = vadd.f32 %v4063, %v4147
        %v4149 = vpop.f32.mrb[0].mxu0
        %v4150 = vpop.f32.mrb[0].mxu0
        %v4151 = vadd.f32 %v4063, %v4150
        %v4152 = vpop.f32.mrb[0].mxu0
        %4153 = vmatprep.mubr.bf16.mxu0 0
        %4154 = vmatmul.mubr.bf16.gmra.mrb[0].mxu0 %v4027
        %v4155 = vpop.f32.mrb[0].mxu0
        %v4156 = vadd.f32 %v4063, %v4155
        %v4157 = vpop.f32.mrb[0].mxu0
        %v4158 = vpop.f32.mrb[0].mxu0
        %v4159 = vadd.f32 %v4063, %v4158
        %v4160 = vpop.f32.mrb[0].mxu0
        %4161 = vmatprep.mubr.bf16.mxu0 0
        %4162 = vmatmul.mubr.bf16.gmra.mrb[0].mxu0 %v4028
        %v4163 = vpop.f32.mrb[0].mxu0
        %v4164 = vadd.f32 %v4063, %v4163
        %v4165 = vpop.f32.mrb[0].mxu0
        %v4166 = vpop.f32.mrb[0].mxu0
        %v4167 = vadd.f32 %v4063, %v4166
        %v4168 = vpop.f32.mrb[0].mxu0
        %4169 = vmatprep.mubr.bf16.mxu0 0
        %4170 = vmatmul.mubr.bf16.gmra.mrb[0].mxu0 %v4029
        %v4171 = vpop.f32.mrb[0].mxu0
        %v4172 = vadd.f32 %v4063, %v4171
        %v4173 = vpop.f32.mrb[0].mxu0
        %v4174 = vpop.f32.mrb[0].mxu0
        %v4175 = vadd.f32 %v4063, %v4174
        %v4176 = vpop.f32.mrb[0].mxu0
        %4177 = vmatprep.mubr.bf16.mxu0 0
        %4178 = vmatmul.mubr.bf16.gmra.mrb[0].mxu0 %v4030
        %v4179 = vpop.f32.mrb[0].mxu0
        %v4180 = vadd.f32 %v4063, %v4179
        %v4181 = vpop.f32.mrb[0].mxu0
        %v4182 = vpop.f32.mrb[0].mxu0
        %v4183 = vadd.f32 %v4063, %v4182
        %v4184 = vpop.f32.mrb[0].mxu0
        %4185 = vmatprep.mubr.bf16.mxu0 0
        %4186 = vmatmul.mubr.bf16.gmra.mrb[0].mxu0 %v4031
        %v4187 = vpop.f32.mrb[0].mxu0
        %v4188 = vadd.f32 %v4063, %v4187
        %v4189 = vpop.f32.mrb[0].mxu0
        %v4190 = vpop.f32.mrb[0].mxu0
        %v4191 = vadd.f32 %v4063, %v4190
        %v4192 = vpop.f32.mrb[0].mxu0
        %4193 = vmatprep.mubr.bf16.mxu0 0
        %4194 = vmatmul.mubr.bf16.gmra.mrb[0].mxu0 %v4032
        %v4195 = vpop.f32.mrb[0].mxu0
        %v4196 = vadd.f32 %v4063, %v4195
        %v4197 = vpop.f32.mrb[0].mxu0
        %v4198 = vpop.f32.mrb[0].mxu0
        %v4199 = vadd.f32 %v4063, %v4198
        %v4200 = vpop.f32.mrb[0].mxu0
        %4201 = vmatprep.mubr.bf16.mxu0 0
        %4202 = vmatmul.mubr.bf16.gmra.mrb[0].mxu0 %v4033
        %v4203 = vpop.f32.mrb[0].mxu0
        %v4204 = vadd.f32 %v4063, %v4203
        %v4205 = vpop.f32.mrb[0].mxu0
        %v4206 = vpop.f32.mrb[0].mxu0
        %v4207 = vadd.f32 %v4063, %v4206
        %v4208 = vpop.f32.mrb[0].mxu0
        %4209 = vmatprep.mubr.bf16.mxu0 0
        %4210 = vmatmul.mubr.bf16.gmra.mrb[0].mxu0 %v4034
        %v4211 = vpop.f32.mrb[0].mxu0
        %v4212 = vadd.f32 %v4063, %v4211
        %v4213 = vpop.f32.mrb[0].mxu0
        %v4214 = vpop.f32.mrb[0].mxu0
        %v4215 = vadd.f32 %v4063, %v4214
        %v4216 = vpop.f32.mrb[0].mxu0
        %4217 = vmatprep.mubr.bf16.mxu0 0
        %4218 = vmatmul.mubr.bf16.gmra.mrb[0].mxu0 %v4035
        %v4219 = vpop.f32.mrb[0].mxu0
        %v4220 = vadd.f32 %v4063, %v4219
        %v4221 = vpop.f32.mrb[0].mxu0
        %v4222 = vpop.f32.mrb[0].mxu0
        %v4223 = vadd.f32 %v4063, %v4222
        %v4224 = vpop.f32.mrb[0].mxu0
        %4225 = vmatprep.mubr.bf16.mxu0 0
        %4226 = vmatmul.mubr.bf16.gmra.mrb[0].mxu0 %v4036
        %v4227 = vpop.f32.mrb[0].mxu0
        %v4228 = vadd.f32 %v4063, %v4227
        %v4229 = vpop.f32.mrb[0].mxu0
        %v4230 = vpop.f32.mrb[0].mxu0
        %v4231 = vadd.f32 %v4063, %v4230
        %v4232 = vpop.f32.mrb[0].mxu0
        %4233 = vmatprep.mubr.bf16.mxu0 0
        %4234 = vmatmul.mubr.bf16.gmra.mrb[0].mxu0 %v4037
        %v4235 = vpop.f32.mrb[0].mxu0
        %v4236 = vadd.f32 %v4063, %v4235
        %v4237 = vpop.f32.mrb[0].mxu0
        %v4238 = vpop.f32.mrb[0].mxu0
        %v4239 = vadd.f32 %v4063, %v4238
        %v4240 = vpop.f32.mrb[0].mxu0
        %4241 = vmatprep.mubr.bf16.mxu0 0
        %4242 = vmatmul.mubr.bf16.gmra.mrb[0].mxu0 %v4038
        %v4243 = vpop.f32.mrb[0].mxu0
        %v4244 = vadd.f32 %v4063, %v4243
        %v4245 = vpop.f32.mrb[0].mxu0
        %v4246 = vpop.f32.mrb[0].mxu0
        %v4247 = vadd.f32 %v4063, %v4246
        %v4248 = vpop.f32.mrb[0].mxu0
        %4249 = vmatprep.mubr.bf16.mxu0 0
        %4250 = vmatmul.mubr.bf16.gmra.mrb[0].mxu0 %v4039
        %v4251 = vpop.f32.mrb[0].mxu0
        %v4252 = vadd.f32 %v4063, %v4251
        %v4253 = vpop.f32.mrb[0].mxu0
        %v4254 = vpop.f32.mrb[0].mxu0
        %v4255 = vadd.f32 %v4063, %v4254
        %v4256 = vpop.f32.mrb[0].mxu0
        %4257 = vmatprep.mubr.bf16.mxu0 0
        %4258 = vmatmul.mubr.bf16.gmra.mrb[0].mxu0 %v4040
        %v4259 = vpop.f32.mrb[0].mxu0
        %v4260 = vadd.f32 %v4063, %v4259
        %v4261 = vpop.f32.mrb[0].mxu0
        %v4262 = vpop.f32.mrb[0].mxu0
        %v4263 = vadd.f32 %v4063, %v4262
        %v4264 = vpop.f32.mrb[0].mxu0
        %4265 = vmatprep.mubr.bf16.mxu0 0
        %4266 = vmatmul.mubr.bf16.gmra.mrb[0].mxu0 %v4041
        %v4267 = vpop.f32.mrb[0].mxu0
        %v4268 = vadd.f32 %v4063, %v4267
        %v4269 = vpop.f32.mrb[0].mxu0
        %v4270 = vpop.f32.mrb[0].mxu0
        %v4271 = vadd.f32 %v4063, %v4270
        %v4272 = vpop.f32.mrb[0].mxu0
        %4273 = vdwg.mxu0
        %v4274 = vmul.f32 %v4148, 0.5
        %v4275 = vmul.f32 %v4151, 0.5
        %v4276 = vmul.f32 %v4156, 0.5
        %v4277 = vmul.f32 %v4159, 0.5
        %v4278 = vmul.f32 %v4164, 0.5
        %v4279 = vmul.f32 %v4167, 0.5
        %v4280 = vmul.f32 %v4172, 0.5
        %v4281 = vmul.f32 %v4175, 0.5
        %v4282 = vmul.f32 %v4180, 0.5
        %v4283 = vmul.f32 %v4183, 0.5
        %v4284 = vmul.f32 %v4188, 0.5
        %v4285 = vmul.f32 %v4191, 0.5
        %v4286 = vmul.f32 %v4196, 0.5
        %v4287 = vmul.f32 %v4199, 0.5
        %v4288 = vmul.f32 %v4204, 0.5
        %v4289 = vmul.f32 %v4207, 0.5
        %v4290 = vmul.f32 %v4212, 0.5
        %v4291 = vmul.f32 %v4215, 0.5
        %v4292 = vmul.f32 %v4220, 0.5
        %v4293 = vmul.f32 %v4223, 0.5
        %v4294 = vmul.f32 %v4228, 0.5
        %v4295 = vmul.f32 %v4231, 0.5
        %v4296 = vmul.f32 %v4236, 0.5
        %v4297 = vmul.f32 %v4239, 0.5
        %v4298 = vmul.f32 %v4244, 0.5
        %v4299 = vmul.f32 %v4247, 0.5
        %v4300 = vmul.f32 %v4252, 0.5
        %v4301 = vmul.f32 %v4255, 0.5
        %v4302 = vmul.f32 %v4260, 0.5
        %v4303 = vmul.f32 %v4263, 0.5
        %v4304 = vmul.f32 %v4268, 0.5
        %v4305 = vmul.f32 %v4271, 0.5
        %v4306 = vmul.f32 %v4148, 0.044715
        %v4307 = vmul.f32 %v4151, 0.044715
        %v4308 = vmul.f32 %v4156, 0.044715
        %v4309 = vmul.f32 %v4159, 0.044715
        %v4310 = vmul.f32 %v4164, 0.044715
        %v4311 = vmul.f32 %v4167, 0.044715
        %v4312 = vmul.f32 %v4172, 0.044715
        %v4313 = vmul.f32 %v4175, 0.044715
        %v4314 = vmul.f32 %v4180, 0.044715
        %v4315 = vmul.f32 %v4183, 0.044715
        %v4316 = vmul.f32 %v4188, 0.044715
        %v4317 = vmul.f32 %v4191, 0.044715
        %v4318 = vmul.f32 %v4196, 0.044715
        %v4319 = vmul.f32 %v4199, 0.044715
        %v4320 = vmul.f32 %v4204, 0.044715
        %v4321 = vmul.f32 %v4207, 0.044715
        %v4322 = vmul.f32 %v4212, 0.044715
        %v4323 = vmul.f32 %v4215, 0.044715
        %v4324 = vmul.f32 %v4220, 0.044715
        %v4325 = vmul.f32 %v4223, 0.044715
        %v4326 = vmul.f32 %v4228, 0.044715
        %v4327 = vmul.f32 %v4231, 0.044715
        %v4328 = vmul.f32 %v4236, 0.044715
        %v4329 = vmul.f32 %v4239, 0.044715
        %v4330 = vmul.f32 %v4244, 0.044715
        %v4331 = vmul.f32 %v4247, 0.044715
        %v4332 = vmul.f32 %v4252, 0.044715
        %v4333 = vmul.f32 %v4255, 0.044715
        %v4334 = vmul.f32 %v4260, 0.044715
        %v4335 = vmul.f32 %v4263, 0.044715
        %v4336 = vmul.f32 %v4268, 0.044715
        %v4337 = vmul.f32 %v4271, 0.044715
        %v4338 = vmul.f32 %v4306, %v4148
        %v4339 = vmul.f32 %v4307, %v4151
        %v4340 = vmul.f32 %v4308, %v4156
        %v4341 = vmul.f32 %v4309, %v4159
        %v4342 = vmul.f32 %v4310, %v4164
        %v4343 = vmul.f32 %v4311, %v4167
        %v4344 = vmul.f32 %v4312, %v4172
        %v4345 = vmul.f32 %v4313, %v4175
        %v4346 = vmul.f32 %v4314, %v4180
        %v4347 = vmul.f32 %v4315, %v4183
        %v4348 = vmul.f32 %v4316, %v4188
        %v4349 = vmul.f32 %v4317, %v4191
        %v4350 = vmul.f32 %v4318, %v4196
        %v4351 = vmul.f32 %v4319, %v4199
        %v4352 = vmul.f32 %v4320, %v4204
        %v4353 = vmul.f32 %v4321, %v4207
        %v4354 = vmul.f32 %v4322, %v4212
        %v4355 = vmul.f32 %v4323, %v4215
        %v4356 = vmul.f32 %v4324, %v4220
        %v4357 = vmul.f32 %v4325, %v4223
        %v4358 = vmul.f32 %v4326, %v4228
        %v4359 = vmul.f32 %v4327, %v4231
        %v4360 = vmul.f32 %v4328, %v4236
        %v4361 = vmul.f32 %v4329, %v4239
        %v4362 = vmul.f32 %v4330, %v4244
        %v4363 = vmul.f32 %v4331, %v4247
        %v4364 = vmul.f32 %v4332, %v4252
        %v4365 = vmul.f32 %v4333, %v4255
        %v4366 = vmul.f32 %v4334, %v4260
        %v4367 = vmul.f32 %v4335, %v4263
        %v4368 = vmul.f32 %v4336, %v4268
        %v4369 = vmul.f32 %v4337, %v4271
        %v4370 = vmul.f32 %v4338, %v4148
        %v4371 = vmul.f32 %v4339, %v4151
        %v4372 = vmul.f32 %v4340, %v4156
        %v4373 = vmul.f32 %v4341, %v4159
        %v4374 = vmul.f32 %v4342, %v4164
        %v4375 = vmul.f32 %v4343, %v4167
        %v4376 = vmul.f32 %v4344, %v4172
        %v4377 = vmul.f32 %v4345, %v4175
        %v4378 = vmul.f32 %v4346, %v4180
        %v4379 = vmul.f32 %v4347, %v4183
        %v4380 = vmul.f32 %v4348, %v4188
        %v4381 = vmul.f32 %v4349, %v4191
        %v4382 = vmul.f32 %v4350, %v4196
        %v4383 = vmul.f32 %v4351, %v4199
        %v4384 = vmul.f32 %v4352, %v4204
        %v4385 = vmul.f32 %v4353, %v4207
        %v4386 = vmul.f32 %v4354, %v4212
        %v4387 = vmul.f32 %v4355, %v4215
        %v4388 = vmul.f32 %v4356, %v4220
        %v4389 = vmul.f32 %v4357, %v4223
        %v4390 = vmul.f32 %v4358, %v4228
        %v4391 = vmul.f32 %v4359, %v4231
        %v4392 = vmul.f32 %v4360, %v4236
        %v4393 = vmul.f32 %v4361, %v4239
        %v4394 = vmul.f32 %v4362, %v4244
        %v4395 = vmul.f32 %v4363, %v4247
        %v4396 = vmul.f32 %v4364, %v4252
        %v4397 = vmul.f32 %v4365, %v4255
        %v4398 = vmul.f32 %v4366, %v4260
        %v4399 = vmul.f32 %v4367, %v4263
        %v4400 = vmul.f32 %v4368, %v4268
        %v4401 = vmul.f32 %v4369, %v4271
        %v4402 = vadd.f32 %v4148, %v4370
        %v4403 = vadd.f32 %v4151, %v4371
        %v4404 = vadd.f32 %v4156, %v4372
        %v4405 = vadd.f32 %v4159, %v4373
        %v4406 = vadd.f32 %v4164, %v4374
        %v4407 = vadd.f32 %v4167, %v4375
        %v4408 = vadd.f32 %v4172, %v4376
        %v4409 = vadd.f32 %v4175, %v4377
        %v4410 = vadd.f32 %v4180, %v4378
        %v4411 = vadd.f32 %v4183, %v4379
        %v4412 = vadd.f32 %v4188, %v4380
        %v4413 = vadd.f32 %v4191, %v4381
        %v4414 = vadd.f32 %v4196, %v4382
        %v4415 = vadd.f32 %v4199, %v4383
        %v4416 = vadd.f32 %v4204, %v4384
        %v4417 = vadd.f32 %v4207, %v4385
        %v4418 = vadd.f32 %v4212, %v4386
        %v4419 = vadd.f32 %v4215, %v4387
        %v4420 = vadd.f32 %v4220, %v4388
        %v4421 = vadd.f32 %v4223, %v4389
        %v4422 = vadd.f32 %v4228, %v4390
        %v4423 = vadd.f32 %v4231, %v4391
        %v4424 = vadd.f32 %v4236, %v4392
        %v4425 = vadd.f32 %v4239, %v4393
        %v4426 = vadd.f32 %v4244, %v4394
        %v4427 = vadd.f32 %v4247, %v4395
        %v4428 = vadd.f32 %v4252, %v4396
        %v4429 = vadd.f32 %v4255, %v4397
        %v4430 = vadd.f32 %v4260, %v4398
        %v4431 = vadd.f32 %v4263, %v4399
        %v4432 = vadd.f32 %v4268, %v4400
        %v4433 = vadd.f32 %v4271, %v4401
        %v4434 = vmul.f32 %v4402, 0.7978846
        %v4435 = vmul.f32 %v4403, 0.7978846
        %v4436 = vmul.f32 %v4404, 0.7978846
        %v4437 = vmul.f32 %v4405, 0.7978846
        %v4438 = vmul.f32 %v4406, 0.7978846
        %v4439 = vmul.f32 %v4407, 0.7978846
        %v4440 = vmul.f32 %v4408, 0.7978846
        %v4441 = vmul.f32 %v4409, 0.7978846
        %v4442 = vmul.f32 %v4410, 0.7978846
        %v4443 = vmul.f32 %v4411, 0.7978846
        %v4444 = vmul.f32 %v4412, 0.7978846
        %v4445 = vmul.f32 %v4413, 0.7978846
        %v4446 = vmul.f32 %v4414, 0.7978846
        %v4447 = vmul.f32 %v4415, 0.7978846
        %v4448 = vmul.f32 %v4416, 0.7978846
        %v4449 = vmul.f32 %v4417, 0.7978846
        %v4450 = vmul.f32 %v4418, 0.7978846
        %v4451 = vmul.f32 %v4419, 0.7978846
        %v4452 = vmul.f32 %v4420, 0.7978846
        %v4453 = vmul.f32 %v4421, 0.7978846
        %v4454 = vmul.f32 %v4422, 0.7978846
        %v4455 = vmul.f32 %v4423, 0.7978846
        %v4456 = vmul.f32 %v4424, 0.7978846
        %v4457 = vmul.f32 %v4425, 0.7978846
        %v4458 = vmul.f32 %v4426, 0.7978846
        %v4459 = vmul.f32 %v4427, 0.7978846
        %v4460 = vmul.f32 %v4428, 0.7978846
        %v4461 = vmul.f32 %v4429, 0.7978846
        %v4462 = vmul.f32 %v4430, 0.7978846
        %v4463 = vmul.f32 %v4431, 0.7978846
        %v4464 = vmul.f32 %v4432, 0.7978846
        %v4465 = vmul.f32 %v4433, 0.7978846
        %v4466 = vtanh.pop %v4434
        %v4467 = vtanh.pop %v4435
        %v4468 = vtanh.pop %v4436
        %v4469 = vtanh.pop %v4437
        %v4470 = vtanh.pop %v4438
        %v4471 = vtanh.pop %v4439
        %v4472 = vtanh.pop %v4440
        %v4473 = vtanh.pop %v4441
        %v4474 = vtanh.pop %v4442
        %v4475 = vtanh.pop %v4443
        %v4476 = vtanh.pop %v4444
        %v4477 = vtanh.pop %v4445
        %v4478 = vtanh.pop %v4446
        %v4479 = vtanh.pop %v4447
        %v4480 = vtanh.pop %v4448
        %v4481 = vtanh.pop %v4449
        %v4482 = vtanh.pop %v4450
        %v4483 = vtanh.pop %v4451
        %v4484 = vtanh.pop %v4452
        %v4485 = vtanh.pop %v4453
        %v4486 = vtanh.pop %v4454
        %v4487 = vtanh.pop %v4455
        %v4488 = vtanh.pop %v4456
        %v4489 = vtanh.pop %v4457
        %v4490 = vtanh.pop %v4458
        %v4491 = vtanh.pop %v4459
        %v4492 = vtanh.pop %v4460
        %v4493 = vtanh.pop %v4461
        %v4494 = vtanh.pop %v4462
        %v4495 = vtanh.pop %v4463
        %v4496 = vtanh.pop %v4464
        %v4497 = vtanh.pop %v4465
        %v4498 = vadd.f32 %v4466, 1.0
        %v4499 = vadd.f32 %v4467, 1.0
        %v4500 = vadd.f32 %v4468, 1.0
        %v4501 = vadd.f32 %v4469, 1.0
        %v4502 = vadd.f32 %v4470, 1.0
        %v4503 = vadd.f32 %v4471, 1.0
        %v4504 = vadd.f32 %v4472, 1.0
        %v4505 = vadd.f32 %v4473, 1.0
        %v4506 = vadd.f32 %v4474, 1.0
        %v4507 = vadd.f32 %v4475, 1.0
        %v4508 = vadd.f32 %v4476, 1.0
        %v4509 = vadd.f32 %v4477, 1.0
        %v4510 = vadd.f32 %v4478, 1.0
        %v4511 = vadd.f32 %v4479, 1.0
        %v4512 = vadd.f32 %v4480, 1.0
        %v4513 = vadd.f32 %v4481, 1.0
        %v4514 = vadd.f32 %v4482, 1.0
        %v4515 = vadd.f32 %v4483, 1.0
        %v4516 = vadd.f32 %v4484, 1.0
        %v4517 = vadd.f32 %v4485, 1.0
        %v4518 = vadd.f32 %v4486, 1.0
        %v4519 = vadd.f32 %v4487, 1.0
        %v4520 = vadd.f32 %v4488, 1.0
        %v4521 = vadd.f32 %v4489, 1.0
        %v4522 = vadd.f32 %v4490, 1.0
        %v4523 = vadd.f32 %v4491, 1.0
        %v4524 = vadd.f32 %v4492, 1.0
        %v4525 = vadd.f32 %v4493, 1.0
        %v4526 = vadd.f32 %v4494, 1.0
        %v4527 = vadd.f32 %v4495, 1.0
        %v4528 = vadd.f32 %v4496, 1.0
        %v4529 = vadd.f32 %v4497, 1.0
        %v4530 = vmul.f32 %v4274, %v4498
        %v4531 = vmul.f32 %v4275, %v4499
        %v4532 = vmul.f32 %v4276, %v4500
        %v4533 = vmul.f32 %v4277, %v4501
        %v4534 = vmul.f32 %v4278, %v4502
        %v4535 = vmul.f32 %v4279, %v4503
        %v4536 = vmul.f32 %v4280, %v4504
        %v4537 = vmul.f32 %v4281, %v4505
        %v4538 = vmul.f32 %v4282, %v4506
        %v4539 = vmul.f32 %v4283, %v4507
        %v4540 = vmul.f32 %v4284, %v4508
        %v4541 = vmul.f32 %v4285, %v4509
        %v4542 = vmul.f32 %v4286, %v4510
        %v4543 = vmul.f32 %v4287, %v4511
        %v4544 = vmul.f32 %v4288, %v4512
        %v4545 = vmul.f32 %v4289, %v4513
        %v4546 = vmul.f32 %v4290, %v4514
        %v4547 = vmul.f32 %v4291, %v4515
        %v4548 = vmul.f32 %v4292, %v4516
        %v4549 = vmul.f32 %v4293, %v4517
        %v4550 = vmul.f32 %v4294, %v4518
        %v4551 = vmul.f32 %v4295, %v4519
        %v4552 = vmul.f32 %v4296, %v4520
        %v4553 = vmul.f32 %v4297, %v4521
        %v4554 = vmul.f32 %v4298, %v4522
        %v4555 = vmul.f32 %v4299, %v4523
        %v4556 = vmul.f32 %v4300, %v4524
        %v4557 = vmul.f32 %v4301, %v4525
        %v4558 = vmul.f32 %v4302, %v4526
        %v4559 = vmul.f32 %v4303, %v4527
        %v4560 = vmul.f32 %v4304, %v4528
        %v4561 = vmul.f32 %v4305, %v4529
        %v4562 = vpack.c.bf16 %v4531, %v4530
        %v4563 = vpack.c.bf16 %v4533, %v4532
        %v4564 = vpack.c.bf16 %v4535, %v4534
        %v4565 = vpack.c.bf16 %v4537, %v4536
        %v4566 = vpack.c.bf16 %v4539, %v4538
        %v4567 = vpack.c.bf16 %v4541, %v4540
        %v4568 = vpack.c.bf16 %v4543, %v4542
        %v4569 = vpack.c.bf16 %v4545, %v4544
        %v4570 = vpack.c.bf16 %v4547, %v4546
        %v4571 = vpack.c.bf16 %v4549, %v4548
        %v4572 = vpack.c.bf16 %v4551, %v4550
        %v4573 = vpack.c.bf16 %v4553, %v4552
        %v4574 = vpack.c.bf16 %v4555, %v4554
        %v4575 = vpack.c.bf16 %v4557, %v4556
        %v4576 = vpack.c.bf16 %v4559, %v4558
        %v4577 = vpack.c.bf16 %v4561, %v4560
        %v4578 = vld [vmem:[#allocation26] sm:$0xff]
        %v4579 = vld [vmem:[#allocation26 + $0x8] sm:$0xff]
        %v4580 = vld [vmem:[#allocation26 + $0x10] sm:$0xff]
        %v4581 = vld [vmem:[#allocation26 + $0x18] sm:$0xff]
        %v4582 = vld [vmem:[#allocation26 + $0x20] sm:$0xff]
        %v4583 = vld [vmem:[#allocation26 + $0x28] sm:$0xff]
        %v4584 = vld [vmem:[#allocation26 + $0x30] sm:$0xff]
        %v4585 = vld [vmem:[#allocation26 + $0x38] sm:$0xff]
        %v4586 = vld [vmem:[#allocation26 + $0x40] sm:$0xff]
        %v4587 = vld [vmem:[#allocation26 + $0x48] sm:$0xff]
        %v4588 = vld [vmem:[#allocation26 + $0x50] sm:$0xff]
        %v4589 = vld [vmem:[#allocation26 + $0x58] sm:$0xff]
        %v4590 = vld [vmem:[#allocation26 + $0x60] sm:$0xff]
        %v4591 = vld [vmem:[#allocation26 + $0x68] sm:$0xff]
        %v4592 = vld [vmem:[#allocation26 + $0x70] sm:$0xff]
        %v4593 = vld [vmem:[#allocation26 + $0x78] sm:$0xff]
        %v4594 = vld [vmem:[#allocation28] sm:$0x3]
        %v4596 = vlaneseq
        %v4597 = vshrl.u32 %v4596, 7
        %v4598 = vsub.s32 0, %v4597
        %v4599 = vrot.slane %v4594, %v4598
        %v4600 = vlaneseq
        %v4601 = vshrl.u32 %v4600, 7
        %v4602 = vsub.s32 1, %v4601
        %v4603 = vrot.slane %v4594, %v4602
        %v4622 = vunpack.c.l.b16 %v4578
        %v4623 = vunpack.c.h.b16 %v4578
        %v4624 = vunpack.c.l.b16 %v4579
        %v4625 = vunpack.c.h.b16 %v4579
        %v4626 = vunpack.c.l.b16 %v4580
        %v4627 = vunpack.c.h.b16 %v4580
        %v4628 = vunpack.c.l.b16 %v4581
        %v4629 = vunpack.c.h.b16 %v4581
        %v4630 = vunpack.c.l.b16 %v4582
        %v4631 = vunpack.c.h.b16 %v4582
        %v4632 = vunpack.c.l.b16 %v4583
        %v4633 = vunpack.c.h.b16 %v4583
        %v4634 = vunpack.c.l.b16 %v4584
        %v4635 = vunpack.c.h.b16 %v4584
        %v4636 = vunpack.c.l.b16 %v4585
        %v4637 = vunpack.c.h.b16 %v4585
        %v4638 = vunpack.c.l.b16 %v4586
        %v4639 = vunpack.c.h.b16 %v4586
        %v4640 = vunpack.c.l.b16 %v4587
        %v4641 = vunpack.c.h.b16 %v4587
        %v4642 = vunpack.c.l.b16 %v4588
        %v4643 = vunpack.c.h.b16 %v4588
        %v4644 = vunpack.c.l.b16 %v4589
        %v4645 = vunpack.c.h.b16 %v4589
        %v4646 = vunpack.c.l.b16 %v4590
        %v4647 = vunpack.c.h.b16 %v4590
        %v4648 = vunpack.c.l.b16 %v4591
        %v4649 = vunpack.c.h.b16 %v4591
        %v4650 = vunpack.c.l.b16 %v4592
        %v4651 = vunpack.c.h.b16 %v4592
        %v4652 = vunpack.c.l.b16 %v4593
        %v4653 = vunpack.c.h.b16 %v4593
        %v4654 = vpack.c.b16 %v4624, %v4622
        %v4655 = vpack.c.b16 %v4625, %v4623
        %v4656 = vpack.c.b16 %v4628, %v4626
        %v4657 = vpack.c.b16 %v4629, %v4627
        %v4658 = vpack.c.b16 %v4632, %v4630
        %v4659 = vpack.c.b16 %v4633, %v4631
        %v4660 = vpack.c.b16 %v4636, %v4634
        %v4661 = vpack.c.b16 %v4637, %v4635
        %v4662 = vpack.c.b16 %v4640, %v4638
        %v4663 = vpack.c.b16 %v4641, %v4639
        %v4664 = vpack.c.b16 %v4644, %v4642
        %v4665 = vpack.c.b16 %v4645, %v4643
        %v4666 = vpack.c.b16 %v4648, %v4646
        %v4667 = vpack.c.b16 %v4649, %v4647
        %v4668 = vpack.c.b16 %v4652, %v4650
        %v4669 = vpack.c.b16 %v4653, %v4651
        %4686 = vmatprep.subr.bf16.mxu0 %v4655
        %4687 = vmatpush1.bf16.msra.mxu0 %v4654
        %4688 = vmatprep.subr.bf16.mxu0 %v4657
        %4689 = vmatpush1.bf16.msra.mxu0 %v4656
        %4690 = vmatprep.subr.bf16.mxu0 %v4659
        %4691 = vmatpush1.bf16.msra.mxu0 %v4658
        %4692 = vmatprep.subr.bf16.mxu0 %v4661
        %4693 = vmatpush1.bf16.msra.mxu0 %v4660
        %4694 = vmatprep.subr.bf16.mxu0 %v4663
        %4695 = vmatpush1.bf16.msra.mxu0 %v4662
        %4696 = vmatprep.subr.bf16.mxu0 %v4665
        %4697 = vmatpush1.bf16.msra.mxu0 %v4664
        %4698 = vmatprep.subr.bf16.mxu0 %v4667
        %4699 = vmatpush1.bf16.msra.mxu0 %v4666
        %4700 = vmatprep.subr.bf16.mxu0 %v4669
        %4701 = vmatpush1.bf16.msra.mxu0 %v4668
        %4702 = vmatprep.subr.bf16.mxu0 0
        %4703 = vmatpush1.bf16.msra.mxu0 0
        %4704 = vmatprep.subr.bf16.mxu0 0
        %4705 = vmatpush1.bf16.msra.mxu0 0
        %4706 = vmatprep.subr.bf16.mxu0 0
        %4707 = vmatpush1.bf16.msra.mxu0 0
        %4708 = vmatprep.subr.bf16.mxu0 0
        %4709 = vmatpush1.bf16.msra.mxu0 0
        %4710 = vmatprep.subr.bf16.mxu0 0
        %4711 = vmatpush1.bf16.msra.mxu0 0
        %4712 = vmatprep.subr.bf16.mxu0 0
        %4713 = vmatpush1.bf16.msra.mxu0 0
        %4714 = vmatprep.subr.bf16.mxu0 0
        %4715 = vmatpush1.bf16.msra.mxu0 0
        %4716 = vmatprep.subr.bf16.mxu0 0
        %4717 = vmatpush1.bf16.msra.mxu0 0
        %4718 = vmatprep.mubr.bf16.mxu0 0
        %4719 = vmatmul.mubr.bf16.gmra.mrb[0].mxu0 %v4562
        %v4720 = vpop.f32.mrb[0].mxu0
        %v4721 = vadd.f32 %v4599, %v4720
        %v4722 = vpop.f32.mrb[0].mxu0
        %v4723 = vadd.f32 %v4603, %v4722
        %v4724 = vpop.f32.mrb[0].mxu0
        %v4725 = vadd.f32 %v4599, %v4724
        %v4726 = vpop.f32.mrb[0].mxu0
        %v4727 = vadd.f32 %v4603, %v4726
        %4728 = vmatprep.mubr.bf16.mxu0 0
        %4729 = vmatmul.mubr.bf16.gmra.mrb[0].mxu0 %v4563
        %v4730 = vpop.f32.mrb[0].mxu0
        %v4731 = vadd.f32 %v4599, %v4730
        %v4732 = vpop.f32.mrb[0].mxu0
        %v4733 = vadd.f32 %v4603, %v4732
        %v4734 = vpop.f32.mrb[0].mxu0
        %v4735 = vadd.f32 %v4599, %v4734
        %v4736 = vpop.f32.mrb[0].mxu0
        %v4737 = vadd.f32 %v4603, %v4736
        %4738 = vmatprep.mubr.bf16.mxu0 0
        %4739 = vmatmul.mubr.bf16.gmra.mrb[0].mxu0 %v4564
        %v4740 = vpop.f32.mrb[0].mxu0
        %v4741 = vadd.f32 %v4599, %v4740
        %v4742 = vpop.f32.mrb[0].mxu0
        %v4743 = vadd.f32 %v4603, %v4742
        %v4744 = vpop.f32.mrb[0].mxu0
        %v4745 = vadd.f32 %v4599, %v4744
        %v4746 = vpop.f32.mrb[0].mxu0
        %v4747 = vadd.f32 %v4603, %v4746
        %4748 = vmatprep.mubr.bf16.mxu0 0
        %4749 = vmatmul.mubr.bf16.gmra.mrb[0].mxu0 %v4565
        %v4750 = vpop.f32.mrb[0].mxu0
        %v4751 = vadd.f32 %v4599, %v4750
        %v4752 = vpop.f32.mrb[0].mxu0
        %v4753 = vadd.f32 %v4603, %v4752
        %v4754 = vpop.f32.mrb[0].mxu0
        %v4755 = vadd.f32 %v4599, %v4754
        %v4756 = vpop.f32.mrb[0].mxu0
        %v4757 = vadd.f32 %v4603, %v4756
        %4758 = vmatprep.mubr.bf16.mxu0 0
        %4759 = vmatmul.mubr.bf16.gmra.mrb[0].mxu0 %v4566
        %v4760 = vpop.f32.mrb[0].mxu0
        %v4761 = vadd.f32 %v4599, %v4760
        %v4762 = vpop.f32.mrb[0].mxu0
        %v4763 = vadd.f32 %v4603, %v4762
        %v4764 = vpop.f32.mrb[0].mxu0
        %v4765 = vadd.f32 %v4599, %v4764
        %v4766 = vpop.f32.mrb[0].mxu0
        %v4767 = vadd.f32 %v4603, %v4766
        %4768 = vmatprep.mubr.bf16.mxu0 0
        %4769 = vmatmul.mubr.bf16.gmra.mrb[0].mxu0 %v4567
        %v4770 = vpop.f32.mrb[0].mxu0
        %v4771 = vadd.f32 %v4599, %v4770
        %v4772 = vpop.f32.mrb[0].mxu0
        %v4773 = vadd.f32 %v4603, %v4772
        %v4774 = vpop.f32.mrb[0].mxu0
        %v4775 = vadd.f32 %v4599, %v4774
        %v4776 = vpop.f32.mrb[0].mxu0
        %v4777 = vadd.f32 %v4603, %v4776
        %4778 = vmatprep.mubr.bf16.mxu0 0
        %4779 = vmatmul.mubr.bf16.gmra.mrb[0].mxu0 %v4568
        %v4780 = vpop.f32.mrb[0].mxu0
        %v4781 = vadd.f32 %v4599, %v4780
        %v4782 = vpop.f32.mrb[0].mxu0
        %v4783 = vadd.f32 %v4603, %v4782
        %v4784 = vpop.f32.mrb[0].mxu0
        %v4785 = vadd.f32 %v4599, %v4784
        %v4786 = vpop.f32.mrb[0].mxu0
        %v4787 = vadd.f32 %v4603, %v4786
        %4788 = vmatprep.mubr.bf16.mxu0 0
        %4789 = vmatmul.mubr.bf16.gmra.mrb[0].mxu0 %v4569
        %v4790 = vpop.f32.mrb[0].mxu0
        %v4791 = vadd.f32 %v4599, %v4790
        %v4792 = vpop.f32.mrb[0].mxu0
        %v4793 = vadd.f32 %v4603, %v4792
        %v4794 = vpop.f32.mrb[0].mxu0
        %v4795 = vadd.f32 %v4599, %v4794
        %v4796 = vpop.f32.mrb[0].mxu0
        %v4797 = vadd.f32 %v4603, %v4796
        %4798 = vmatprep.mubr.bf16.mxu0 0
        %4799 = vmatmul.mubr.bf16.gmra.mrb[0].mxu0 %v4570
        %v4800 = vpop.f32.mrb[0].mxu0
        %v4801 = vadd.f32 %v4599, %v4800
        %v4802 = vpop.f32.mrb[0].mxu0
        %v4803 = vadd.f32 %v4603, %v4802
        %v4804 = vpop.f32.mrb[0].mxu0
        %v4805 = vadd.f32 %v4599, %v4804
        %v4806 = vpop.f32.mrb[0].mxu0
        %v4807 = vadd.f32 %v4603, %v4806
        %4808 = vmatprep.mubr.bf16.mxu0 0
        %4809 = vmatmul.mubr.bf16.gmra.mrb[0].mxu0 %v4571
        %v4810 = vpop.f32.mrb[0].mxu0
        %v4811 = vadd.f32 %v4599, %v4810
        %v4812 = vpop.f32.mrb[0].mxu0
        %v4813 = vadd.f32 %v4603, %v4812
        %v4814 = vpop.f32.mrb[0].mxu0
        %v4815 = vadd.f32 %v4599, %v4814
        %v4816 = vpop.f32.mrb[0].mxu0
        %v4817 = vadd.f32 %v4603, %v4816
        %4818 = vmatprep.mubr.bf16.mxu0 0
        %4819 = vmatmul.mubr.bf16.gmra.mrb[0].mxu0 %v4572
        %v4820 = vpop.f32.mrb[0].mxu0
        %v4821 = vadd.f32 %v4599, %v4820
        %v4822 = vpop.f32.mrb[0].mxu0
        %v4823 = vadd.f32 %v4603, %v4822
        %v4824 = vpop.f32.mrb[0].mxu0
        %v4825 = vadd.f32 %v4599, %v4824
        %v4826 = vpop.f32.mrb[0].mxu0
        %v4827 = vadd.f32 %v4603, %v4826
        %4828 = vmatprep.mubr.bf16.mxu0 0
        %4829 = vmatmul.mubr.bf16.gmra.mrb[0].mxu0 %v4573
        %v4830 = vpop.f32.mrb[0].mxu0
        %v4831 = vadd.f32 %v4599, %v4830
        %v4832 = vpop.f32.mrb[0].mxu0
        %v4833 = vadd.f32 %v4603, %v4832
        %v4834 = vpop.f32.mrb[0].mxu0
        %v4835 = vadd.f32 %v4599, %v4834
        %v4836 = vpop.f32.mrb[0].mxu0
        %v4837 = vadd.f32 %v4603, %v4836
        %4838 = vmatprep.mubr.bf16.mxu0 0
        %4839 = vmatmul.mubr.bf16.gmra.mrb[0].mxu0 %v4574
        %v4840 = vpop.f32.mrb[0].mxu0
        %v4841 = vadd.f32 %v4599, %v4840
        %v4842 = vpop.f32.mrb[0].mxu0
        %v4843 = vadd.f32 %v4603, %v4842
        %v4844 = vpop.f32.mrb[0].mxu0
        %v4845 = vadd.f32 %v4599, %v4844
        %v4846 = vpop.f32.mrb[0].mxu0
        %v4847 = vadd.f32 %v4603, %v4846
        %4848 = vmatprep.mubr.bf16.mxu0 0
        %4849 = vmatmul.mubr.bf16.gmra.mrb[0].mxu0 %v4575
        %v4850 = vpop.f32.mrb[0].mxu0
        %v4851 = vadd.f32 %v4599, %v4850
        %v4852 = vpop.f32.mrb[0].mxu0
        %v4853 = vadd.f32 %v4603, %v4852
        %v4854 = vpop.f32.mrb[0].mxu0
        %v4855 = vadd.f32 %v4599, %v4854
        %v4856 = vpop.f32.mrb[0].mxu0
        %v4857 = vadd.f32 %v4603, %v4856
        %4858 = vmatprep.mubr.bf16.mxu0 0
        %4859 = vmatmul.mubr.bf16.gmra.mrb[0].mxu0 %v4576
        %v4860 = vpop.f32.mrb[0].mxu0
        %v4861 = vadd.f32 %v4599, %v4860
        %v4862 = vpop.f32.mrb[0].mxu0
        %v4863 = vadd.f32 %v4603, %v4862
        %v4864 = vpop.f32.mrb[0].mxu0
        %v4865 = vadd.f32 %v4599, %v4864
        %v4866 = vpop.f32.mrb[0].mxu0
        %v4867 = vadd.f32 %v4603, %v4866
        %4868 = vmatprep.mubr.bf16.mxu0 0
        %4869 = vmatmul.mubr.bf16.gmra.mrb[0].mxu0 %v4577
        %v4870 = vpop.f32.mrb[0].mxu0
        %v4871 = vadd.f32 %v4599, %v4870
        %v4872 = vpop.f32.mrb[0].mxu0
        %v4873 = vadd.f32 %v4603, %v4872
        %v4874 = vpop.f32.mrb[0].mxu0
        %v4875 = vadd.f32 %v4599, %v4874
        %v4876 = vpop.f32.mrb[0].mxu0
        %v4877 = vadd.f32 %v4603, %v4876
        %4878 = vdwg.mxu0
        %4879 = vst [vmem:[%s821] sm:$0xff] %v4721
        %4880 = vst [vmem:[%s821 + $0x8] sm:$0xff] %v4723
        %4881 = vst [vmem:[%s821 + $0x10] sm:$0xff] %v4725
        %4882 = vst [vmem:[%s821 + $0x18] sm:$0xff] %v4727
        %4883 = vst [vmem:[%s821 + $0x20] sm:$0xff] %v4731
        %4884 = vst [vmem:[%s821 + $0x28] sm:$0xff] %v4733
        %4885 = vst [vmem:[%s821 + $0x30] sm:$0xff] %v4735
        %4886 = vst [vmem:[%s821 + $0x38] sm:$0xff] %v4737
        %4887 = vst [vmem:[%s821 + $0x40] sm:$0xff] %v4741
        %4888 = vst [vmem:[%s821 + $0x48] sm:$0xff] %v4743
        %4889 = vst [vmem:[%s821 + $0x50] sm:$0xff] %v4745
        %4890 = vst [vmem:[%s821 + $0x58] sm:$0xff] %v4747
        %4891 = vst [vmem:[%s821 + $0x60] sm:$0xff] %v4751
        %4892 = vst [vmem:[%s821 + $0x68] sm:$0xff] %v4753
        %4893 = vst [vmem:[%s821 + $0x70] sm:$0xff] %v4755
        %4894 = vst [vmem:[%s821 + $0x78] sm:$0xff] %v4757
        %4895 = vst [vmem:[%s821 + $0x80] sm:$0xff] %v4761
        %4896 = vst [vmem:[%s821 + $0x88] sm:$0xff] %v4763
        %4897 = vst [vmem:[%s821 + $0x90] sm:$0xff] %v4765
        %4898 = vst [vmem:[%s821 + $0x98] sm:$0xff] %v4767
        %4899 = vst [vmem:[%s821 + $0xa0] sm:$0xff] %v4771
        %4900 = vst [vmem:[%s821 + $0xa8] sm:$0xff] %v4773
        %4901 = vst [vmem:[%s821 + $0xb0] sm:$0xff] %v4775
        %4902 = vst [vmem:[%s821 + $0xb8] sm:$0xff] %v4777
        %4903 = vst [vmem:[%s821 + $0xc0] sm:$0xff] %v4781
        %4904 = vst [vmem:[%s821 + $0xc8] sm:$0xff] %v4783
        %4905 = vst [vmem:[%s821 + $0xd0] sm:$0xff] %v4785
        %4906 = vst [vmem:[%s821 + $0xd8] sm:$0xff] %v4787
        %4907 = vst [vmem:[%s821 + $0xe0] sm:$0xff] %v4791
        %4908 = vst [vmem:[%s821 + $0xe8] sm:$0xff] %v4793
        %4909 = vst [vmem:[%s821 + $0xf0] sm:$0xff] %v4795
        %4910 = vst [vmem:[%s821 + $0xf8] sm:$0xff] %v4797
        %4911 = vst [vmem:[%s821 + $0x100] sm:$0xff] %v4801
        %4912 = vst [vmem:[%s821 + $0x108] sm:$0xff] %v4803
        %4913 = vst [vmem:[%s821 + $0x110] sm:$0xff] %v4805
        %4914 = vst [vmem:[%s821 + $0x118] sm:$0xff] %v4807
        %4915 = vst [vmem:[%s821 + $0x120] sm:$0xff] %v4811
        %4916 = vst [vmem:[%s821 + $0x128] sm:$0xff] %v4813
        %4917 = vst [vmem:[%s821 + $0x130] sm:$0xff] %v4815
        %4918 = vst [vmem:[%s821 + $0x138] sm:$0xff] %v4817
        %4919 = vst [vmem:[%s821 + $0x140] sm:$0xff] %v4821
        %4920 = vst [vmem:[%s821 + $0x148] sm:$0xff] %v4823
        %4921 = vst [vmem:[%s821 + $0x150] sm:$0xff] %v4825
        %4922 = vst [vmem:[%s821 + $0x158] sm:$0xff] %v4827
        %4923 = vst [vmem:[%s821 + $0x160] sm:$0xff] %v4831
        %4924 = vst [vmem:[%s821 + $0x168] sm:$0xff] %v4833
        %4925 = vst [vmem:[%s821 + $0x170] sm:$0xff] %v4835
        %4926 = vst [vmem:[%s821 + $0x178] sm:$0xff] %v4837
        %4927 = vst [vmem:[%s821 + $0x180] sm:$0xff] %v4841
        %4928 = vst [vmem:[%s821 + $0x188] sm:$0xff] %v4843
        %4929 = vst [vmem:[%s821 + $0x190] sm:$0xff] %v4845
        %4930 = vst [vmem:[%s821 + $0x198] sm:$0xff] %v4847
        %4931 = vst [vmem:[%s821 + $0x1a0] sm:$0xff] %v4851
        %4932 = vst [vmem:[%s821 + $0x1a8] sm:$0xff] %v4853
        %4933 = vst [vmem:[%s821 + $0x1b0] sm:$0xff] %v4855
        %4934 = vst [vmem:[%s821 + $0x1b8] sm:$0xff] %v4857
        %4935 = vst [vmem:[%s821 + $0x1c0] sm:$0xff] %v4861
        %4936 = vst [vmem:[%s821 + $0x1c8] sm:$0xff] %v4863
        %4937 = vst [vmem:[%s821 + $0x1d0] sm:$0xff] %v4865
        %4938 = vst [vmem:[%s821 + $0x1d8] sm:$0xff] %v4867
        %4939 = vst [vmem:[%s821 + $0x1e0] sm:$0xff] %v4871
        %4940 = vst [vmem:[%s821 + $0x1e8] sm:$0xff] %v4873
        %4941 = vst [vmem:[%s821 + $0x1f0] sm:$0xff] %v4875
        %4942 = vst [vmem:[%s821 + $0x1f8] sm:$0xff] %v4877
        %s4943 = sand.u32 %s417, 1
        %s4944 = scalar_lea.sflag [#allocation4], %s4943
        %s4945 = sand.u32 %s417, 1
        %s4946 = smul.addr %s4945, 256
        %s4947 = scalar_lea.vmem [#allocation29], %s4946
        %s4948 = sand.u32 %s443, 1
        %s4949 = scalar_lea.sflag [#allocation31], %s4948
        %s4950 = sand.u32 %s443, 1
        %s4951 = smul.addr %s4950, 512
        %s4952 = scalar_lea.vmem [#allocation30], %s4951
        // Predicated region
        $region157: #{tpu_custom_call.1} parent=87 // pred_check
          %p4953 = pneg %p427
        $region158: #{tpu_custom_call.1} parent=87 // pred_check_branch
          %4955 = sbr.rel (%p4953) target = $region160
        $region159: #{tpu_custom_call.1} parent=87 // pred_region
          %s4956 = smul.u32 32, %s47
          %s4958 = ssub.s32 4096, 4096
          %4959 = vsyncadd %s4944, %s4958
          %s4960 = smul.addr %s4956, 128
          %s4961 = scalar_lea.hbm %s17, %s4960
          %s4962 = sshll.u32 %s4947, 4
          %s4963 = int_to_ptr.vmem [resolvable:$true] %s4962
          %4968 = dma.vmem_to_hbm [thread:$0]  %s4963, 4096, %s4961, %s4944, 128, 128, 8
        $region160: #{tpu_custom_call.1} parent=87 // pred_fallthru
          _
        // Predicated region
        $region161: #{tpu_custom_call.1} parent=87 // pred_check
          %p4969 = pneg %p453
        $region162: #{tpu_custom_call.1} parent=87 // pred_check_branch
          %4971 = sbr.rel (%p4969) target = $region164
        $region163: #{tpu_custom_call.1} parent=87 // pred_region
          %s4972 = smul.u32 32, %s47
          %s4974 = ssub.s32 8192, 8192
          %4975 = vsyncadd %s4949, %s4974
          %s4976 = smul.addr %s4972, 2
          %s4977 = smul.addr %s4976, 128
          %s4978 = scalar_lea.hbm %s18, %s4977
          %s4979 = sshll.u32 %s4952, 4
          %s4980 = int_to_ptr.vmem [resolvable:$true] %s4979
          %4985 = dma.vmem_to_hbm [thread:$0]  %s4980, 8192, %s4978, %s4949, 256, 256, 16
        $region164: #{tpu_custom_call.1} parent=87 // pred_fallthru
          _
      $region88: #{tpu_custom_call.1} parent=5 // pred_fallthru
        _
      %p4986 = scmp.le.s32.totalorder 2, %s42
      // Predicated region
      $region165: #{tpu_custom_call.1} parent=5 // pred_check
        %p4987 = pneg %p4986
      $region166: #{tpu_custom_call.1} parent=5 // pred_check_branch
        %4989 = sbr.rel (%p4987) target = $region168
      $region167: #{tpu_custom_call.1} parent=5 // pred_region
        %s4990 = ssub.s32 %s42, 2
        // Predicated region
        $region169: #{tpu_custom_call.1} parent=167 // pred_check
          %p4991 = pneg %p433
        $region170: #{tpu_custom_call.1} parent=167 // pred_check_branch
          %4993 = sbr.rel (%p4991) target = $region172
        $region171: #{tpu_custom_call.1} parent=167 // pred_region
          %s4994 = sand.u32 %s418, 1
          %s4995 = scalar_lea.sflag [#allocation4], %s4994
          %s4996 = sand.u32 %s418, 1
          %s4997 = smul.addr %s4996, 256
          %s4998 = scalar_lea.vmem [#allocation29], %s4997
          %4999 = dma.done %s4995, 4096
        $region172: #{tpu_custom_call.1} parent=167 // pred_fallthru
          _
        // Predicated region
        $region173: #{tpu_custom_call.1} parent=167 // pred_check
          %p5000 = pneg %p459
        $region174: #{tpu_custom_call.1} parent=167 // pred_check_branch
          %5002 = sbr.rel (%p5000) target = $region176
        $region175: #{tpu_custom_call.1} parent=167 // pred_region
          %s5003 = sand.u32 %s444, 1
          %s5004 = scalar_lea.sflag [#allocation31], %s5003
          %s5005 = sand.u32 %s444, 1
          %s5006 = smul.addr %s5005, 512
          %s5007 = scalar_lea.vmem [#allocation30], %s5006
          %5008 = dma.done %s5004, 8192
        $region176: #{tpu_custom_call.1} parent=167 // pred_fallthru
          _
      $region168: #{tpu_custom_call.1} parent=5 // pred_fallthru
        _
    $region6: #{tpu_custom_call.1} parent=1 // loop_footer
      %s46 = sadd.s32 1, %s42
    $region7: #{tpu_custom_call.1} parent=1 // loop_footer_branch
      %41 = sbr.rel target = $region3
    $region8: #{tpu_custom_call.1} parent=1 // loop_exit
      _
    %5009 = vsyncpa [#allocation3], 1
    %s5010 = scalar_lea.sflag [#allocation3], 1
    %5011 = vsyncpa %s5010, 1
    %5012 = vsyncpa [#allocation6], 1
    %5013 = vsyncpa [#allocation9], 1
    %5014 = vsyncpa [#allocation12], 1
    %5015 = vsyncpa [#allocation15], 1
    %5016 = vsyncpa [#allocation18], 1
    %5017 = vsyncpa [#allocation21], 1
    %5018 = vsyncpa [#allocation24], 1
    %5019 = vsyncpa [#allocation27], 1
    %5020 = vsyncpa [#allocation4], 1
    %s5021 = scalar_lea.sflag [#allocation4], 1
    %5022 = vsyncpa %s5021, 1
    %5023 = vsyncpa [#allocation31], 1
    %s5024 = scalar_lea.sflag [#allocation31], 1
    %5025 = vsyncpa %s5024, 1

</llo_original>
